<compile_context>
chip_gen: v7x
topology: tpu7x:2x2x1
jax: 0.10.0
libtpu: 0.0.40
codegen_flags: <defaults>
</compile_context>

<pallas_src>
import functools
import numpy as np
import jax
import jax.numpy as jnp
from jax.experimental import pallas as pl
from jax.experimental.pallas import tpu as pltpu

EPS = 1e-5
NUM_REGIONS = 8


# --------------------------------------------------------------------------
# Single fused kernel: backbone + proposals + refine branches + GAP
# --------------------------------------------------------------------------
def _fused_kernel(x_ref, pool_ref, band_ref, smean_ref, sbcast_ref,
                  wst_ref, bst_ref,
                  wl1_ref, bl1_ref, wl2_ref, bl2_ref,
                  wl3_ref, bl3_ref, wl4_ref, bl4_ref,
                  wfirst_ref, bfirst_ref, wsecond_ref, bsecond_ref,
                  feat_ref, red_ref, *, c3, c4, e4):
    f32, bf16 = jnp.float32, jnp.bfloat16

    def conv(h, w_r, b_r):               # 1x1 conv (+folded BN) + ReLU on MXU
        y = jnp.dot(h.astype(bf16), w_r[...], preferred_element_type=f32) + b_r[...]
        return jnp.maximum(y, 0.0)

    # ---- synthetic backbone: stem -> 2x2 avg-pool (precomputed matrix) -> l1..l4
    h = conv(x_ref[...], wst_ref, bst_ref)                       # (Nin, 8)
    hp = jnp.dot(pool_ref[...], h.astype(bf16),
                 preferred_element_type=f32)                     # (N, 8)
    f1 = conv(hp, wl1_ref, bl1_ref)                              # (N, 16)
    f2 = conv(f1, wl2_ref, bl2_ref)                              # (N, 32)
    f3 = conv(f2, wl3_ref, bl3_ref)                              # (N, c3)
    f4 = conv(f3, wl4_ref, bl4_ref)                              # (N, c4)

    # ---- generate_contour_masks_resnet: channel-mean -> abs -> global-mean thr.
    # NOTE: threshold is the mean over the WHOLE tensor (matches torch .mean()).
    am = jnp.abs(jnp.mean(f1, axis=-1, keepdims=True))           # (N, 1)
    thr = jnp.mean(am, keepdims=True)                            # (1, 1)
    contour = (am > thr).astype(f32)                             # (N, 1)
    # generate_contour_based_masks: 8 vertical bands via precomputed one-hot.
    # TODO(synk): cv2.dilate(2x2, iters=2) per band and nearest resize omitted.
    prop = band_ref[...] * contour                               # (N, 128), cols>=8 zero

    # ---- reduce = sigmoid(mean_{H,W} proposal) per (batch, band); f32 path.
    smean = smean_ref[...]                                       # (Bpad, N) f32
    red = jax.nn.sigmoid(jnp.dot(smean, prop,
                                 preferred_element_type=f32))    # (Bpad, 128)
    red_ref[...] = red

    # ---- proposal fusion: pf = base * (sum_p prop*reduce + 1)
    red_rows = jnp.dot(sbcast_ref[...], red,
                       preferred_element_type=f32)               # (N, 128)
    pscale = jnp.sum(prop * red_rows, axis=-1, keepdims=True) + 1.0   # (N, 1)

    # ---- both stages' refine branches (BN->ResidualBlock->Dropout(eval)) as
    # packed block matmuls; K split into {f3, f4} x {base, prop_feat} so no
    # lane-axis concat and no layer3 zero padding.
    wb3 = wfirst_ref[0:c3, :]
    wb4 = wfirst_ref[c3:c3 + c4, :]
    wp3 = wfirst_ref[c3 + c4:2 * c3 + c4, :]
    wp4 = wfirst_ref[2 * c3 + c4:2 * (c3 + c4), :]
    hs = (jnp.dot(f3.astype(bf16), wb3, preferred_element_type=f32)
          + jnp.dot(f4.astype(bf16), wb4, preferred_element_type=f32)
          + jnp.dot((f3 * pscale).astype(bf16), wp3, preferred_element_type=f32)
          + jnp.dot((f4 * pscale).astype(bf16), wp4, preferred_element_type=f32)
          + bfirst_ref[...])                                     # (N, 2*e4)
    h_all = jnp.maximum(hs[:, 0:e4], 0.0)                        # conv1 path
    s_all = hs[:, e4:2 * e4]                                     # shortcut path
    h2 = jnp.dot(h_all.astype(bf16), wsecond_ref[...],
                 preferred_element_type=f32) + bsecond_ref[...]
    f_all = jnp.maximum(h2 + s_all, 0.0)                         # (N, e4)

    # ---- Dropout(eval)=identity; AdaptiveAvgPool2d(1) = per-image mean (matmul).
    # Lane-dense packed slab: per stage [global(2E) | prop(E) | base(E)].
    feat_ref[...] = jnp.dot(smean, f_all, preferred_element_type=f32)   # (Bpad, e4)


# --------------------------------------------------------------------------
# Parameter init (PyTorch-like shapes) and one-time kernel-ready preparation
# --------------------------------------------------------------------------
def _kaiming(key, shape, fan_in):
    return (jax.random.normal(key, shape, jnp.float32)
            * np.sqrt(2.0 / fan_in)).astype(jnp.float32)


def _bn_fold(c):
    # weights_init_kaiming: BN weight=1, bias=0; eval running stats mean=0, var=1.
    gamma = jnp.ones((c,), jnp.float32)
    beta = jnp.zeros((c,), jnp.float32)
    rmean = jnp.zeros((c,), jnp.float32)
    rvar = jnp.ones((c,), jnp.float32)
    scale = gamma / jnp.sqrt(rvar + EPS)
    shift = beta - rmean * scale
    return scale, shift


def _refine_params(key, cin, cout):
    k1, k2, k3 = jax.random.split(key, 3)
    spre, bpre = _bn_fold(cin)
    s1, t1 = _bn_fold(cout)
    s2, t2 = _bn_fold(cout)
    ss, ts = _bn_fold(cout)
    return dict(spre=spre, bpre=bpre,
                w1=_kaiming(k1, (cout, cin), cin), s1=s1, t1=t1,
                w2=_kaiming(k2, (cout, cout), cout), s2=s2, t2=t2,
                ws=_kaiming(k3, (cout, cin), cin), ss=ss, ts=ts)


def init_params(key, embed_num=16):
    ks = jax.random.split(key, 16)
    channels = dict(stem=(3, 8), l1=(8, 16), l2=(16, 32), l3=(32, 32), l4=(32, 64))
    p = {}
    for i, (name, (cin, cout)) in enumerate(channels.items()):
        p[name + '_w'] = _kaiming(ks[i], (cout, cin), cin)
        p[name + '_b'] = jnp.zeros((cout,), jnp.float32)
    num_features = [32, 64]                 # synthetic layer3 / layer4 channels
    p['refine_concat'] = [_refine_params(ks[5 + i], num_features[i] * 2, embed_num * 2)
                          for i in range(2)]
    p['refine_prop'] = [_refine_params(ks[8 + i], num_features[i], embed_num)
                        for i in range(2)]
    p['refine_base'] = [_refine_params(ks[11 + i], num_features[i], embed_num)
                        for i in range(2)]
    return p


def prepare_params(p):
    """One-time (eager) prep: fold eval BNs, transpose for (N,C) layout, pack
    both stages and the W1||Ws pairs into single block matrices, cast bf16."""
    num_features = [p['refine_prop'][i]['w1'].shape[1] for i in range(2)]
    c3, c4 = num_features
    E = p['refine_prop'][0]['w1'].shape[0]
    e4 = 8 * E                            # 2 stages x 4E packed output width
    Ctot = c3 + c4

    prep = {}
    for name in ('stem', 'l1', 'l2', 'l3', 'l4'):
        prep[name + '_w'] = p[name + '_w'].T.astype(jnp.bfloat16)       # (Cin, Cout)
        prep[name + '_b'] = p[name + '_b'][None, :].astype(jnp.float32)  # (1, Cout)

    def fold(rp):
        # refine block (eval): BN_pre -> conv1/BN1/ReLU -> conv2/BN2, shortcut conv/BN.
        w1 = rp['w1'] * rp['s1'][:, None]
        b1 = w1 @ rp['bpre'] + rp['t1']
        w1 = w1 * rp['spre'][None, :]
        w2 = rp['w2'] * rp['s2'][:, None]
        b2 = rp['t2']
        ws = rp['ws'] * rp['ss'][:, None]
        bs = ws @ rp['bpre'] + rp['ts']
        ws = ws * rp['spre'][None, :]
        return [np.asarray(a) for a in (w1, b1, w2, b2, ws, bs)]

    # Row layout of Wfirst: [base_f3 | base_f4 | pf_f3 | pf_f4]  (2*Ctot rows)
    # Col layout:           [h_stage0(4E) | h_stage1(4E) | s_stage0(4E) | s_stage1(4E)]
    # Within a stage's 4E block: [concat(2E) | prop(E) | base(E)].
    Wf = np.zeros((2 * Ctot, 2 * e4), np.float32)
    bf = np.zeros((1, 2 * e4), np.float32)
    W2 = np.zeros((e4, e4), np.float32)
    b2v = np.zeros((1, e4), np.float32)
    row_base = [0, c3]
    row_pf = [Ctot, Ctot + c3]
    for i in range(2):
        c = num_features[i]
        w1c, b1c, w2c, b2c, wsc, bsc = fold(p['refine_concat'][i])
        w1p, b1p, w2p, b2p, wsp, bsp = fold(p['refine_prop'][i])
        w1b, b1b, w2b, b2b, wsb, bsb = fold(p['refine_base'][i])
        ho, so = i * 4 * E, e4 + i * 4 * E
        rb, rp_ = row_base[i], row_pf[i]
        # first layer (h) -- torch cat order is (base_feat, prop_feat): base first.
        Wf[rb:rb + c, ho:ho + 2 * E] = w1c[:, 0:c].T
        Wf[rp_:rp_ + c, ho:ho + 2 * E] = w1c[:, c:2 * c].T
        Wf[rp_:rp_ + c, ho + 2 * E:ho + 3 * E] = w1p.T          # prop branch (pf only)
        Wf[rb:rb + c, ho + 3 * E:ho + 4 * E] = w1b.T            # base branch (base only)
        # shortcut (s)
        Wf[rb:rb + c, so:so + 2 * E] = wsc[:, 0:c].T
        Wf[rp_:rp_ + c, so:so + 2 * E] = wsc[:, c:2 * c].T
        Wf[rp_:rp_ + c, so + 2 * E:so + 3 * E] = wsp.T
        Wf[rb:rb + c, so + 3 * E:so + 4 * E] = wsb.T
        bf[0, ho:ho + 4 * E] = np.concatenate([b1c, b1p, b1b])
        bf[0, so:so + 4 * E] = np.concatenate([bsc, bsp, bsb])
        # second layer (block-diagonal)
        W2[ho:ho + 2 * E, ho:ho + 2 * E] = w2c.T
        W2[ho + 2 * E:ho + 3 * E, ho + 2 * E:ho + 3 * E] = w2p.T
        W2[ho + 3 * E:ho + 4 * E, ho + 3 * E:ho + 4 * E] = w2b.T
        b2v[0, ho:ho + 4 * E] = np.concatenate([b2c, b2p, b2b])

    prep['wfirst'] = jnp.asarray(Wf, jnp.bfloat16)     # (2*Ctot, 2*e4)
    prep['bfirst'] = jnp.asarray(bf, jnp.float32)      # (1, 2*e4)
    prep['wsecond'] = jnp.asarray(W2, jnp.bfloat16)    # (e4, e4)
    prep['bsecond'] = jnp.asarray(b2v, jnp.float32)    # (1, e4)
    return prep


# --------------------------------------------------------------------------
# Forward (eval mode, mode='DPRC', neck='no', multi_nums=2)
# --------------------------------------------------------------------------
def forward(x, prep):
    B, Cimg, H, W = x.shape
    H2, W2 = H // 2, W // 2
    HW = H2 * W2
    N = B * HW
    Nin = B * H * W
    P = NUM_REGIONS
    c3 = prep['l3_w'].shape[1]
    c4 = prep['l4_w'].shape[1]
    e4 = prep['wsecond'].shape[0]
    E = e4 // 8
    Bpad = max(8, ((B + 7) // 8) * 8)     # sublane-dense outputs

    # ---- shape-only host constants (numpy, baked at trace time, no VALU work) ----
    no, ni = np.arange(N), np.arange(Nin)
    # 2x2 average-pool matrix (N, Nin)
    bo, ro = no // HW, no % HW
    bi, ri = ni // (H * W), ni % (H * W)
    match = ((bo[:, None] == bi[None, :])
             & ((ro // W2)[:, None] == (ri // W)[None, :] // 2)
             & ((ro % W2)[:, None] == (ri % W)[None, :] // 2))
    pool_t = jnp.asarray(np.where(match, 0.25, 0.0), jnp.bfloat16)
    # per-image segment-mean (Bpad, N) and one-hot broadcast (N, Bpad)
    seg = (no // HW)[None, :] == np.arange(Bpad)[:, None]
    smean = jnp.asarray(seg.astype(np.float32) / HW, jnp.float32)
    sbcast = jnp.asarray(seg.T.astype(np.float32), jnp.float32)
    # 8 vertical-band one-hot (N, 128); columns >= P are zero
    rw = max(W2 // P, 1)
    band = np.minimum((no % W2) // rw, P - 1)
    band_oh = np.zeros((N, 128), np.float32)
    band_oh[np.arange(N), band] = 1.0
    band_oh = jnp.asarray(band_oh)

    # single layout conversion at entry: NCHW -> (B*H*W, C)
    x2 = jnp.transpose(x, (0, 2, 3, 1)).reshape(Nin, Cimg)

    cost = pl.CostEstimate(flops=19_000_000, transcendentals=1024,
                           bytes_accessed=450_000)
    feat_pack, red_pack = pl.pallas_call(
        functools.partial(_fused_kernel, c3=c3, c4=c4, e4=e4),
        out_shape=(jax.ShapeDtypeStruct((Bpad, e4), jnp.float32),
                   jax.ShapeDtypeStruct((Bpad, 128), jnp.float32)),
        cost_estimate=cost,
    )(x2, pool_t, band_oh, smean, sbcast,
      prep['stem_w'], prep['stem_b'],
      prep['l1_w'], prep['l1_b'], prep['l2_w'], prep['l2_b'],
      prep['l3_w'], prep['l3_b'], prep['l4_w'], prep['l4_b'],
      prep['wfirst'], prep['bfirst'], prep['wsecond'], prep['bsecond'])

    reduce = red_pack[:B, :P].reshape(B, P, 1, 1)
    features = {}
    for i, name in enumerate(("layer3", "layer4")):
        off = i * 4 * E
        g = feat_pack[:B, off:off + 2 * E]
        pr = feat_pack[:B, off + 2 * E:off + 3 * E]
        bs = feat_pack[:B, off + 3 * E:off + 4 * E]
        features[name] = {'feat': g,              # neck == 'no' -> feat = global
                          'global': g,
                          'reduce': reduce,
                          'base': bs,
                          'prop': pr}
    return features


if __name__ == "__main__":
    key = jax.random.PRNGKey(0)
    kx, kp = jax.random.split(key)
    x = jax.random.normal(kx, (2, 3, 16, 16), jnp.float32)   # NCHW
    params = init_params(kp, embed_num=16)
    prep = prepare_params(params)

    feats = jax.jit(forward)(x, prep)
    jax.block_until_ready(feats)

    assert feats['layer3']['feat'].shape == (2, 32)
    assert feats['layer4']['global'].shape == (2, 32)
    assert feats['layer4']['base'].shape == (2, 16)
    assert feats['layer3']['prop'].shape == (2, 16)
    assert feats['layer3']['reduce'].shape == (2, 8, 1, 1)
    assert bool(jnp.all(jnp.isfinite(feats['layer3']['feat'])))
    assert bool(jnp.all(jnp.isfinite(feats['layer4']['feat'])))
    print("KERNEL_OK")
</pallas_src>

<mosaic_0001>
module attributes {stable_mosaic.version = 11 : i64} {
  func.func @_fused_kernel(%arg0: memref<512x3xf32, #tpu.memory_space<vmem>>, %arg1: memref<128x512xbf16, #tpu.memory_space<vmem>>, %arg2: memref<128x128xf32, #tpu.memory_space<vmem>>, %arg3: memref<8x128xf32, #tpu.memory_space<vmem>>, %arg4: memref<128x8xf32, #tpu.memory_space<vmem>>, %arg5: memref<3x8xbf16, #tpu.memory_space<vmem>>, %arg6: memref<1x8xf32, #tpu.memory_space<vmem>>, %arg7: memref<8x16xbf16, #tpu.memory_space<vmem>>, %arg8: memref<1x16xf32, #tpu.memory_space<vmem>>, %arg9: memref<16x32xbf16, #tpu.memory_space<vmem>>, %arg10: memref<1x32xf32, #tpu.memory_space<vmem>>, %arg11: memref<32x32xbf16, #tpu.memory_space<vmem>>, %arg12: memref<1x32xf32, #tpu.memory_space<vmem>>, %arg13: memref<32x64xbf16, #tpu.memory_space<vmem>>, %arg14: memref<1x64xf32, #tpu.memory_space<vmem>>, %arg15: memref<192x256xbf16, #tpu.memory_space<vmem>>, %arg16: memref<1x256xf32, #tpu.memory_space<vmem>>, %arg17: memref<128x128xbf16, #tpu.memory_space<vmem>>, %arg18: memref<1x128xf32, #tpu.memory_space<vmem>>, %arg19: memref<8x128xf32, #tpu.memory_space<vmem>>, %arg20: memref<8x128xf32, #tpu.memory_space<vmem>>) attributes {dimension_semantics = [], scalar_prefetch = 0 : i64, scratch_operands = 0 : i64, tpu.core_type = #tpu.core_type<tc>} {
    %c0 = arith.constant 0 : index
    %c0_0 = arith.constant 0 : index
    %0 = vector.load %arg0[%c0, %c0_0] : memref<512x3xf32, #tpu.memory_space<vmem>>, vector<512x3xf32>
    %1 = arith.truncf %0 : vector<512x3xf32> to vector<512x3xbf16>
    %c0_1 = arith.constant 0 : index
    %c0_2 = arith.constant 0 : index
    %2 = vector.load %arg5[%c0_1, %c0_2] : memref<3x8xbf16, #tpu.memory_space<vmem>>, vector<3x8xbf16>
    %cst = arith.constant dense<0.000000e+00> : vector<512x8xf32>
    %3 = tpu.matmul %1, %2, %cst {dimension_numbers = #tpu.dot_dimension_numbers<[1], [0], [0], [1], [0, 0, 1, 1], [], []>} : vector<512x3xbf16>, vector<3x8xbf16>, vector<512x8xf32> -> vector<512x8xf32>
    %c0_3 = arith.constant 0 : index
    %c0_4 = arith.constant 0 : index
    %4 = vector.load %arg6[%c0_3, %c0_4] : memref<1x8xf32, #tpu.memory_space<vmem>>, vector<1x8xf32>
    %5 = vector.broadcast %4 : vector<1x8xf32> to vector<512x8xf32>
    %6 = arith.addf %3, %5 : vector<512x8xf32>
    %cst_5 = arith.constant 0.000000e+00 : f32
    %7 = vector.broadcast %cst_5 : f32 to vector<512x8xf32>
    %8 = arith.maximumf %6, %7 : vector<512x8xf32>
    %c0_6 = arith.constant 0 : index
    %c0_7 = arith.constant 0 : index
    %9 = vector.load %arg1[%c0_6, %c0_7] : memref<128x512xbf16, #tpu.memory_space<vmem>>, vector<128x512xbf16>
    %10 = arith.truncf %8 : vector<512x8xf32> to vector<512x8xbf16>
    %cst_8 = arith.constant dense<0.000000e+00> : vector<128x8xf32>
    %11 = tpu.matmul %9, %10, %cst_8 {dimension_numbers = #tpu.dot_dimension_numbers<[1], [0], [0], [1], [0, 0, 1, 1], [], []>} : vector<128x512xbf16>, vector<512x8xbf16>, vector<128x8xf32> -> vector<128x8xf32>
    %12 = arith.truncf %11 : vector<128x8xf32> to vector<128x8xbf16>
    %c0_9 = arith.constant 0 : index
    %c0_10 = arith.constant 0 : index
    %13 = vector.load %arg7[%c0_9, %c0_10] : memref<8x16xbf16, #tpu.memory_space<vmem>>, vector<8x16xbf16>
    %cst_11 = arith.constant dense<0.000000e+00> : vector<128x16xf32>
    %14 = tpu.matmul %12, %13, %cst_11 {dimension_numbers = #tpu.dot_dimension_numbers<[1], [0], [0], [1], [0, 0, 1, 1], [], []>} : vector<128x8xbf16>, vector<8x16xbf16>, vector<128x16xf32> -> vector<128x16xf32>
    %c0_12 = arith.constant 0 : index
    %c0_13 = arith.constant 0 : index
    %15 = vector.load %arg8[%c0_12, %c0_13] : memref<1x16xf32, #tpu.memory_space<vmem>>, vector<1x16xf32>
    %16 = vector.broadcast %15 : vector<1x16xf32> to vector<128x16xf32>
    %17 = arith.addf %14, %16 : vector<128x16xf32>
    %cst_14 = arith.constant 0.000000e+00 : f32
    %18 = vector.broadcast %cst_14 : f32 to vector<128x16xf32>
    %19 = arith.maximumf %17, %18 : vector<128x16xf32>
    %20 = arith.truncf %19 : vector<128x16xf32> to vector<128x16xbf16>
    %c0_15 = arith.constant 0 : index
    %c0_16 = arith.constant 0 : index
    %21 = vector.load %arg9[%c0_15, %c0_16] : memref<16x32xbf16, #tpu.memory_space<vmem>>, vector<16x32xbf16>
    %cst_17 = arith.constant dense<0.000000e+00> : vector<128x32xf32>
    %22 = tpu.matmul %20, %21, %cst_17 {dimension_numbers = #tpu.dot_dimension_numbers<[1], [0], [0], [1], [0, 0, 1, 1], [], []>} : vector<128x16xbf16>, vector<16x32xbf16>, vector<128x32xf32> -> vector<128x32xf32>
    %c0_18 = arith.constant 0 : index
    %c0_19 = arith.constant 0 : index
    %23 = vector.load %arg10[%c0_18, %c0_19] : memref<1x32xf32, #tpu.memory_space<vmem>>, vector<1x32xf32>
    %24 = vector.broadcast %23 : vector<1x32xf32> to vector<128x32xf32>
    %25 = arith.addf %22, %24 : vector<128x32xf32>
    %cst_20 = arith.constant 0.000000e+00 : f32
    %26 = vector.broadcast %cst_20 : f32 to vector<128x32xf32>
    %27 = arith.maximumf %25, %26 : vector<128x32xf32>
    %28 = arith.truncf %27 : vector<128x32xf32> to vector<128x32xbf16>
    %c0_21 = arith.constant 0 : index
    %c0_22 = arith.constant 0 : index
    %29 = vector.load %arg11[%c0_21, %c0_22] : memref<32x32xbf16, #tpu.memory_space<vmem>>, vector<32x32xbf16>
    %cst_23 = arith.constant dense<0.000000e+00> : vector<128x32xf32>
    %30 = tpu.matmul %28, %29, %cst_23 {dimension_numbers = #tpu.dot_dimension_numbers<[1], [0], [0], [1], [0, 0, 1, 1], [], []>} : vector<128x32xbf16>, vector<32x32xbf16>, vector<128x32xf32> -> vector<128x32xf32>
    %c0_24 = arith.constant 0 : index
    %c0_25 = arith.constant 0 : index
    %31 = vector.load %arg12[%c0_24, %c0_25] : memref<1x32xf32, #tpu.memory_space<vmem>>, vector<1x32xf32>
    %32 = vector.broadcast %31 : vector<1x32xf32> to vector<128x32xf32>
    %33 = arith.addf %30, %32 : vector<128x32xf32>
    %cst_26 = arith.constant 0.000000e+00 : f32
    %34 = vector.broadcast %cst_26 : f32 to vector<128x32xf32>
    %35 = arith.maximumf %33, %34 : vector<128x32xf32>
    %36 = arith.truncf %35 : vector<128x32xf32> to vector<128x32xbf16>
    %c0_27 = arith.constant 0 : index
    %c0_28 = arith.constant 0 : index
    %37 = vector.load %arg13[%c0_27, %c0_28] : memref<32x64xbf16, #tpu.memory_space<vmem>>, vector<32x64xbf16>
    %cst_29 = arith.constant dense<0.000000e+00> : vector<128x64xf32>
    %38 = tpu.matmul %36, %37, %cst_29 {dimension_numbers = #tpu.dot_dimension_numbers<[1], [0], [0], [1], [0, 0, 1, 1], [], []>} : vector<128x32xbf16>, vector<32x64xbf16>, vector<128x64xf32> -> vector<128x64xf32>
    %c0_30 = arith.constant 0 : index
    %c0_31 = arith.constant 0 : index
    %39 = vector.load %arg14[%c0_30, %c0_31] : memref<1x64xf32, #tpu.memory_space<vmem>>, vector<1x64xf32>
    %40 = vector.broadcast %39 : vector<1x64xf32> to vector<128x64xf32>
    %41 = arith.addf %38, %40 : vector<128x64xf32>
    %cst_32 = arith.constant 0.000000e+00 : f32
    %42 = vector.broadcast %cst_32 : f32 to vector<128x64xf32>
    %43 = arith.maximumf %41, %42 : vector<128x64xf32>
    %cst_33 = arith.constant dense<0.000000e+00> : vector<128xf32>
    %44 = vector.multi_reduction <add>, %19, %cst_33 [1] : vector<128x16xf32> to vector<128xf32>
    %45 = vector.shape_cast %44 : vector<128xf32> to vector<128x1xf32>
    %cst_34 = arith.constant 1.600000e+01 : f32
    %46 = vector.broadcast %cst_34 : f32 to vector<128x1xf32>
    %47 = arith.divf %45, %46 : vector<128x1xf32>
    %48 = math.absf %47 : vector<128x1xf32>
    %49 = vector.shape_cast %48 : vector<128x1xf32> to vector<1x128x1xf32>
    %cst_35 = arith.constant dense<0.000000e+00> : vector<1xf32>
    %50 = vector.multi_reduction <add>, %49, %cst_35 [1, 2] : vector<1x128x1xf32> to vector<1xf32>
    %51 = vector.shape_cast %50 : vector<1xf32> to vector<1x1x1xf32>
    %52 = vector.extract %51[0, 0, 0] : f32 from vector<1x1x1xf32>
    %53 = vector.broadcast %52 : f32 to vector<1x1xf32>
    %cst_36 = arith.constant 1.280000e+02 : f32
    %54 = vector.broadcast %cst_36 : f32 to vector<1x1xf32>
    %55 = arith.divf %53, %54 : vector<1x1xf32>
    %56 = vector.broadcast %55 : vector<1x1xf32> to vector<128x1xf32>
    %57 = arith.cmpf ogt, %48, %56 : vector<128x1xf32>
    %58 = arith.extui %57 : vector<128x1xi1> to vector<128x1xi32>
    %59 = arith.sitofp %58 : vector<128x1xi32> to vector<128x1xf32>
    %c0_37 = arith.constant 0 : index
    %c0_38 = arith.constant 0 : index
    %60 = vector.load %arg2[%c0_37, %c0_38] : memref<128x128xf32, #tpu.memory_space<vmem>>, vector<128x128xf32>
    %61 = vector.broadcast %59 : vector<128x1xf32> to vector<128x128xf32>
    %62 = arith.mulf %60, %61 : vector<128x128xf32>
    %c0_39 = arith.constant 0 : index
    %c0_40 = arith.constant 0 : index
    %63 = vector.load %arg3[%c0_39, %c0_40] : memref<8x128xf32, #tpu.memory_space<vmem>>, vector<8x128xf32>
    %cst_41 = arith.constant dense<0.000000e+00> : vector<8x128xf32>
    %64 = tpu.matmul %63, %62, %cst_41 {dimension_numbers = #tpu.dot_dimension_numbers<[1], [0], [0], [1], [0, 0, 1, 1], [], []>} : vector<8x128xf32>, vector<128x128xf32>, vector<8x128xf32> -> vector<8x128xf32>
    %65 = arith.negf %64 : vector<8x128xf32>
    %66 = math.exp %65 : vector<8x128xf32>
    %cst_42 = arith.constant 1.000000e+00 : f32
    %67 = vector.broadcast %cst_42 : f32 to vector<8x128xf32>
    %68 = arith.addf %67, %66 : vector<8x128xf32>
    %69 = arith.divf %67, %68 : vector<8x128xf32>
    %c0_43 = arith.constant 0 : index
    %c0_44 = arith.constant 0 : index
    %70 = vector.load %arg20[%c0_43, %c0_44] : memref<8x128xf32, #tpu.memory_space<vmem>>, vector<8x128xf32>
    tpu.vector_store %arg20[%c0_43, %c0_44], %69 {strides = array<i32>} : memref<8x128xf32, #tpu.memory_space<vmem>>, vector<8x128xf32>,
    %c0_45 = arith.constant 0 : index
    %c0_46 = arith.constant 0 : index
    %71 = vector.load %arg4[%c0_45, %c0_46] : memref<128x8xf32, #tpu.memory_space<vmem>>, vector<128x8xf32>
    %cst_47 = arith.constant dense<0.000000e+00> : vector<128x128xf32>
    %72 = tpu.matmul %71, %69, %cst_47 {dimension_numbers = #tpu.dot_dimension_numbers<[1], [0], [0], [1], [0, 0, 1, 1], [], []>} : vector<128x8xf32>, vector<8x128xf32>, vector<128x128xf32> -> vector<128x128xf32>
    %73 = arith.mulf %62, %72 : vector<128x128xf32>
    %cst_48 = arith.constant dense<0.000000e+00> : vector<128xf32>
    %74 = vector.multi_reduction <add>, %73, %cst_48 [1] : vector<128x128xf32> to vector<128xf32>
    %75 = vector.shape_cast %74 : vector<128xf32> to vector<128x1xf32>
    %cst_49 = arith.constant 1.000000e+00 : f32
    %76 = vector.broadcast %cst_49 : f32 to vector<128x1xf32>
    %77 = arith.addf %75, %76 : vector<128x1xf32>
    %c0_50 = arith.constant 0 : index
    %c0_51 = arith.constant 0 : index
    %78 = vector.load %arg15[%c0_50, %c0_51] : memref<192x256xbf16, #tpu.memory_space<vmem>>, vector<32x256xbf16>
    %c32 = arith.constant 32 : index
    %c0_52 = arith.constant 0 : index
    %79 = vector.load %arg15[%c32, %c0_52] : memref<192x256xbf16, #tpu.memory_space<vmem>>, vector<64x256xbf16>
    %c96 = arith.constant 96 : index
    %c0_53 = arith.constant 0 : index
    %80 = vector.load %arg15[%c96, %c0_53] : memref<192x256xbf16, #tpu.memory_space<vmem>>, vector<32x256xbf16>
    %c128 = arith.constant 128 : index
    %c0_54 = arith.constant 0 : index
    %81 = vector.load %arg15[%c128, %c0_54] : memref<192x256xbf16, #tpu.memory_space<vmem>>, vector<64x256xbf16>
    %82 = arith.truncf %35 : vector<128x32xf32> to vector<128x32xbf16>
    %cst_55 = arith.constant dense<0.000000e+00> : vector<128x256xf32>
    %83 = tpu.matmul %82, %78, %cst_55 {dimension_numbers = #tpu.dot_dimension_numbers<[1], [0], [0], [1], [0, 0, 1, 1], [], []>} : vector<128x32xbf16>, vector<32x256xbf16>, vector<128x256xf32> -> vector<128x256xf32>
    %84 = arith.truncf %43 : vector<128x64xf32> to vector<128x64xbf16>
    %cst_56 = arith.constant dense<0.000000e+00> : vector<128x256xf32>
    %85 = tpu.matmul %84, %79, %cst_56 {dimension_numbers = #tpu.dot_dimension_numbers<[1], [0], [0], [1], [0, 0, 1, 1], [], []>} : vector<128x64xbf16>, vector<64x256xbf16>, vector<128x256xf32> -> vector<128x256xf32>
    %86 = arith.addf %83, %85 : vector<128x256xf32>
    %87 = vector.broadcast %77 : vector<128x1xf32> to vector<128x32xf32>
    %88 = arith.mulf %35, %87 : vector<128x32xf32>
    %89 = arith.truncf %88 : vector<128x32xf32> to vector<128x32xbf16>
    %cst_57 = arith.constant dense<0.000000e+00> : vector<128x256xf32>
    %90 = tpu.matmul %89, %80, %cst_57 {dimension_numbers = #tpu.dot_dimension_numbers<[1], [0], [0], [1], [0, 0, 1, 1], [], []>} : vector<128x32xbf16>, vector<32x256xbf16>, vector<128x256xf32> -> vector<128x256xf32>
    %91 = arith.addf %86, %90 : vector<128x256xf32>
    %92 = vector.broadcast %77 : vector<128x1xf32> to vector<128x64xf32>
    %93 = arith.mulf %43, %92 : vector<128x64xf32>
    %94 = arith.truncf %93 : vector<128x64xf32> to vector<128x64xbf16>
    %cst_58 = arith.constant dense<0.000000e+00> : vector<128x256xf32>
    %95 = tpu.matmul %94, %81, %cst_58 {dimension_numbers = #tpu.dot_dimension_numbers<[1], [0], [0], [1], [0, 0, 1, 1], [], []>} : vector<128x64xbf16>, vector<64x256xbf16>, vector<128x256xf32> -> vector<128x256xf32>
    %96 = arith.addf %91, %95 : vector<128x256xf32>
    %c0_59 = arith.constant 0 : index
    %c0_60 = arith.constant 0 : index
    %97 = vector.load %arg16[%c0_59, %c0_60] : memref<1x256xf32, #tpu.memory_space<vmem>>, vector<1x256xf32>
    %98 = vector.broadcast %97 : vector<1x256xf32> to vector<128x256xf32>
    %99 = arith.addf %96, %98 : vector<128x256xf32>
    %100 = vector.extract_strided_slice %99 {offsets = [0, 0], sizes = [128, 128], strides = [1, 1]} : vector<128x256xf32> to vector<128x128xf32>
    %cst_61 = arith.constant 0.000000e+00 : f32
    %101 = vector.broadcast %cst_61 : f32 to vector<128x128xf32>
    %102 = arith.maximumf %100, %101 : vector<128x128xf32>
    %103 = vector.extract_strided_slice %99 {offsets = [0, 128], sizes = [128, 128], strides = [1, 1]} : vector<128x256xf32> to vector<128x128xf32>
    %104 = arith.truncf %102 : vector<128x128xf32> to vector<128x128xbf16>
    %c0_62 = arith.constant 0 : index
    %c0_63 = arith.constant 0 : index
    %105 = vector.load %arg17[%c0_62, %c0_63] : memref<128x128xbf16, #tpu.memory_space<vmem>>, vector<128x128xbf16>
    %cst_64 = arith.constant dense<0.000000e+00> : vector<128x128xf32>
    %106 = tpu.matmul %104, %105, %cst_64 {dimension_numbers = #tpu.dot_dimension_numbers<[1], [0], [0], [1], [0, 0, 1, 1], [], []>} : vector<128x128xbf16>, vector<128x128xbf16>, vector<128x128xf32> -> vector<128x128xf32>
    %c0_65 = arith.constant 0 : index
    %c0_66 = arith.constant 0 : index
    %107 = vector.load %arg18[%c0_65, %c0_66] : memref<1x128xf32, #tpu.memory_space<vmem>>, vector<1x128xf32>
    %108 = vector.broadcast %107 : vector<1x128xf32> to vector<128x128xf32>
    %109 = arith.addf %106, %108 : vector<128x128xf32>
    %110 = arith.addf %109, %103 : vector<128x128xf32>
    %cst_67 = arith.constant 0.000000e+00 : f32
    %111 = vector.broadcast %cst_67 : f32 to vector<128x128xf32>
    %112 = arith.maximumf %110, %111 : vector<128x128xf32>
    %cst_68 = arith.constant dense<0.000000e+00> : vector<8x128xf32>
    %113 = tpu.matmul %63, %112, %cst_68 {dimension_numbers = #tpu.dot_dimension_numbers<[1], [0], [0], [1], [0, 0, 1, 1], [], []>} : vector<8x128xf32>, vector<128x128xf32>, vector<8x128xf32> -> vector<8x128xf32>
    %c0_69 = arith.constant 0 : index
    %c0_70 = arith.constant 0 : index
    %114 = vector.load %arg19[%c0_69, %c0_70] : memref<8x128xf32, #tpu.memory_space<vmem>>, vector<8x128xf32>
    tpu.vector_store %arg19[%c0_69, %c0_70], %113 {strides = array<i32>} : memref<8x128xf32, #tpu.memory_space<vmem>>, vector<8x128xf32>,
    return
  }
}

</mosaic_0001>

<llo_original>
// kernel: forward.1
$region0: #{forward.1}
  #allocation0 [shape = 'u32[]', space=smem, size = 0x4, offset = 0x4, fixed_abs, tag = 'smem constant byte address 0x4 - core index']
  #allocation1 [shape = 'u32[144,128]{1,0:T(1,128)}', space=vmem, size = 0x12000, scoped, tag = 'internal scratch']
  %s0 = inlined_call_operand.vmem [shape: f32[512,3], index: 0, kind: input, shape index: {}]
  %s1 = inlined_call_operand.vmem [shape: bf16[128,512], index: 1, kind: input, shape index: {}]
  %s2 = inlined_call_operand.vmem [shape: f32[128,128], index: 2, kind: input, shape index: {}]
  %s3 = inlined_call_operand.vmem [shape: f32[8,128], index: 3, kind: input, shape index: {}]
  %s4 = inlined_call_operand.vmem [shape: f32[128,8], index: 4, kind: input, shape index: {}]
  %s5 = inlined_call_operand.vmem [shape: bf16[3,8], index: 5, kind: input, shape index: {}]
  %s6 = inlined_call_operand.vmem [shape: f32[1,8], index: 6, kind: input, shape index: {}]
  %s7 = inlined_call_operand.vmem [shape: bf16[8,16], index: 7, kind: input, shape index: {}]
  %s8 = inlined_call_operand.vmem [shape: f32[1,16], index: 8, kind: input, shape index: {}]
  %s9 = inlined_call_operand.vmem [shape: bf16[16,32], index: 9, kind: input, shape index: {}]
  %s10 = inlined_call_operand.vmem [shape: f32[1,32], index: 10, kind: input, shape index: {}]
  %s11 = inlined_call_operand.vmem [shape: bf16[32,32], index: 11, kind: input, shape index: {}]
  %s12 = inlined_call_operand.vmem [shape: f32[1,32], index: 12, kind: input, shape index: {}]
  %s13 = inlined_call_operand.vmem [shape: bf16[32,64], index: 13, kind: input, shape index: {}]
  %s14 = inlined_call_operand.vmem [shape: f32[1,64], index: 14, kind: input, shape index: {}]
  %s15 = inlined_call_operand.vmem [shape: bf16[192,256], index: 15, kind: input, shape index: {}]
  %s16 = inlined_call_operand.vmem [shape: f32[1,256], index: 16, kind: input, shape index: {}]
  %s17 = inlined_call_operand.vmem [shape: bf16[128,128], index: 17, kind: input, shape index: {}]
  %s18 = inlined_call_operand.vmem [shape: f32[1,128], index: 18, kind: input, shape index: {}]
  %s19 = inlined_call_operand.vmem [shape: f32[8,128], index: 19, kind: output, shape index: {0}]
  %s20 = inlined_call_operand.vmem [shape: f32[8,128], index: 20, kind: output, shape index: {1}]
  %21 = xla_tuple %s19, %s20
  %s22 = sld [smem:[#allocation0]]
  $region94: #{forward.1} parent=0
    _
  %s24 = ssub.s32 1, %s22
  %s25 = scalar_select 0, %s24, %s22
  // Predicated region
  $region2: #{forward.1} parent=0 // pred_check
    _
  $region3: #{forward.1} parent=0 // pred_check_branch
    %27 = sbr.rel (0) target = $region5
  $region4: #{forward.1} parent=0 // pred_region
    _
  $region5: #{forward.1} parent=0 // pred_fallthru
    _
  // Predicated region
  $region6: #{forward.1} parent=0 // pred_check
    _
  $region7: #{forward.1} parent=0 // pred_check_branch
    %29 = sbr.rel (0) target = $region9
  $region8: #{forward.1} parent=0 // pred_region
    _
  $region9: #{forward.1} parent=0 // pred_fallthru
    _
  // Predicated region
  $region10: #{forward.1} parent=0 // pred_check
    _
  $region11: #{forward.1} parent=0 // pred_check_branch
    %31 = sbr.rel (0) target = $region13
  $region12: #{forward.1} parent=0 // pred_region
    _
  $region13: #{forward.1} parent=0 // pred_fallthru
    _
  // Predicated region
  $region14: #{forward.1} parent=0 // pred_check
    _
  $region15: #{forward.1} parent=0 // pred_check_branch
    %33 = sbr.rel (0) target = $region17
  $region16: #{forward.1} parent=0 // pred_region
    _
  $region17: #{forward.1} parent=0 // pred_fallthru
    _
  // Predicated region
  $region18: #{forward.1} parent=0 // pred_check
    _
  $region19: #{forward.1} parent=0 // pred_check_branch
    %35 = sbr.rel (0) target = $region21
  $region20: #{forward.1} parent=0 // pred_region
    _
  $region21: #{forward.1} parent=0 // pred_fallthru
    _
  // Predicated region
  $region22: #{forward.1} parent=0 // pred_check
    _
  $region23: #{forward.1} parent=0 // pred_check_branch
    %37 = sbr.rel (0) target = $region25
  $region24: #{forward.1} parent=0 // pred_region
    _
  $region25: #{forward.1} parent=0 // pred_fallthru
    _
  // Predicated region
  $region26: #{forward.1} parent=0 // pred_check
    _
  $region27: #{forward.1} parent=0 // pred_check_branch
    %39 = sbr.rel (0) target = $region29
  $region28: #{forward.1} parent=0 // pred_region
    _
  $region29: #{forward.1} parent=0 // pred_fallthru
    _
  // Predicated region
  $region30: #{forward.1} parent=0 // pred_check
    _
  $region31: #{forward.1} parent=0 // pred_check_branch
    %41 = sbr.rel (0) target = $region33
  $region32: #{forward.1} parent=0 // pred_region
    _
  $region33: #{forward.1} parent=0 // pred_fallthru
    _
  // Predicated region
  $region34: #{forward.1} parent=0 // pred_check
    _
  $region35: #{forward.1} parent=0 // pred_check_branch
    %43 = sbr.rel (0) target = $region37
  $region36: #{forward.1} parent=0 // pred_region
    _
  $region37: #{forward.1} parent=0 // pred_fallthru
    _
  // Predicated region
  $region38: #{forward.1} parent=0 // pred_check
    _
  $region39: #{forward.1} parent=0 // pred_check_branch
    %45 = sbr.rel (0) target = $region41
  $region40: #{forward.1} parent=0 // pred_region
    _
  $region41: #{forward.1} parent=0 // pred_fallthru
    _
  // Predicated region
  $region42: #{forward.1} parent=0 // pred_check
    _
  $region43: #{forward.1} parent=0 // pred_check_branch
    %47 = sbr.rel (0) target = $region45
  $region44: #{forward.1} parent=0 // pred_region
    _
  $region45: #{forward.1} parent=0 // pred_fallthru
    _
  // Predicated region
  $region46: #{forward.1} parent=0 // pred_check
    _
  $region47: #{forward.1} parent=0 // pred_check_branch
    %49 = sbr.rel (0) target = $region49
  $region48: #{forward.1} parent=0 // pred_region
    _
  $region49: #{forward.1} parent=0 // pred_fallthru
    _
  // Predicated region
  $region50: #{forward.1} parent=0 // pred_check
    _
  $region51: #{forward.1} parent=0 // pred_check_branch
    %51 = sbr.rel (0) target = $region53
  $region52: #{forward.1} parent=0 // pred_region
    _
  $region53: #{forward.1} parent=0 // pred_fallthru
    _
  // Predicated region
  $region54: #{forward.1} parent=0 // pred_check
    _
  $region55: #{forward.1} parent=0 // pred_check_branch
    %53 = sbr.rel (0) target = $region57
  $region56: #{forward.1} parent=0 // pred_region
    _
  $region57: #{forward.1} parent=0 // pred_fallthru
    _
  // Predicated region
  $region58: #{forward.1} parent=0 // pred_check
    _
  $region59: #{forward.1} parent=0 // pred_check_branch
    %55 = sbr.rel (0) target = $region61
  $region60: #{forward.1} parent=0 // pred_region
    _
  $region61: #{forward.1} parent=0 // pred_fallthru
    _
  // Predicated region
  $region62: #{forward.1} parent=0 // pred_check
    _
  $region63: #{forward.1} parent=0 // pred_check_branch
    %57 = sbr.rel (0) target = $region65
  $region64: #{forward.1} parent=0 // pred_region
    _
  $region65: #{forward.1} parent=0 // pred_fallthru
    _
  // Predicated region
  $region66: #{forward.1} parent=0 // pred_check
    _
  $region67: #{forward.1} parent=0 // pred_check_branch
    %59 = sbr.rel (0) target = $region69
  $region68: #{forward.1} parent=0 // pred_region
    _
  $region69: #{forward.1} parent=0 // pred_fallthru
    _
  // Predicated region
  $region70: #{forward.1} parent=0 // pred_check
    _
  $region71: #{forward.1} parent=0 // pred_check_branch
    %61 = sbr.rel (0) target = $region73
  $region72: #{forward.1} parent=0 // pred_region
    _
  $region73: #{forward.1} parent=0 // pred_fallthru
    _
  // Predicated region
  $region74: #{forward.1} parent=0 // pred_check
    _
  $region75: #{forward.1} parent=0 // pred_check_branch
    %63 = sbr.rel (0) target = $region77
  $region76: #{forward.1} parent=0 // pred_region
    _
  $region77: #{forward.1} parent=0 // pred_fallthru
    _
  %v65 = vld [vmem:[%s0] sm:$0xff]
  %v66 = vld [vmem:[%s0 + $0x8] sm:$0xff]
  %v67 = vld [vmem:[%s0 + $0x10] sm:$0xff]
  %v68 = vld [vmem:[%s0 + $0x18] sm:$0xff]
  %v69 = vld [vmem:[%s0 + $0x20] sm:$0xff]
  %v70 = vld [vmem:[%s0 + $0x28] sm:$0xff]
  %v71 = vld [vmem:[%s0 + $0x30] sm:$0xff]
  %v72 = vld [vmem:[%s0 + $0x38] sm:$0xff]
  %v73 = vld [vmem:[%s0 + $0x40] sm:$0xff]
  %v74 = vld [vmem:[%s0 + $0x48] sm:$0xff]
  %v75 = vld [vmem:[%s0 + $0x50] sm:$0xff]
  %v76 = vld [vmem:[%s0 + $0x58] sm:$0xff]
  %v77 = vld [vmem:[%s0 + $0x60] sm:$0xff]
  %v78 = vld [vmem:[%s0 + $0x68] sm:$0xff]
  %v79 = vld [vmem:[%s0 + $0x70] sm:$0xff]
  %v80 = vld [vmem:[%s0 + $0x78] sm:$0xff]
  %v81 = vld [vmem:[%s0 + $0x80] sm:$0xff]
  %v82 = vld [vmem:[%s0 + $0x88] sm:$0xff]
  %v83 = vld [vmem:[%s0 + $0x90] sm:$0xff]
  %v84 = vld [vmem:[%s0 + $0x98] sm:$0xff]
  %v85 = vld [vmem:[%s0 + $0xa0] sm:$0xff]
  %v86 = vld [vmem:[%s0 + $0xa8] sm:$0xff]
  %v87 = vld [vmem:[%s0 + $0xb0] sm:$0xff]
  %v88 = vld [vmem:[%s0 + $0xb8] sm:$0xff]
  %v89 = vld [vmem:[%s0 + $0xc0] sm:$0xff]
  %v90 = vld [vmem:[%s0 + $0xc8] sm:$0xff]
  %v91 = vld [vmem:[%s0 + $0xd0] sm:$0xff]
  %v92 = vld [vmem:[%s0 + $0xd8] sm:$0xff]
  %v93 = vld [vmem:[%s0 + $0xe0] sm:$0xff]
  %v94 = vld [vmem:[%s0 + $0xe8] sm:$0xff]
  %v95 = vld [vmem:[%s0 + $0xf0] sm:$0xff]
  %v96 = vld [vmem:[%s0 + $0xf8] sm:$0xff]
  %v97 = vld [vmem:[%s0 + $0x100] sm:$0xff]
  %v98 = vld [vmem:[%s0 + $0x108] sm:$0xff]
  %v99 = vld [vmem:[%s0 + $0x110] sm:$0xff]
  %v100 = vld [vmem:[%s0 + $0x118] sm:$0xff]
  %v101 = vld [vmem:[%s0 + $0x120] sm:$0xff]
  %v102 = vld [vmem:[%s0 + $0x128] sm:$0xff]
  %v103 = vld [vmem:[%s0 + $0x130] sm:$0xff]
  %v104 = vld [vmem:[%s0 + $0x138] sm:$0xff]
  %v105 = vld [vmem:[%s0 + $0x140] sm:$0xff]
  %v106 = vld [vmem:[%s0 + $0x148] sm:$0xff]
  %v107 = vld [vmem:[%s0 + $0x150] sm:$0xff]
  %v108 = vld [vmem:[%s0 + $0x158] sm:$0xff]
  %v109 = vld [vmem:[%s0 + $0x160] sm:$0xff]
  %v110 = vld [vmem:[%s0 + $0x168] sm:$0xff]
  %v111 = vld [vmem:[%s0 + $0x170] sm:$0xff]
  %v112 = vld [vmem:[%s0 + $0x178] sm:$0xff]
  %v113 = vld [vmem:[%s0 + $0x180] sm:$0xff]
  %v114 = vld [vmem:[%s0 + $0x188] sm:$0xff]
  %v115 = vld [vmem:[%s0 + $0x190] sm:$0xff]
  %v116 = vld [vmem:[%s0 + $0x198] sm:$0xff]
  %v117 = vld [vmem:[%s0 + $0x1a0] sm:$0xff]
  %v118 = vld [vmem:[%s0 + $0x1a8] sm:$0xff]
  %v119 = vld [vmem:[%s0 + $0x1b0] sm:$0xff]
  %v120 = vld [vmem:[%s0 + $0x1b8] sm:$0xff]
  %v121 = vld [vmem:[%s0 + $0x1c0] sm:$0xff]
  %v122 = vld [vmem:[%s0 + $0x1c8] sm:$0xff]
  %v123 = vld [vmem:[%s0 + $0x1d0] sm:$0xff]
  %v124 = vld [vmem:[%s0 + $0x1d8] sm:$0xff]
  %v125 = vld [vmem:[%s0 + $0x1e0] sm:$0xff]
  %v126 = vld [vmem:[%s0 + $0x1e8] sm:$0xff]
  %v127 = vld [vmem:[%s0 + $0x1f0] sm:$0xff]
  %v128 = vld [vmem:[%s0 + $0x1f8] sm:$0xff]
  %v129 = vpack.c.bf16 %v66, %v65
  %v130 = vpack.c.bf16 %v68, %v67
  %v131 = vpack.c.bf16 %v70, %v69
  %v132 = vpack.c.bf16 %v72, %v71
  %v133 = vpack.c.bf16 %v74, %v73
  %v134 = vpack.c.bf16 %v76, %v75
  %v135 = vpack.c.bf16 %v78, %v77
  %v136 = vpack.c.bf16 %v80, %v79
  %v137 = vpack.c.bf16 %v82, %v81
  %v138 = vpack.c.bf16 %v84, %v83
  %v139 = vpack.c.bf16 %v86, %v85
  %v140 = vpack.c.bf16 %v88, %v87
  %v141 = vpack.c.bf16 %v90, %v89
  %v142 = vpack.c.bf16 %v92, %v91
  %v143 = vpack.c.bf16 %v94, %v93
  %v144 = vpack.c.bf16 %v96, %v95
  %v145 = vpack.c.bf16 %v98, %v97
  %v146 = vpack.c.bf16 %v100, %v99
  %v147 = vpack.c.bf16 %v102, %v101
  %v148 = vpack.c.bf16 %v104, %v103
  %v149 = vpack.c.bf16 %v106, %v105
  %v150 = vpack.c.bf16 %v108, %v107
  %v151 = vpack.c.bf16 %v110, %v109
  %v152 = vpack.c.bf16 %v112, %v111
  %v153 = vpack.c.bf16 %v114, %v113
  %v154 = vpack.c.bf16 %v116, %v115
  %v155 = vpack.c.bf16 %v118, %v117
  %v156 = vpack.c.bf16 %v120, %v119
  %v157 = vpack.c.bf16 %v122, %v121
  %v158 = vpack.c.bf16 %v124, %v123
  %v159 = vpack.c.bf16 %v126, %v125
  %v160 = vpack.c.bf16 %v128, %v127
  %v161 = vld [vmem:[%s5] sm:$0x3]
  %v162 = vld [vmem:[%s6] sm:$0x1]
  %v164 = vlaneseq
  %v165 = vshrl.u32 %v164, 7
  %v166 = vsub.s32 0, %v165
  %v167 = vrot.slane %v162, %v166
  %vm169 = vcmask 23552
  %v171 = vsel %vm169, %v129, 0
  %v174 = vsel %vm169, %v130, 0
  %v177 = vsel %vm169, %v131, 0
  %v180 = vsel %vm169, %v132, 0
  %v183 = vsel %vm169, %v133, 0
  %v186 = vsel %vm169, %v134, 0
  %v189 = vsel %vm169, %v135, 0
  %v192 = vsel %vm169, %v136, 0
  %v195 = vsel %vm169, %v137, 0
  %v198 = vsel %vm169, %v138, 0
  %v201 = vsel %vm169, %v139, 0
  %v204 = vsel %vm169, %v140, 0
  %v207 = vsel %vm169, %v141, 0
  %v210 = vsel %vm169, %v142, 0
  %v213 = vsel %vm169, %v143, 0
  %v216 = vsel %vm169, %v144, 0
  %v219 = vsel %vm169, %v145, 0
  %v222 = vsel %vm169, %v146, 0
  %v225 = vsel %vm169, %v147, 0
  %v228 = vsel %vm169, %v148, 0
  %v231 = vsel %vm169, %v149, 0
  %v234 = vsel %vm169, %v150, 0
  %v237 = vsel %vm169, %v151, 0
  %v240 = vsel %vm169, %v152, 0
  %v243 = vsel %vm169, %v153, 0
  %v246 = vsel %vm169, %v154, 0
  %v249 = vsel %vm169, %v155, 0
  %v252 = vsel %vm169, %v156, 0
  %v255 = vsel %vm169, %v157, 0
  %v258 = vsel %vm169, %v158, 0
  %v261 = vsel %vm169, %v159, 0
  %v264 = vsel %vm169, %v160, 0
  %vm266 = vcmask 1040384
  %vm267 = vcmask 1041408
  %v268 = vsel %vm266, 4294967295, 65535
  %v269 = vsel %vm267, %v268, 0
  %v271 = vand.u32 %v161, %v269
  %273 = vmatprep.subr.bf16.mxu0 0
  %274 = vmatpush1.bf16.msra.mxu0 %v271
  %275 = vmatprep.subr.bf16.mxu0 0
  %276 = vmatpush1.bf16.msra.mxu0 0
  %277 = vmatprep.subr.bf16.mxu0 0
  %278 = vmatpush1.bf16.msra.mxu0 0
  %279 = vmatprep.subr.bf16.mxu0 0
  %280 = vmatpush1.bf16.msra.mxu0 0
  %281 = vmatprep.subr.bf16.mxu0 0
  %282 = vmatpush1.bf16.msra.mxu0 0
  %283 = vmatprep.subr.bf16.mxu0 0
  %284 = vmatpush1.bf16.msra.mxu0 0
  %285 = vmatprep.subr.bf16.mxu0 0
  %286 = vmatpush1.bf16.msra.mxu0 0
  %287 = vmatprep.subr.bf16.mxu0 0
  %288 = vmatpush1.bf16.msra.mxu0 0
  %289 = vmatprep.subr.bf16.mxu0 0
  %290 = vmatpush1.bf16.msra.mxu0 0
  %291 = vmatprep.subr.bf16.mxu0 0
  %292 = vmatpush1.bf16.msra.mxu0 0
  %293 = vmatprep.subr.bf16.mxu0 0
  %294 = vmatpush1.bf16.msra.mxu0 0
  %295 = vmatprep.subr.bf16.mxu0 0
  %296 = vmatpush1.bf16.msra.mxu0 0
  %297 = vmatprep.subr.bf16.mxu0 0
  %298 = vmatpush1.bf16.msra.mxu0 0
  %299 = vmatprep.subr.bf16.mxu0 0
  %300 = vmatpush1.bf16.msra.mxu0 0
  %301 = vmatprep.subr.bf16.mxu0 0
  %302 = vmatpush1.bf16.msra.mxu0 0
  %303 = vmatprep.subr.bf16.mxu0 0
  %304 = vmatpush1.bf16.msra.mxu0 0
  %305 = vmatprep.mubr.bf16.mxu0 0
  %306 = vmatmul.mubr.bf16.gmra.mrb[0].mxu0 %v171
  %v307 = vpop.f32.mrb[0].mxu0
  %v308 = vadd.f32 %v167, %v307
  %v309 = vpop.f32.mrb[0].mxu0
  %v310 = vpop.f32.mrb[0].mxu0
  %v311 = vadd.f32 %v167, %v310
  %v312 = vpop.f32.mrb[0].mxu0
  %313 = vmatprep.mubr.bf16.mxu0 0
  %314 = vmatmul.mubr.bf16.gmra.mrb[0].mxu0 %v174
  %v315 = vpop.f32.mrb[0].mxu0
  %v316 = vadd.f32 %v167, %v315
  %v317 = vpop.f32.mrb[0].mxu0
  %v318 = vpop.f32.mrb[0].mxu0
  %v319 = vadd.f32 %v167, %v318
  %v320 = vpop.f32.mrb[0].mxu0
  %321 = vmatprep.mubr.bf16.mxu0 0
  %322 = vmatmul.mubr.bf16.gmra.mrb[0].mxu0 %v177
  %v323 = vpop.f32.mrb[0].mxu0
  %v324 = vadd.f32 %v167, %v323
  %v325 = vpop.f32.mrb[0].mxu0
  %v326 = vpop.f32.mrb[0].mxu0
  %v327 = vadd.f32 %v167, %v326
  %v328 = vpop.f32.mrb[0].mxu0
  %329 = vmatprep.mubr.bf16.mxu0 0
  %330 = vmatmul.mubr.bf16.gmra.mrb[0].mxu0 %v180
  %v331 = vpop.f32.mrb[0].mxu0
  %v332 = vadd.f32 %v167, %v331
  %v333 = vpop.f32.mrb[0].mxu0
  %v334 = vpop.f32.mrb[0].mxu0
  %v335 = vadd.f32 %v167, %v334
  %v336 = vpop.f32.mrb[0].mxu0
  %337 = vmatprep.mubr.bf16.mxu0 0
  %338 = vmatmul.mubr.bf16.gmra.mrb[0].mxu0 %v183
  %v339 = vpop.f32.mrb[0].mxu0
  %v340 = vadd.f32 %v167, %v339
  %v341 = vpop.f32.mrb[0].mxu0
  %v342 = vpop.f32.mrb[0].mxu0
  %v343 = vadd.f32 %v167, %v342
  %v344 = vpop.f32.mrb[0].mxu0
  %345 = vmatprep.mubr.bf16.mxu0 0
  %346 = vmatmul.mubr.bf16.gmra.mrb[0].mxu0 %v186
  %v347 = vpop.f32.mrb[0].mxu0
  %v348 = vadd.f32 %v167, %v347
  %v349 = vpop.f32.mrb[0].mxu0
  %v350 = vpop.f32.mrb[0].mxu0
  %v351 = vadd.f32 %v167, %v350
  %v352 = vpop.f32.mrb[0].mxu0
  %353 = vmatprep.mubr.bf16.mxu0 0
  %354 = vmatmul.mubr.bf16.gmra.mrb[0].mxu0 %v189
  %v355 = vpop.f32.mrb[0].mxu0
  %v356 = vadd.f32 %v167, %v355
  %v357 = vpop.f32.mrb[0].mxu0
  %v358 = vpop.f32.mrb[0].mxu0
  %v359 = vadd.f32 %v167, %v358
  %v360 = vpop.f32.mrb[0].mxu0
  %361 = vmatprep.mubr.bf16.mxu0 0
  %362 = vmatmul.mubr.bf16.gmra.mrb[0].mxu0 %v192
  %v363 = vpop.f32.mrb[0].mxu0
  %v364 = vadd.f32 %v167, %v363
  %v365 = vpop.f32.mrb[0].mxu0
  %v366 = vpop.f32.mrb[0].mxu0
  %v367 = vadd.f32 %v167, %v366
  %v368 = vpop.f32.mrb[0].mxu0
  %369 = vmatprep.mubr.bf16.mxu0 0
  %370 = vmatmul.mubr.bf16.gmra.mrb[0].mxu0 %v195
  %v371 = vpop.f32.mrb[0].mxu0
  %v372 = vadd.f32 %v167, %v371
  %v373 = vpop.f32.mrb[0].mxu0
  %v374 = vpop.f32.mrb[0].mxu0
  %v375 = vadd.f32 %v167, %v374
  %v376 = vpop.f32.mrb[0].mxu0
  %377 = vmatprep.mubr.bf16.mxu0 0
  %378 = vmatmul.mubr.bf16.gmra.mrb[0].mxu0 %v198
  %v379 = vpop.f32.mrb[0].mxu0
  %v380 = vadd.f32 %v167, %v379
  %v381 = vpop.f32.mrb[0].mxu0
  %v382 = vpop.f32.mrb[0].mxu0
  %v383 = vadd.f32 %v167, %v382
  %v384 = vpop.f32.mrb[0].mxu0
  %385 = vmatprep.mubr.bf16.mxu0 0
  %386 = vmatmul.mubr.bf16.gmra.mrb[0].mxu0 %v201
  %v387 = vpop.f32.mrb[0].mxu0
  %v388 = vadd.f32 %v167, %v387
  %v389 = vpop.f32.mrb[0].mxu0
  %v390 = vpop.f32.mrb[0].mxu0
  %v391 = vadd.f32 %v167, %v390
  %v392 = vpop.f32.mrb[0].mxu0
  %393 = vmatprep.mubr.bf16.mxu0 0
  %394 = vmatmul.mubr.bf16.gmra.mrb[0].mxu0 %v204
  %v395 = vpop.f32.mrb[0].mxu0
  %v396 = vadd.f32 %v167, %v395
  %v397 = vpop.f32.mrb[0].mxu0
  %v398 = vpop.f32.mrb[0].mxu0
  %v399 = vadd.f32 %v167, %v398
  %v400 = vpop.f32.mrb[0].mxu0
  %401 = vmatprep.mubr.bf16.mxu0 0
  %402 = vmatmul.mubr.bf16.gmra.mrb[0].mxu0 %v207
  %v403 = vpop.f32.mrb[0].mxu0
  %v404 = vadd.f32 %v167, %v403
  %v405 = vpop.f32.mrb[0].mxu0
  %v406 = vpop.f32.mrb[0].mxu0
  %v407 = vadd.f32 %v167, %v406
  %v408 = vpop.f32.mrb[0].mxu0
  %409 = vmatprep.mubr.bf16.mxu0 0
  %410 = vmatmul.mubr.bf16.gmra.mrb[0].mxu0 %v210
  %v411 = vpop.f32.mrb[0].mxu0
  %v412 = vadd.f32 %v167, %v411
  %v413 = vpop.f32.mrb[0].mxu0
  %v414 = vpop.f32.mrb[0].mxu0
  %v415 = vadd.f32 %v167, %v414
  %v416 = vpop.f32.mrb[0].mxu0
  %417 = vmatprep.mubr.bf16.mxu0 0
  %418 = vmatmul.mubr.bf16.gmra.mrb[0].mxu0 %v213
  %v419 = vpop.f32.mrb[0].mxu0
  %v420 = vadd.f32 %v167, %v419
  %v421 = vpop.f32.mrb[0].mxu0
  %v422 = vpop.f32.mrb[0].mxu0
  %v423 = vadd.f32 %v167, %v422
  %v424 = vpop.f32.mrb[0].mxu0
  %425 = vmatprep.mubr.bf16.mxu0 0
  %426 = vmatmul.mubr.bf16.gmra.mrb[0].mxu0 %v216
  %v427 = vpop.f32.mrb[0].mxu0
  %v428 = vadd.f32 %v167, %v427
  %v429 = vpop.f32.mrb[0].mxu0
  %v430 = vpop.f32.mrb[0].mxu0
  %v431 = vadd.f32 %v167, %v430
  %v432 = vpop.f32.mrb[0].mxu0
  %433 = vmatprep.mubr.bf16.mxu0 0
  %434 = vmatmul.mubr.bf16.gmra.mrb[0].mxu0 %v219
  %v435 = vpop.f32.mrb[0].mxu0
  %v436 = vadd.f32 %v167, %v435
  %v437 = vpop.f32.mrb[0].mxu0
  %v438 = vpop.f32.mrb[0].mxu0
  %v439 = vadd.f32 %v167, %v438
  %v440 = vpop.f32.mrb[0].mxu0
  %441 = vmatprep.mubr.bf16.mxu0 0
  %442 = vmatmul.mubr.bf16.gmra.mrb[0].mxu0 %v222
  %v443 = vpop.f32.mrb[0].mxu0
  %v444 = vadd.f32 %v167, %v443
  %v445 = vpop.f32.mrb[0].mxu0
  %v446 = vpop.f32.mrb[0].mxu0
  %v447 = vadd.f32 %v167, %v446
  %v448 = vpop.f32.mrb[0].mxu0
  %449 = vmatprep.mubr.bf16.mxu0 0
  %450 = vmatmul.mubr.bf16.gmra.mrb[0].mxu0 %v225
  %v451 = vpop.f32.mrb[0].mxu0
  %v452 = vadd.f32 %v167, %v451
  %v453 = vpop.f32.mrb[0].mxu0
  %v454 = vpop.f32.mrb[0].mxu0
  %v455 = vadd.f32 %v167, %v454
  %v456 = vpop.f32.mrb[0].mxu0
  %457 = vmatprep.mubr.bf16.mxu0 0
  %458 = vmatmul.mubr.bf16.gmra.mrb[0].mxu0 %v228
  %v459 = vpop.f32.mrb[0].mxu0
  %v460 = vadd.f32 %v167, %v459
  %v461 = vpop.f32.mrb[0].mxu0
  %v462 = vpop.f32.mrb[0].mxu0
  %v463 = vadd.f32 %v167, %v462
  %v464 = vpop.f32.mrb[0].mxu0
  %465 = vmatprep.mubr.bf16.mxu0 0
  %466 = vmatmul.mubr.bf16.gmra.mrb[0].mxu0 %v231
  %v467 = vpop.f32.mrb[0].mxu0
  %v468 = vadd.f32 %v167, %v467
  %v469 = vpop.f32.mrb[0].mxu0
  %v470 = vpop.f32.mrb[0].mxu0
  %v471 = vadd.f32 %v167, %v470
  %v472 = vpop.f32.mrb[0].mxu0
  %473 = vmatprep.mubr.bf16.mxu0 0
  %474 = vmatmul.mubr.bf16.gmra.mrb[0].mxu0 %v234
  %v475 = vpop.f32.mrb[0].mxu0
  %v476 = vadd.f32 %v167, %v475
  %v477 = vpop.f32.mrb[0].mxu0
  %v478 = vpop.f32.mrb[0].mxu0
  %v479 = vadd.f32 %v167, %v478
  %v480 = vpop.f32.mrb[0].mxu0
  %481 = vmatprep.mubr.bf16.mxu0 0
  %482 = vmatmul.mubr.bf16.gmra.mrb[0].mxu0 %v237
  %v483 = vpop.f32.mrb[0].mxu0
  %v484 = vadd.f32 %v167, %v483
  %v485 = vpop.f32.mrb[0].mxu0
  %v486 = vpop.f32.mrb[0].mxu0
  %v487 = vadd.f32 %v167, %v486
  %v488 = vpop.f32.mrb[0].mxu0
  %489 = vmatprep.mubr.bf16.mxu0 0
  %490 = vmatmul.mubr.bf16.gmra.mrb[0].mxu0 %v240
  %v491 = vpop.f32.mrb[0].mxu0
  %v492 = vadd.f32 %v167, %v491
  %v493 = vpop.f32.mrb[0].mxu0
  %v494 = vpop.f32.mrb[0].mxu0
  %v495 = vadd.f32 %v167, %v494
  %v496 = vpop.f32.mrb[0].mxu0
  %497 = vmatprep.mubr.bf16.mxu0 0
  %498 = vmatmul.mubr.bf16.gmra.mrb[0].mxu0 %v243
  %v499 = vpop.f32.mrb[0].mxu0
  %v500 = vadd.f32 %v167, %v499
  %v501 = vpop.f32.mrb[0].mxu0
  %v502 = vpop.f32.mrb[0].mxu0
  %v503 = vadd.f32 %v167, %v502
  %v504 = vpop.f32.mrb[0].mxu0
  %505 = vmatprep.mubr.bf16.mxu0 0
  %506 = vmatmul.mubr.bf16.gmra.mrb[0].mxu0 %v246
  %v507 = vpop.f32.mrb[0].mxu0
  %v508 = vadd.f32 %v167, %v507
  %v509 = vpop.f32.mrb[0].mxu0
  %v510 = vpop.f32.mrb[0].mxu0
  %v511 = vadd.f32 %v167, %v510
  %v512 = vpop.f32.mrb[0].mxu0
  %513 = vmatprep.mubr.bf16.mxu0 0
  %514 = vmatmul.mubr.bf16.gmra.mrb[0].mxu0 %v249
  %v515 = vpop.f32.mrb[0].mxu0
  %v516 = vadd.f32 %v167, %v515
  %v517 = vpop.f32.mrb[0].mxu0
  %v518 = vpop.f32.mrb[0].mxu0
  %v519 = vadd.f32 %v167, %v518
  %v520 = vpop.f32.mrb[0].mxu0
  %521 = vmatprep.mubr.bf16.mxu0 0
  %522 = vmatmul.mubr.bf16.gmra.mrb[0].mxu0 %v252
  %v523 = vpop.f32.mrb[0].mxu0
  %v524 = vadd.f32 %v167, %v523
  %v525 = vpop.f32.mrb[0].mxu0
  %v526 = vpop.f32.mrb[0].mxu0
  %v527 = vadd.f32 %v167, %v526
  %v528 = vpop.f32.mrb[0].mxu0
  %529 = vmatprep.mubr.bf16.mxu0 0
  %530 = vmatmul.mubr.bf16.gmra.mrb[0].mxu0 %v255
  %v531 = vpop.f32.mrb[0].mxu0
  %v532 = vadd.f32 %v167, %v531
  %v533 = vpop.f32.mrb[0].mxu0
  %v534 = vpop.f32.mrb[0].mxu0
  %v535 = vadd.f32 %v167, %v534
  %v536 = vpop.f32.mrb[0].mxu0
  %537 = vmatprep.mubr.bf16.mxu0 0
  %538 = vmatmul.mubr.bf16.gmra.mrb[0].mxu0 %v258
  %v539 = vpop.f32.mrb[0].mxu0
  %v540 = vadd.f32 %v167, %v539
  %v541 = vpop.f32.mrb[0].mxu0
  %v542 = vpop.f32.mrb[0].mxu0
  %v543 = vadd.f32 %v167, %v542
  %v544 = vpop.f32.mrb[0].mxu0
  %545 = vmatprep.mubr.bf16.mxu0 0
  %546 = vmatmul.mubr.bf16.gmra.mrb[0].mxu0 %v261
  %v547 = vpop.f32.mrb[0].mxu0
  %v548 = vadd.f32 %v167, %v547
  %v549 = vpop.f32.mrb[0].mxu0
  %v550 = vpop.f32.mrb[0].mxu0
  %v551 = vadd.f32 %v167, %v550
  %v552 = vpop.f32.mrb[0].mxu0
  %553 = vmatprep.mubr.bf16.mxu0 0
  %554 = vmatmul.mubr.bf16.gmra.mrb[0].mxu0 %v264
  %v555 = vpop.f32.mrb[0].mxu0
  %v556 = vadd.f32 %v167, %v555
  %v557 = vpop.f32.mrb[0].mxu0
  %v558 = vpop.f32.mrb[0].mxu0
  %v559 = vadd.f32 %v167, %v558
  %v560 = vpop.f32.mrb[0].mxu0
  %561 = vdwg.mxu0
  %v562 = vmax.f32 %v308, 0.0
  %v563 = vmax.f32 %v311, 0.0
  %v564 = vmax.f32 %v316, 0.0
  %v565 = vmax.f32 %v319, 0.0
  %v566 = vmax.f32 %v324, 0.0
  %v567 = vmax.f32 %v327, 0.0
  %v568 = vmax.f32 %v332, 0.0
  %v569 = vmax.f32 %v335, 0.0
  %v570 = vmax.f32 %v340, 0.0
  %v571 = vmax.f32 %v343, 0.0
  %v572 = vmax.f32 %v348, 0.0
  %v573 = vmax.f32 %v351, 0.0
  %v574 = vmax.f32 %v356, 0.0
  %v575 = vmax.f32 %v359, 0.0
  %v576 = vmax.f32 %v364, 0.0
  %v577 = vmax.f32 %v367, 0.0
  %v578 = vmax.f32 %v372, 0.0
  %v579 = vmax.f32 %v375, 0.0
  %v580 = vmax.f32 %v380, 0.0
  %v581 = vmax.f32 %v383, 0.0
  %v582 = vmax.f32 %v388, 0.0
  %v583 = vmax.f32 %v391, 0.0
  %v584 = vmax.f32 %v396, 0.0
  %v585 = vmax.f32 %v399, 0.0
  %v586 = vmax.f32 %v404, 0.0
  %v587 = vmax.f32 %v407, 0.0
  %v588 = vmax.f32 %v412, 0.0
  %v589 = vmax.f32 %v415, 0.0
  %v590 = vmax.f32 %v420, 0.0
  %v591 = vmax.f32 %v423, 0.0
  %v592 = vmax.f32 %v428, 0.0
  %v593 = vmax.f32 %v431, 0.0
  %v594 = vmax.f32 %v436, 0.0
  %v595 = vmax.f32 %v439, 0.0
  %v596 = vmax.f32 %v444, 0.0
  %v597 = vmax.f32 %v447, 0.0
  %v598 = vmax.f32 %v452, 0.0
  %v599 = vmax.f32 %v455, 0.0
  %v600 = vmax.f32 %v460, 0.0
  %v601 = vmax.f32 %v463, 0.0
  %v602 = vmax.f32 %v468, 0.0
  %v603 = vmax.f32 %v471, 0.0
  %v604 = vmax.f32 %v476, 0.0
  %v605 = vmax.f32 %v479, 0.0
  %v606 = vmax.f32 %v484, 0.0
  %v607 = vmax.f32 %v487, 0.0
  %v608 = vmax.f32 %v492, 0.0
  %v609 = vmax.f32 %v495, 0.0
  %v610 = vmax.f32 %v500, 0.0
  %v611 = vmax.f32 %v503, 0.0
  %v612 = vmax.f32 %v508, 0.0
  %v613 = vmax.f32 %v511, 0.0
  %v614 = vmax.f32 %v516, 0.0
  %v615 = vmax.f32 %v519, 0.0
  %v616 = vmax.f32 %v524, 0.0
  %v617 = vmax.f32 %v527, 0.0
  %v618 = vmax.f32 %v532, 0.0
  %v619 = vmax.f32 %v535, 0.0
  %v620 = vmax.f32 %v540, 0.0
  %v621 = vmax.f32 %v543, 0.0
  %v622 = vmax.f32 %v548, 0.0
  %v623 = vmax.f32 %v551, 0.0
  %v624 = vmax.f32 %v556, 0.0
  %v625 = vmax.f32 %v559, 0.0
  %v626 = vld [vmem:[%s1] sm:$0xff]
  %v627 = vld [vmem:[%s1 + $0x8] sm:$0xff]
  %v628 = vld [vmem:[%s1 + $0x10] sm:$0xff]
  %v629 = vld [vmem:[%s1 + $0x18] sm:$0xff]
  %v630 = vld [vmem:[%s1 + $0x20] sm:$0xff]
  %v631 = vld [vmem:[%s1 + $0x28] sm:$0xff]
  %v632 = vld [vmem:[%s1 + $0x30] sm:$0xff]
  %v633 = vld [vmem:[%s1 + $0x38] sm:$0xff]
  %v634 = vld [vmem:[%s1 + $0x40] sm:$0xff]
  %v635 = vld [vmem:[%s1 + $0x48] sm:$0xff]
  %v636 = vld [vmem:[%s1 + $0x50] sm:$0xff]
  %v637 = vld [vmem:[%s1 + $0x58] sm:$0xff]
  %v638 = vld [vmem:[%s1 + $0x60] sm:$0xff]
  %v639 = vld [vmem:[%s1 + $0x68] sm:$0xff]
  %v640 = vld [vmem:[%s1 + $0x70] sm:$0xff]
  %v641 = vld [vmem:[%s1 + $0x78] sm:$0xff]
  %v642 = vld [vmem:[%s1 + $0x80] sm:$0xff]
  %v643 = vld [vmem:[%s1 + $0x88] sm:$0xff]
  %v644 = vld [vmem:[%s1 + $0x90] sm:$0xff]
  %v645 = vld [vmem:[%s1 + $0x98] sm:$0xff]
  %v646 = vld [vmem:[%s1 + $0xa0] sm:$0xff]
  %v647 = vld [vmem:[%s1 + $0xa8] sm:$0xff]
  %v648 = vld [vmem:[%s1 + $0xb0] sm:$0xff]
  %v649 = vld [vmem:[%s1 + $0xb8] sm:$0xff]
  %v650 = vld [vmem:[%s1 + $0xc0] sm:$0xff]
  %v651 = vld [vmem:[%s1 + $0xc8] sm:$0xff]
  %v652 = vld [vmem:[%s1 + $0xd0] sm:$0xff]
  %v653 = vld [vmem:[%s1 + $0xd8] sm:$0xff]
  %v654 = vld [vmem:[%s1 + $0xe0] sm:$0xff]
  %v655 = vld [vmem:[%s1 + $0xe8] sm:$0xff]
  %v656 = vld [vmem:[%s1 + $0xf0] sm:$0xff]
  %v657 = vld [vmem:[%s1 + $0xf8] sm:$0xff]
  %v658 = vpack.c.bf16 %v563, %v562
  %v659 = vpack.c.bf16 %v565, %v564
  %v660 = vpack.c.bf16 %v567, %v566
  %v661 = vpack.c.bf16 %v569, %v568
  %v662 = vpack.c.bf16 %v571, %v570
  %v663 = vpack.c.bf16 %v573, %v572
  %v664 = vpack.c.bf16 %v575, %v574
  %v665 = vpack.c.bf16 %v577, %v576
  %v666 = vpack.c.bf16 %v579, %v578
  %v667 = vpack.c.bf16 %v581, %v580
  %v668 = vpack.c.bf16 %v583, %v582
  %v669 = vpack.c.bf16 %v585, %v584
  %v670 = vpack.c.bf16 %v587, %v586
  %v671 = vpack.c.bf16 %v589, %v588
  %v672 = vpack.c.bf16 %v591, %v590
  %v673 = vpack.c.bf16 %v593, %v592
  %v674 = vpack.c.bf16 %v595, %v594
  %v675 = vpack.c.bf16 %v597, %v596
  %v676 = vpack.c.bf16 %v599, %v598
  %v677 = vpack.c.bf16 %v601, %v600
  %v678 = vpack.c.bf16 %v603, %v602
  %v679 = vpack.c.bf16 %v605, %v604
  %v680 = vpack.c.bf16 %v607, %v606
  %v681 = vpack.c.bf16 %v609, %v608
  %v682 = vpack.c.bf16 %v611, %v610
  %v683 = vpack.c.bf16 %v613, %v612
  %v684 = vpack.c.bf16 %v615, %v614
  %v685 = vpack.c.bf16 %v617, %v616
  %v686 = vpack.c.bf16 %v619, %v618
  %v687 = vpack.c.bf16 %v621, %v620
  %v688 = vpack.c.bf16 %v623, %v622
  %v689 = vpack.c.bf16 %v625, %v624
  %v722 = vunpack.c.l.b16 %v626
  %v723 = vunpack.c.h.b16 %v626
  %v724 = vunpack.c.l.b16 %v627
  %v725 = vunpack.c.h.b16 %v627
  %v726 = vunpack.c.l.b16 %v628
  %v727 = vunpack.c.h.b16 %v628
  %v728 = vunpack.c.l.b16 %v629
  %v729 = vunpack.c.h.b16 %v629
  %v730 = vunpack.c.l.b16 %v630
  %v731 = vunpack.c.h.b16 %v630
  %v732 = vunpack.c.l.b16 %v631
  %v733 = vunpack.c.h.b16 %v631
  %v734 = vunpack.c.l.b16 %v632
  %v735 = vunpack.c.h.b16 %v632
  %v736 = vunpack.c.l.b16 %v633
  %v737 = vunpack.c.h.b16 %v633
  %v738 = vunpack.c.l.b16 %v634
  %v739 = vunpack.c.h.b16 %v634
  %v740 = vunpack.c.l.b16 %v635
  %v741 = vunpack.c.h.b16 %v635
  %v742 = vunpack.c.l.b16 %v636
  %v743 = vunpack.c.h.b16 %v636
  %v744 = vunpack.c.l.b16 %v637
  %v745 = vunpack.c.h.b16 %v637
  %v746 = vunpack.c.l.b16 %v638
  %v747 = vunpack.c.h.b16 %v638
  %v748 = vunpack.c.l.b16 %v639
  %v749 = vunpack.c.h.b16 %v639
  %v750 = vunpack.c.l.b16 %v640
  %v751 = vunpack.c.h.b16 %v640
  %v752 = vunpack.c.l.b16 %v641
  %v753 = vunpack.c.h.b16 %v641
  %v754 = vunpack.c.l.b16 %v642
  %v755 = vunpack.c.h.b16 %v642
  %v756 = vunpack.c.l.b16 %v643
  %v757 = vunpack.c.h.b16 %v643
  %v758 = vunpack.c.l.b16 %v644
  %v759 = vunpack.c.h.b16 %v644
  %v760 = vunpack.c.l.b16 %v645
  %v761 = vunpack.c.h.b16 %v645
  %v762 = vunpack.c.l.b16 %v646
  %v763 = vunpack.c.h.b16 %v646
  %v764 = vunpack.c.l.b16 %v647
  %v765 = vunpack.c.h.b16 %v647
  %v766 = vunpack.c.l.b16 %v648
  %v767 = vunpack.c.h.b16 %v648
  %v768 = vunpack.c.l.b16 %v649
  %v769 = vunpack.c.h.b16 %v649
  %v770 = vunpack.c.l.b16 %v650
  %v771 = vunpack.c.h.b16 %v650
  %v772 = vunpack.c.l.b16 %v651
  %v773 = vunpack.c.h.b16 %v651
  %v774 = vunpack.c.l.b16 %v652
  %v775 = vunpack.c.h.b16 %v652
  %v776 = vunpack.c.l.b16 %v653
  %v777 = vunpack.c.h.b16 %v653
  %v778 = vunpack.c.l.b16 %v654
  %v779 = vunpack.c.h.b16 %v654
  %v780 = vunpack.c.l.b16 %v655
  %v781 = vunpack.c.h.b16 %v655
  %v782 = vunpack.c.l.b16 %v656
  %v783 = vunpack.c.h.b16 %v656
  %v784 = vunpack.c.l.b16 %v657
  %v785 = vunpack.c.h.b16 %v657
  %v786 = vpack.c.b16 %v726, %v722
  %v787 = vpack.c.b16 %v727, %v723
  %v788 = vpack.c.b16 %v728, %v724
  %v789 = vpack.c.b16 %v729, %v725
  %v790 = vpack.c.b16 %v734, %v730
  %v791 = vpack.c.b16 %v735, %v731
  %v792 = vpack.c.b16 %v736, %v732
  %v793 = vpack.c.b16 %v737, %v733
  %v794 = vpack.c.b16 %v742, %v738
  %v795 = vpack.c.b16 %v743, %v739
  %v796 = vpack.c.b16 %v744, %v740
  %v797 = vpack.c.b16 %v745, %v741
  %v798 = vpack.c.b16 %v750, %v746
  %v799 = vpack.c.b16 %v751, %v747
  %v800 = vpack.c.b16 %v752, %v748
  %v801 = vpack.c.b16 %v753, %v749
  %v802 = vpack.c.b16 %v758, %v754
  %v803 = vpack.c.b16 %v759, %v755
  %v804 = vpack.c.b16 %v760, %v756
  %v805 = vpack.c.b16 %v761, %v757
  %v806 = vpack.c.b16 %v766, %v762
  %v807 = vpack.c.b16 %v767, %v763
  %v808 = vpack.c.b16 %v768, %v764
  %v809 = vpack.c.b16 %v769, %v765
  %v810 = vpack.c.b16 %v774, %v770
  %v811 = vpack.c.b16 %v775, %v771
  %v812 = vpack.c.b16 %v776, %v772
  %v813 = vpack.c.b16 %v777, %v773
  %v814 = vpack.c.b16 %v782, %v778
  %v815 = vpack.c.b16 %v783, %v779
  %v816 = vpack.c.b16 %v784, %v780
  %v817 = vpack.c.b16 %v785, %v781
  %850 = vmatprep.subr.bf16.mxu0 0
  %851 = vmatpush1.bf16.msra.mxu0 %v658
  %852 = vmatprep.subr.bf16.mxu0 0
  %853 = vmatpush1.bf16.msra.mxu0 %v659
  %854 = vmatprep.subr.bf16.mxu0 0
  %855 = vmatpush1.bf16.msra.mxu0 %v660
  %856 = vmatprep.subr.bf16.mxu0 0
  %857 = vmatpush1.bf16.msra.mxu0 %v661
  %858 = vmatprep.subr.bf16.mxu0 0
  %859 = vmatpush1.bf16.msra.mxu0 %v662
  %860 = vmatprep.subr.bf16.mxu0 0
  %861 = vmatpush1.bf16.msra.mxu0 %v663
  %862 = vmatprep.subr.bf16.mxu0 0
  %863 = vmatpush1.bf16.msra.mxu0 %v664
  %864 = vmatprep.subr.bf16.mxu0 0
  %865 = vmatpush1.bf16.msra.mxu0 %v665
  %866 = vmatprep.subr.bf16.mxu0 0
  %867 = vmatpush1.bf16.msra.mxu0 %v666
  %868 = vmatprep.subr.bf16.mxu0 0
  %869 = vmatpush1.bf16.msra.mxu0 %v667
  %870 = vmatprep.subr.bf16.mxu0 0
  %871 = vmatpush1.bf16.msra.mxu0 %v668
  %872 = vmatprep.subr.bf16.mxu0 0
  %873 = vmatpush1.bf16.msra.mxu0 %v669
  %874 = vmatprep.subr.bf16.mxu0 0
  %875 = vmatpush1.bf16.msra.mxu0 %v670
  %876 = vmatprep.subr.bf16.mxu0 0
  %877 = vmatpush1.bf16.msra.mxu0 %v671
  %878 = vmatprep.subr.bf16.mxu0 0
  %879 = vmatpush1.bf16.msra.mxu0 %v672
  %880 = vmatprep.subr.bf16.mxu0 0
  %881 = vmatpush1.bf16.msra.mxu0 %v673
  %882 = vmatprep.mubr.bf16.mxu0 %v787
  %883 = vmatmul.mubr.bf16.gmra.mrb[0].mxu0 %v786
  %v884 = vpop.f32.mrb[0].mxu0
  %v885 = vadd.f32 0.0, %v884
  %v886 = vpop.f32.mrb[0].mxu0
  %v887 = vpop.f32.mrb[0].mxu0
  %v888 = vadd.f32 0.0, %v887
  %v889 = vpop.f32.mrb[0].mxu0
  %890 = vmatprep.mubr.bf16.mxu0 %v791
  %891 = vmatmul.mubr.bf16.gmra.mrb[0].mxu0 %v790
  %v892 = vpop.f32.mrb[0].mxu0
  %v893 = vadd.f32 0.0, %v892
  %v894 = vpop.f32.mrb[0].mxu0
  %v895 = vpop.f32.mrb[0].mxu0
  %v896 = vadd.f32 0.0, %v895
  %v897 = vpop.f32.mrb[0].mxu0
  %898 = vmatprep.mubr.bf16.mxu0 %v795
  %899 = vmatmul.mubr.bf16.gmra.mrb[0].mxu0 %v794
  %v900 = vpop.f32.mrb[0].mxu0
  %v901 = vadd.f32 0.0, %v900
  %v902 = vpop.f32.mrb[0].mxu0
  %v903 = vpop.f32.mrb[0].mxu0
  %v904 = vadd.f32 0.0, %v903
  %v905 = vpop.f32.mrb[0].mxu0
  %906 = vmatprep.mubr.bf16.mxu0 %v799
  %907 = vmatmul.mubr.bf16.gmra.mrb[0].mxu0 %v798
  %v908 = vpop.f32.mrb[0].mxu0
  %v909 = vadd.f32 0.0, %v908
  %v910 = vpop.f32.mrb[0].mxu0
  %v911 = vpop.f32.mrb[0].mxu0
  %v912 = vadd.f32 0.0, %v911
  %v913 = vpop.f32.mrb[0].mxu0
  %914 = vmatprep.mubr.bf16.mxu0 %v803
  %915 = vmatmul.mubr.bf16.gmra.mrb[0].mxu0 %v802
  %v916 = vpop.f32.mrb[0].mxu0
  %v917 = vadd.f32 0.0, %v916
  %v918 = vpop.f32.mrb[0].mxu0
  %v919 = vpop.f32.mrb[0].mxu0
  %v920 = vadd.f32 0.0, %v919
  %v921 = vpop.f32.mrb[0].mxu0
  %922 = vmatprep.mubr.bf16.mxu0 %v807
  %923 = vmatmul.mubr.bf16.gmra.mrb[0].mxu0 %v806
  %v924 = vpop.f32.mrb[0].mxu0
  %v925 = vadd.f32 0.0, %v924
  %v926 = vpop.f32.mrb[0].mxu0
  %v927 = vpop.f32.mrb[0].mxu0
  %v928 = vadd.f32 0.0, %v927
  %v929 = vpop.f32.mrb[0].mxu0
  %930 = vmatprep.mubr.bf16.mxu0 %v811
  %931 = vmatmul.mubr.bf16.gmra.mrb[0].mxu0 %v810
  %v932 = vpop.f32.mrb[0].mxu0
  %v933 = vadd.f32 0.0, %v932
  %v934 = vpop.f32.mrb[0].mxu0
  %v935 = vpop.f32.mrb[0].mxu0
  %v936 = vadd.f32 0.0, %v935
  %v937 = vpop.f32.mrb[0].mxu0
  %938 = vmatprep.mubr.bf16.mxu0 %v815
  %939 = vmatmul.mubr.bf16.gmra.mrb[0].mxu0 %v814
  %v940 = vpop.f32.mrb[0].mxu0
  %v941 = vadd.f32 0.0, %v940
  %v942 = vpop.f32.mrb[0].mxu0
  %v943 = vpop.f32.mrb[0].mxu0
  %v944 = vadd.f32 0.0, %v943
  %v945 = vpop.f32.mrb[0].mxu0
  %946 = vdwg.mxu0
  %947 = vmatprep.subr.bf16.mxu0 0
  %948 = vmatpush1.bf16.msra.mxu0 %v674
  %949 = vmatprep.subr.bf16.mxu0 0
  %950 = vmatpush1.bf16.msra.mxu0 %v675
  %951 = vmatprep.subr.bf16.mxu0 0
  %952 = vmatpush1.bf16.msra.mxu0 %v676
  %953 = vmatprep.subr.bf16.mxu0 0
  %954 = vmatpush1.bf16.msra.mxu0 %v677
  %955 = vmatprep.subr.bf16.mxu0 0
  %956 = vmatpush1.bf16.msra.mxu0 %v678
  %957 = vmatprep.subr.bf16.mxu0 0
  %958 = vmatpush1.bf16.msra.mxu0 %v679
  %959 = vmatprep.subr.bf16.mxu0 0
  %960 = vmatpush1.bf16.msra.mxu0 %v680
  %961 = vmatprep.subr.bf16.mxu0 0
  %962 = vmatpush1.bf16.msra.mxu0 %v681
  %963 = vmatprep.subr.bf16.mxu0 0
  %964 = vmatpush1.bf16.msra.mxu0 %v682
  %965 = vmatprep.subr.bf16.mxu0 0
  %966 = vmatpush1.bf16.msra.mxu0 %v683
  %967 = vmatprep.subr.bf16.mxu0 0
  %968 = vmatpush1.bf16.msra.mxu0 %v684
  %969 = vmatprep.subr.bf16.mxu0 0
  %970 = vmatpush1.bf16.msra.mxu0 %v685
  %971 = vmatprep.subr.bf16.mxu0 0
  %972 = vmatpush1.bf16.msra.mxu0 %v686
  %973 = vmatprep.subr.bf16.mxu0 0
  %974 = vmatpush1.bf16.msra.mxu0 %v687
  %975 = vmatprep.subr.bf16.mxu0 0
  %976 = vmatpush1.bf16.msra.mxu0 %v688
  %977 = vmatprep.subr.bf16.mxu0 0
  %978 = vmatpush1.bf16.msra.mxu0 %v689
  %979 = vmatprep.mubr.bf16.mxu0 %v789
  %980 = vmatmul.mubr.bf16.gmra.mrb[0].mxu0 %v788
  %v981 = vpop.f32.mrb[0].mxu0
  %v982 = vadd.f32 %v885, %v981
  %v983 = vpop.f32.mrb[0].mxu0
  %v984 = vpop.f32.mrb[0].mxu0
  %v985 = vadd.f32 %v888, %v984
  %v986 = vpop.f32.mrb[0].mxu0
  %987 = vmatprep.mubr.bf16.mxu0 %v793
  %988 = vmatmul.mubr.bf16.gmra.mrb[0].mxu0 %v792
  %v989 = vpop.f32.mrb[0].mxu0
  %v990 = vadd.f32 %v893, %v989
  %v991 = vpop.f32.mrb[0].mxu0
  %v992 = vpop.f32.mrb[0].mxu0
  %v993 = vadd.f32 %v896, %v992
  %v994 = vpop.f32.mrb[0].mxu0
  %995 = vmatprep.mubr.bf16.mxu0 %v797
  %996 = vmatmul.mubr.bf16.gmra.mrb[0].mxu0 %v796
  %v997 = vpop.f32.mrb[0].mxu0
  %v998 = vadd.f32 %v901, %v997
  %v999 = vpop.f32.mrb[0].mxu0
  %v1000 = vpop.f32.mrb[0].mxu0
  %v1001 = vadd.f32 %v904, %v1000
  %v1002 = vpop.f32.mrb[0].mxu0
  %1003 = vmatprep.mubr.bf16.mxu0 %v801
  %1004 = vmatmul.mubr.bf16.gmra.mrb[0].mxu0 %v800
  %v1005 = vpop.f32.mrb[0].mxu0
  %v1006 = vadd.f32 %v909, %v1005
  %v1007 = vpop.f32.mrb[0].mxu0
  %v1008 = vpop.f32.mrb[0].mxu0
  %v1009 = vadd.f32 %v912, %v1008
  %v1010 = vpop.f32.mrb[0].mxu0
  %1011 = vmatprep.mubr.bf16.mxu0 %v805
  %1012 = vmatmul.mubr.bf16.gmra.mrb[0].mxu0 %v804
  %v1013 = vpop.f32.mrb[0].mxu0
  %v1014 = vadd.f32 %v917, %v1013
  %v1015 = vpop.f32.mrb[0].mxu0
  %v1016 = vpop.f32.mrb[0].mxu0
  %v1017 = vadd.f32 %v920, %v1016
  %v1018 = vpop.f32.mrb[0].mxu0
  %1019 = vmatprep.mubr.bf16.mxu0 %v809
  %1020 = vmatmul.mubr.bf16.gmra.mrb[0].mxu0 %v808
  %v1021 = vpop.f32.mrb[0].mxu0
  %v1022 = vadd.f32 %v925, %v1021
  %v1023 = vpop.f32.mrb[0].mxu0
  %v1024 = vpop.f32.mrb[0].mxu0
  %v1025 = vadd.f32 %v928, %v1024
  %v1026 = vpop.f32.mrb[0].mxu0
  %1027 = vmatprep.mubr.bf16.mxu0 %v813
  %1028 = vmatmul.mubr.bf16.gmra.mrb[0].mxu0 %v812
  %v1029 = vpop.f32.mrb[0].mxu0
  %v1030 = vadd.f32 %v933, %v1029
  %v1031 = vpop.f32.mrb[0].mxu0
  %v1032 = vpop.f32.mrb[0].mxu0
  %v1033 = vadd.f32 %v936, %v1032
  %v1034 = vpop.f32.mrb[0].mxu0
  %1035 = vmatprep.mubr.bf16.mxu0 %v817
  %1036 = vmatmul.mubr.bf16.gmra.mrb[0].mxu0 %v816
  %v1037 = vpop.f32.mrb[0].mxu0
  %v1038 = vadd.f32 %v941, %v1037
  %v1039 = vpop.f32.mrb[0].mxu0
  %v1040 = vpop.f32.mrb[0].mxu0
  %v1041 = vadd.f32 %v944, %v1040
  %v1042 = vpop.f32.mrb[0].mxu0
  %1043 = vdwg.mxu0
  %v1044 = vpack.c.bf16 %v985, %v982
  %v1045 = vpack.c.bf16 %v993, %v990
  %v1046 = vpack.c.bf16 %v1001, %v998
  %v1047 = vpack.c.bf16 %v1009, %v1006
  %v1048 = vpack.c.bf16 %v1017, %v1014
  %v1049 = vpack.c.bf16 %v1025, %v1022
  %v1050 = vpack.c.bf16 %v1033, %v1030
  %v1051 = vpack.c.bf16 %v1041, %v1038
  %v1052 = vld [vmem:[%s7] sm:$0xf]
  %v1053 = vld [vmem:[%s8] sm:$0x1]
  %v1055 = vlaneseq
  %v1056 = vshrl.u32 %v1055, 7
  %v1057 = vsub.s32 0, %v1056
  %v1058 = vrot.slane %v1053, %v1057
  %vm1060 = vcmask 64512
  %v1062 = vsel %vm1060, %v1044, 0
  %v1065 = vsel %vm1060, %v1045, 0
  %v1068 = vsel %vm1060, %v1046, 0
  %v1071 = vsel %vm1060, %v1047, 0
  %v1074 = vsel %vm1060, %v1048, 0
  %v1077 = vsel %vm1060, %v1049, 0
  %v1080 = vsel %vm1060, %v1050, 0
  %v1083 = vsel %vm1060, %v1051, 0
  %vm1085 = vcmask 1043456
  %v1087 = vsel %vm1085, %v1052, 0
  %1089 = vmatprep.subr.bf16.mxu0 0
  %1090 = vmatpush1.bf16.msra.mxu0 %v1087
  %1091 = vmatprep.subr.bf16.mxu0 0
  %1092 = vmatpush1.bf16.msra.mxu0 0
  %1093 = vmatprep.subr.bf16.mxu0 0
  %1094 = vmatpush1.bf16.msra.mxu0 0
  %1095 = vmatprep.subr.bf16.mxu0 0
  %1096 = vmatpush1.bf16.msra.mxu0 0
  %1097 = vmatprep.subr.bf16.mxu0 0
  %1098 = vmatpush1.bf16.msra.mxu0 0
  %1099 = vmatprep.subr.bf16.mxu0 0
  %1100 = vmatpush1.bf16.msra.mxu0 0
  %1101 = vmatprep.subr.bf16.mxu0 0
  %1102 = vmatpush1.bf16.msra.mxu0 0
  %1103 = vmatprep.subr.bf16.mxu0 0
  %1104 = vmatpush1.bf16.msra.mxu0 0
  %1105 = vmatprep.subr.bf16.mxu0 0
  %1106 = vmatpush1.bf16.msra.mxu0 0
  %1107 = vmatprep.subr.bf16.mxu0 0
  %1108 = vmatpush1.bf16.msra.mxu0 0
  %1109 = vmatprep.subr.bf16.mxu0 0
  %1110 = vmatpush1.bf16.msra.mxu0 0
  %1111 = vmatprep.subr.bf16.mxu0 0
  %1112 = vmatpush1.bf16.msra.mxu0 0
  %1113 = vmatprep.subr.bf16.mxu0 0
  %1114 = vmatpush1.bf16.msra.mxu0 0
  %1115 = vmatprep.subr.bf16.mxu0 0
  %1116 = vmatpush1.bf16.msra.mxu0 0
  %1117 = vmatprep.subr.bf16.mxu0 0
  %1118 = vmatpush1.bf16.msra.mxu0 0
  %1119 = vmatprep.subr.bf16.mxu0 0
  %1120 = vmatpush1.bf16.msra.mxu0 0
  %1121 = vmatprep.mubr.bf16.mxu0 0
  %1122 = vmatmul.mubr.bf16.gmra.mrb[0].mxu0 %v1062
  %v1123 = vpop.f32.mrb[0].mxu0
  %v1124 = vadd.f32 %v1058, %v1123
  %v1125 = vpop.f32.mrb[0].mxu0
  %v1126 = vpop.f32.mrb[0].mxu0
  %v1127 = vadd.f32 %v1058, %v1126
  %v1128 = vpop.f32.mrb[0].mxu0
  %1129 = vmatprep.mubr.bf16.mxu0 0
  %1130 = vmatmul.mubr.bf16.gmra.mrb[0].mxu0 %v1065
  %v1131 = vpop.f32.mrb[0].mxu0
  %v1132 = vadd.f32 %v1058, %v1131
  %v1133 = vpop.f32.mrb[0].mxu0
  %v1134 = vpop.f32.mrb[0].mxu0
  %v1135 = vadd.f32 %v1058, %v1134
  %v1136 = vpop.f32.mrb[0].mxu0
  %1137 = vmatprep.mubr.bf16.mxu0 0
  %1138 = vmatmul.mubr.bf16.gmra.mrb[0].mxu0 %v1068
  %v1139 = vpop.f32.mrb[0].mxu0
  %v1140 = vadd.f32 %v1058, %v1139
  %v1141 = vpop.f32.mrb[0].mxu0
  %v1142 = vpop.f32.mrb[0].mxu0
  %v1143 = vadd.f32 %v1058, %v1142
  %v1144 = vpop.f32.mrb[0].mxu0
  %1145 = vmatprep.mubr.bf16.mxu0 0
  %1146 = vmatmul.mubr.bf16.gmra.mrb[0].mxu0 %v1071
  %v1147 = vpop.f32.mrb[0].mxu0
  %v1148 = vadd.f32 %v1058, %v1147
  %v1149 = vpop.f32.mrb[0].mxu0
  %v1150 = vpop.f32.mrb[0].mxu0
  %v1151 = vadd.f32 %v1058, %v1150
  %v1152 = vpop.f32.mrb[0].mxu0
  %1153 = vmatprep.mubr.bf16.mxu0 0
  %1154 = vmatmul.mubr.bf16.gmra.mrb[0].mxu0 %v1074
  %v1155 = vpop.f32.mrb[0].mxu0
  %v1156 = vadd.f32 %v1058, %v1155
  %v1157 = vpop.f32.mrb[0].mxu0
  %v1158 = vpop.f32.mrb[0].mxu0
  %v1159 = vadd.f32 %v1058, %v1158
  %v1160 = vpop.f32.mrb[0].mxu0
  %1161 = vmatprep.mubr.bf16.mxu0 0
  %1162 = vmatmul.mubr.bf16.gmra.mrb[0].mxu0 %v1077
  %v1163 = vpop.f32.mrb[0].mxu0
  %v1164 = vadd.f32 %v1058, %v1163
  %v1165 = vpop.f32.mrb[0].mxu0
  %v1166 = vpop.f32.mrb[0].mxu0
  %v1167 = vadd.f32 %v1058, %v1166
  %v1168 = vpop.f32.mrb[0].mxu0
  %1169 = vmatprep.mubr.bf16.mxu0 0
  %1170 = vmatmul.mubr.bf16.gmra.mrb[0].mxu0 %v1080
  %v1171 = vpop.f32.mrb[0].mxu0
  %v1172 = vadd.f32 %v1058, %v1171
  %v1173 = vpop.f32.mrb[0].mxu0
  %v1174 = vpop.f32.mrb[0].mxu0
  %v1175 = vadd.f32 %v1058, %v1174
  %v1176 = vpop.f32.mrb[0].mxu0
  %1177 = vmatprep.mubr.bf16.mxu0 0
  %1178 = vmatmul.mubr.bf16.gmra.mrb[0].mxu0 %v1083
  %v1179 = vpop.f32.mrb[0].mxu0
  %v1180 = vadd.f32 %v1058, %v1179
  %v1181 = vpop.f32.mrb[0].mxu0
  %v1182 = vpop.f32.mrb[0].mxu0
  %v1183 = vadd.f32 %v1058, %v1182
  %v1184 = vpop.f32.mrb[0].mxu0
  %1185 = vdwg.mxu0
  %v1186 = vmax.f32 %v1124, 0.0
  %v1187 = vmax.f32 %v1127, 0.0
  %v1188 = vmax.f32 %v1132, 0.0
  %v1189 = vmax.f32 %v1135, 0.0
  %v1190 = vmax.f32 %v1140, 0.0
  %v1191 = vmax.f32 %v1143, 0.0
  %v1192 = vmax.f32 %v1148, 0.0
  %v1193 = vmax.f32 %v1151, 0.0
  %v1194 = vmax.f32 %v1156, 0.0
  %v1195 = vmax.f32 %v1159, 0.0
  %v1196 = vmax.f32 %v1164, 0.0
  %v1197 = vmax.f32 %v1167, 0.0
  %v1198 = vmax.f32 %v1172, 0.0
  %v1199 = vmax.f32 %v1175, 0.0
  %v1200 = vmax.f32 %v1180, 0.0
  %v1201 = vmax.f32 %v1183, 0.0
  %v1202 = vpack.c.bf16 %v1187, %v1186
  %v1203 = vpack.c.bf16 %v1189, %v1188
  %v1204 = vpack.c.bf16 %v1191, %v1190
  %v1205 = vpack.c.bf16 %v1193, %v1192
  %v1206 = vpack.c.bf16 %v1195, %v1194
  %v1207 = vpack.c.bf16 %v1197, %v1196
  %v1208 = vpack.c.bf16 %v1199, %v1198
  %v1209 = vpack.c.bf16 %v1201, %v1200
  %v1210 = vld [vmem:[%s9] sm:$0xf]
  %v1211 = vld [vmem:[%s9 + $0x4] sm:$0xf]
  %v1212 = vld [vmem:[%s10] sm:$0x1]
  %v1214 = vlaneseq
  %v1215 = vshrl.u32 %v1214, 7
  %v1216 = vsub.s32 0, %v1215
  %v1217 = vrot.slane %v1212, %v1216
  %v1221 = vunpack.c.l.b16 %v1210
  %v1222 = vunpack.c.l.b16 %v1211
  %v1223 = vpack.c.b16 %v1222, %v1221
  %vm1225 = vcmask 130048
  %v1227 = vsel %vm1225, %v1202, 0
  %v1230 = vsel %vm1225, %v1203, 0
  %v1233 = vsel %vm1225, %v1204, 0
  %v1236 = vsel %vm1225, %v1205, 0
  %v1239 = vsel %vm1225, %v1206, 0
  %v1242 = vsel %vm1225, %v1207, 0
  %v1245 = vsel %vm1225, %v1208, 0
  %v1248 = vsel %vm1225, %v1209, 0
  %1250 = vmatprep.subr.bf16.mxu0 0
  %1251 = vmatpush1.bf16.msra.mxu0 %v1223
  %1252 = vmatprep.subr.bf16.mxu0 0
  %1253 = vmatpush1.bf16.msra.mxu0 0
  %1254 = vmatprep.subr.bf16.mxu0 0
  %1255 = vmatpush1.bf16.msra.mxu0 0
  %1256 = vmatprep.subr.bf16.mxu0 0
  %1257 = vmatpush1.bf16.msra.mxu0 0
  %1258 = vmatprep.subr.bf16.mxu0 0
  %1259 = vmatpush1.bf16.msra.mxu0 0
  %1260 = vmatprep.subr.bf16.mxu0 0
  %1261 = vmatpush1.bf16.msra.mxu0 0
  %1262 = vmatprep.subr.bf16.mxu0 0
  %1263 = vmatpush1.bf16.msra.mxu0 0
  %1264 = vmatprep.subr.bf16.mxu0 0
  %1265 = vmatpush1.bf16.msra.mxu0 0
  %1266 = vmatprep.subr.bf16.mxu0 0
  %1267 = vmatpush1.bf16.msra.mxu0 0
  %1268 = vmatprep.subr.bf16.mxu0 0
  %1269 = vmatpush1.bf16.msra.mxu0 0
  %1270 = vmatprep.subr.bf16.mxu0 0
  %1271 = vmatpush1.bf16.msra.mxu0 0
  %1272 = vmatprep.subr.bf16.mxu0 0
  %1273 = vmatpush1.bf16.msra.mxu0 0
  %1274 = vmatprep.subr.bf16.mxu0 0
  %1275 = vmatpush1.bf16.msra.mxu0 0
  %1276 = vmatprep.subr.bf16.mxu0 0
  %1277 = vmatpush1.bf16.msra.mxu0 0
  %1278 = vmatprep.subr.bf16.mxu0 0
  %1279 = vmatpush1.bf16.msra.mxu0 0
  %1280 = vmatprep.subr.bf16.mxu0 0
  %1281 = vmatpush1.bf16.msra.mxu0 0
  %1282 = vmatprep.mubr.bf16.mxu0 0
  %1283 = vmatmul.mubr.bf16.gmra.mrb[0].mxu0 %v1227
  %v1284 = vpop.f32.mrb[0].mxu0
  %v1285 = vadd.f32 %v1217, %v1284
  %v1286 = vpop.f32.mrb[0].mxu0
  %v1287 = vpop.f32.mrb[0].mxu0
  %v1288 = vadd.f32 %v1217, %v1287
  %v1289 = vpop.f32.mrb[0].mxu0
  %1290 = vmatprep.mubr.bf16.mxu0 0
  %1291 = vmatmul.mubr.bf16.gmra.mrb[0].mxu0 %v1230
  %v1292 = vpop.f32.mrb[0].mxu0
  %v1293 = vadd.f32 %v1217, %v1292
  %v1294 = vpop.f32.mrb[0].mxu0
  %v1295 = vpop.f32.mrb[0].mxu0
  %v1296 = vadd.f32 %v1217, %v1295
  %v1297 = vpop.f32.mrb[0].mxu0
  %1298 = vmatprep.mubr.bf16.mxu0 0
  %1299 = vmatmul.mubr.bf16.gmra.mrb[0].mxu0 %v1233
  %v1300 = vpop.f32.mrb[0].mxu0
  %v1301 = vadd.f32 %v1217, %v1300
  %v1302 = vpop.f32.mrb[0].mxu0
  %v1303 = vpop.f32.mrb[0].mxu0
  %v1304 = vadd.f32 %v1217, %v1303
  %v1305 = vpop.f32.mrb[0].mxu0
  %1306 = vmatprep.mubr.bf16.mxu0 0
  %1307 = vmatmul.mubr.bf16.gmra.mrb[0].mxu0 %v1236
  %v1308 = vpop.f32.mrb[0].mxu0
  %v1309 = vadd.f32 %v1217, %v1308
  %v1310 = vpop.f32.mrb[0].mxu0
  %v1311 = vpop.f32.mrb[0].mxu0
  %v1312 = vadd.f32 %v1217, %v1311
  %v1313 = vpop.f32.mrb[0].mxu0
  %1314 = vmatprep.mubr.bf16.mxu0 0
  %1315 = vmatmul.mubr.bf16.gmra.mrb[0].mxu0 %v1239
  %v1316 = vpop.f32.mrb[0].mxu0
  %v1317 = vadd.f32 %v1217, %v1316
  %v1318 = vpop.f32.mrb[0].mxu0
  %v1319 = vpop.f32.mrb[0].mxu0
  %v1320 = vadd.f32 %v1217, %v1319
  %v1321 = vpop.f32.mrb[0].mxu0
  %1322 = vmatprep.mubr.bf16.mxu0 0
  %1323 = vmatmul.mubr.bf16.gmra.mrb[0].mxu0 %v1242
  %v1324 = vpop.f32.mrb[0].mxu0
  %v1325 = vadd.f32 %v1217, %v1324
  %v1326 = vpop.f32.mrb[0].mxu0
  %v1327 = vpop.f32.mrb[0].mxu0
  %v1328 = vadd.f32 %v1217, %v1327
  %v1329 = vpop.f32.mrb[0].mxu0
  %1330 = vmatprep.mubr.bf16.mxu0 0
  %1331 = vmatmul.mubr.bf16.gmra.mrb[0].mxu0 %v1245
  %v1332 = vpop.f32.mrb[0].mxu0
  %v1333 = vadd.f32 %v1217, %v1332
  %v1334 = vpop.f32.mrb[0].mxu0
  %v1335 = vpop.f32.mrb[0].mxu0
  %v1336 = vadd.f32 %v1217, %v1335
  %v1337 = vpop.f32.mrb[0].mxu0
  %1338 = vmatprep.mubr.bf16.mxu0 0
  %1339 = vmatmul.mubr.bf16.gmra.mrb[0].mxu0 %v1248
  %v1340 = vpop.f32.mrb[0].mxu0
  %v1341 = vadd.f32 %v1217, %v1340
  %v1342 = vpop.f32.mrb[0].mxu0
  %v1343 = vpop.f32.mrb[0].mxu0
  %v1344 = vadd.f32 %v1217, %v1343
  %v1345 = vpop.f32.mrb[0].mxu0
  %1346 = vdwg.mxu0
  %v1347 = vmax.f32 %v1285, 0.0
  %v1348 = vmax.f32 %v1288, 0.0
  %v1349 = vmax.f32 %v1293, 0.0
  %v1350 = vmax.f32 %v1296, 0.0
  %v1351 = vmax.f32 %v1301, 0.0
  %v1352 = vmax.f32 %v1304, 0.0
  %v1353 = vmax.f32 %v1309, 0.0
  %v1354 = vmax.f32 %v1312, 0.0
  %v1355 = vmax.f32 %v1317, 0.0
  %v1356 = vmax.f32 %v1320, 0.0
  %v1357 = vmax.f32 %v1325, 0.0
  %v1358 = vmax.f32 %v1328, 0.0
  %v1359 = vmax.f32 %v1333, 0.0
  %v1360 = vmax.f32 %v1336, 0.0
  %v1361 = vmax.f32 %v1341, 0.0
  %v1362 = vmax.f32 %v1344, 0.0
  %v1363 = vpack.c.bf16 %v1348, %v1347
  %v1364 = vpack.c.bf16 %v1350, %v1349
  %v1365 = vpack.c.bf16 %v1352, %v1351
  %v1366 = vpack.c.bf16 %v1354, %v1353
  %v1367 = vpack.c.bf16 %v1356, %v1355
  %v1368 = vpack.c.bf16 %v1358, %v1357
  %v1369 = vpack.c.bf16 %v1360, %v1359
  %v1370 = vpack.c.bf16 %v1362, %v1361
  %v1371 = vld [vmem:[%s11] sm:$0xf]
  %v1372 = vld [vmem:[%s11 + $0x4] sm:$0xf]
  %v1373 = vld [vmem:[%s11 + $0x8] sm:$0xf]
  %v1374 = vld [vmem:[%s11 + $0xc] sm:$0xf]
  %v1375 = vld [vmem:[%s12] sm:$0x1]
  %v1377 = vlaneseq
  %v1378 = vshrl.u32 %v1377, 7
  %v1379 = vsub.s32 0, %v1378
  %v1380 = vrot.slane %v1375, %v1379
  %v1386 = vunpack.c.l.b16 %v1371
  %v1387 = vunpack.c.l.b16 %v1372
  %v1388 = vunpack.c.l.b16 %v1373
  %v1389 = vunpack.c.l.b16 %v1374
  %v1390 = vpack.c.b16 %v1387, %v1386
  %v1391 = vpack.c.b16 %v1389, %v1388
  %vm1394 = vcmask 261120
  %v1396 = vsel %vm1394, %v1363, 0
  %v1399 = vsel %vm1394, %v1364, 0
  %v1402 = vsel %vm1394, %v1365, 0
  %v1405 = vsel %vm1394, %v1366, 0
  %v1408 = vsel %vm1394, %v1367, 0
  %v1411 = vsel %vm1394, %v1368, 0
  %v1414 = vsel %vm1394, %v1369, 0
  %v1417 = vsel %vm1394, %v1370, 0
  %1419 = vmatprep.subr.bf16.mxu0 0
  %1420 = vmatpush1.bf16.msra.mxu0 %v1390
  %1421 = vmatprep.subr.bf16.mxu0 0
  %1422 = vmatpush1.bf16.msra.mxu0 %v1391
  %1423 = vmatprep.subr.bf16.mxu0 0
  %1424 = vmatpush1.bf16.msra.mxu0 0
  %1425 = vmatprep.subr.bf16.mxu0 0
  %1426 = vmatpush1.bf16.msra.mxu0 0
  %1427 = vmatprep.subr.bf16.mxu0 0
  %1428 = vmatpush1.bf16.msra.mxu0 0
  %1429 = vmatprep.subr.bf16.mxu0 0
  %1430 = vmatpush1.bf16.msra.mxu0 0
  %1431 = vmatprep.subr.bf16.mxu0 0
  %1432 = vmatpush1.bf16.msra.mxu0 0
  %1433 = vmatprep.subr.bf16.mxu0 0
  %1434 = vmatpush1.bf16.msra.mxu0 0
  %1435 = vmatprep.subr.bf16.mxu0 0
  %1436 = vmatpush1.bf16.msra.mxu0 0
  %1437 = vmatprep.subr.bf16.mxu0 0
  %1438 = vmatpush1.bf16.msra.mxu0 0
  %1439 = vmatprep.subr.bf16.mxu0 0
  %1440 = vmatpush1.bf16.msra.mxu0 0
  %1441 = vmatprep.subr.bf16.mxu0 0
  %1442 = vmatpush1.bf16.msra.mxu0 0
  %1443 = vmatprep.subr.bf16.mxu0 0
  %1444 = vmatpush1.bf16.msra.mxu0 0
  %1445 = vmatprep.subr.bf16.mxu0 0
  %1446 = vmatpush1.bf16.msra.mxu0 0
  %1447 = vmatprep.subr.bf16.mxu0 0
  %1448 = vmatpush1.bf16.msra.mxu0 0
  %1449 = vmatprep.subr.bf16.mxu0 0
  %1450 = vmatpush1.bf16.msra.mxu0 0
  %1451 = vmatprep.mubr.bf16.mxu0 0
  %1452 = vmatmul.mubr.bf16.gmra.mrb[0].mxu0 %v1396
  %v1453 = vpop.f32.mrb[0].mxu0
  %v1454 = vadd.f32 %v1380, %v1453
  %v1455 = vpop.f32.mrb[0].mxu0
  %v1456 = vpop.f32.mrb[0].mxu0
  %v1457 = vadd.f32 %v1380, %v1456
  %v1458 = vpop.f32.mrb[0].mxu0
  %1459 = vmatprep.mubr.bf16.mxu0 0
  %1460 = vmatmul.mubr.bf16.gmra.mrb[0].mxu0 %v1399
  %v1461 = vpop.f32.mrb[0].mxu0
  %v1462 = vadd.f32 %v1380, %v1461
  %v1463 = vpop.f32.mrb[0].mxu0
  %v1464 = vpop.f32.mrb[0].mxu0
  %v1465 = vadd.f32 %v1380, %v1464
  %v1466 = vpop.f32.mrb[0].mxu0
  %1467 = vmatprep.mubr.bf16.mxu0 0
  %1468 = vmatmul.mubr.bf16.gmra.mrb[0].mxu0 %v1402
  %v1469 = vpop.f32.mrb[0].mxu0
  %v1470 = vadd.f32 %v1380, %v1469
  %v1471 = vpop.f32.mrb[0].mxu0
  %v1472 = vpop.f32.mrb[0].mxu0
  %v1473 = vadd.f32 %v1380, %v1472
  %v1474 = vpop.f32.mrb[0].mxu0
  %1475 = vmatprep.mubr.bf16.mxu0 0
  %1476 = vmatmul.mubr.bf16.gmra.mrb[0].mxu0 %v1405
  %v1477 = vpop.f32.mrb[0].mxu0
  %v1478 = vadd.f32 %v1380, %v1477
  %v1479 = vpop.f32.mrb[0].mxu0
  %v1480 = vpop.f32.mrb[0].mxu0
  %v1481 = vadd.f32 %v1380, %v1480
  %v1482 = vpop.f32.mrb[0].mxu0
  %1483 = vmatprep.mubr.bf16.mxu0 0
  %1484 = vmatmul.mubr.bf16.gmra.mrb[0].mxu0 %v1408
  %v1485 = vpop.f32.mrb[0].mxu0
  %v1486 = vadd.f32 %v1380, %v1485
  %v1487 = vpop.f32.mrb[0].mxu0
  %v1488 = vpop.f32.mrb[0].mxu0
  %v1489 = vadd.f32 %v1380, %v1488
  %v1490 = vpop.f32.mrb[0].mxu0
  %1491 = vmatprep.mubr.bf16.mxu0 0
  %1492 = vmatmul.mubr.bf16.gmra.mrb[0].mxu0 %v1411
  %v1493 = vpop.f32.mrb[0].mxu0
  %v1494 = vadd.f32 %v1380, %v1493
  %v1495 = vpop.f32.mrb[0].mxu0
  %v1496 = vpop.f32.mrb[0].mxu0
  %v1497 = vadd.f32 %v1380, %v1496
  %v1498 = vpop.f32.mrb[0].mxu0
  %1499 = vmatprep.mubr.bf16.mxu0 0
  %1500 = vmatmul.mubr.bf16.gmra.mrb[0].mxu0 %v1414
  %v1501 = vpop.f32.mrb[0].mxu0
  %v1502 = vadd.f32 %v1380, %v1501
  %v1503 = vpop.f32.mrb[0].mxu0
  %v1504 = vpop.f32.mrb[0].mxu0
  %v1505 = vadd.f32 %v1380, %v1504
  %v1506 = vpop.f32.mrb[0].mxu0
  %1507 = vmatprep.mubr.bf16.mxu0 0
  %1508 = vmatmul.mubr.bf16.gmra.mrb[0].mxu0 %v1417
  %v1509 = vpop.f32.mrb[0].mxu0
  %v1510 = vadd.f32 %v1380, %v1509
  %v1511 = vpop.f32.mrb[0].mxu0
  %v1512 = vpop.f32.mrb[0].mxu0
  %v1513 = vadd.f32 %v1380, %v1512
  %v1514 = vpop.f32.mrb[0].mxu0
  %1515 = vdwg.mxu0
  %v1516 = vmax.f32 %v1454, 0.0
  %v1517 = vmax.f32 %v1457, 0.0
  %v1518 = vmax.f32 %v1462, 0.0
  %v1519 = vmax.f32 %v1465, 0.0
  %v1520 = vmax.f32 %v1470, 0.0
  %v1521 = vmax.f32 %v1473, 0.0
  %v1522 = vmax.f32 %v1478, 0.0
  %v1523 = vmax.f32 %v1481, 0.0
  %v1524 = vmax.f32 %v1486, 0.0
  %v1525 = vmax.f32 %v1489, 0.0
  %v1526 = vmax.f32 %v1494, 0.0
  %v1527 = vmax.f32 %v1497, 0.0
  %v1528 = vmax.f32 %v1502, 0.0
  %v1529 = vmax.f32 %v1505, 0.0
  %v1530 = vmax.f32 %v1510, 0.0
  %v1531 = vmax.f32 %v1513, 0.0
  %v1532 = vpack.c.bf16 %v1517, %v1516
  %v1533 = vpack.c.bf16 %v1519, %v1518
  %v1534 = vpack.c.bf16 %v1521, %v1520
  %v1535 = vpack.c.bf16 %v1523, %v1522
  %v1536 = vpack.c.bf16 %v1525, %v1524
  %v1537 = vpack.c.bf16 %v1527, %v1526
  %v1538 = vpack.c.bf16 %v1529, %v1528
  %v1539 = vpack.c.bf16 %v1531, %v1530
  %v1540 = vld [vmem:[%s13] sm:$0xf]
  %v1541 = vld [vmem:[%s13 + $0x4] sm:$0xf]
  %v1542 = vld [vmem:[%s13 + $0x8] sm:$0xf]
  %v1543 = vld [vmem:[%s13 + $0xc] sm:$0xf]
  %v1544 = vld [vmem:[%s14] sm:$0x1]
  %v1546 = vlaneseq
  %v1547 = vshrl.u32 %v1546, 7
  %v1548 = vsub.s32 0, %v1547
  %v1549 = vrot.slane %v1544, %v1548
  %v1555 = vunpack.c.l.b16 %v1540
  %v1556 = vunpack.c.l.b16 %v1541
  %v1557 = vunpack.c.l.b16 %v1542
  %v1558 = vunpack.c.l.b16 %v1543
  %v1559 = vpack.c.b16 %v1556, %v1555
  %v1560 = vpack.c.b16 %v1558, %v1557
  %v1564 = vsel %vm1394, %v1532, 0
  %v1567 = vsel %vm1394, %v1533, 0
  %v1570 = vsel %vm1394, %v1534, 0
  %v1573 = vsel %vm1394, %v1535, 0
  %v1576 = vsel %vm1394, %v1536, 0
  %v1579 = vsel %vm1394, %v1537, 0
  %v1582 = vsel %vm1394, %v1538, 0
  %v1585 = vsel %vm1394, %v1539, 0
  %1587 = vmatprep.subr.bf16.mxu0 0
  %1588 = vmatpush1.bf16.msra.mxu0 %v1559
  %1589 = vmatprep.subr.bf16.mxu0 0
  %1590 = vmatpush1.bf16.msra.mxu0 %v1560
  %1591 = vmatprep.subr.bf16.mxu0 0
  %1592 = vmatpush1.bf16.msra.mxu0 0
  %1593 = vmatprep.subr.bf16.mxu0 0
  %1594 = vmatpush1.bf16.msra.mxu0 0
  %1595 = vmatprep.subr.bf16.mxu0 0
  %1596 = vmatpush1.bf16.msra.mxu0 0
  %1597 = vmatprep.subr.bf16.mxu0 0
  %1598 = vmatpush1.bf16.msra.mxu0 0
  %1599 = vmatprep.subr.bf16.mxu0 0
  %1600 = vmatpush1.bf16.msra.mxu0 0
  %1601 = vmatprep.subr.bf16.mxu0 0
  %1602 = vmatpush1.bf16.msra.mxu0 0
  %1603 = vmatprep.subr.bf16.mxu0 0
  %1604 = vmatpush1.bf16.msra.mxu0 0
  %1605 = vmatprep.subr.bf16.mxu0 0
  %1606 = vmatpush1.bf16.msra.mxu0 0
  %1607 = vmatprep.subr.bf16.mxu0 0
  %1608 = vmatpush1.bf16.msra.mxu0 0
  %1609 = vmatprep.subr.bf16.mxu0 0
  %1610 = vmatpush1.bf16.msra.mxu0 0
  %1611 = vmatprep.subr.bf16.mxu0 0
  %1612 = vmatpush1.bf16.msra.mxu0 0
  %1613 = vmatprep.subr.bf16.mxu0 0
  %1614 = vmatpush1.bf16.msra.mxu0 0
  %1615 = vmatprep.subr.bf16.mxu0 0
  %1616 = vmatpush1.bf16.msra.mxu0 0
  %1617 = vmatprep.subr.bf16.mxu0 0
  %1618 = vmatpush1.bf16.msra.mxu0 0
  %1619 = vmatprep.mubr.bf16.mxu0 0
  %1620 = vmatmul.mubr.bf16.gmra.mrb[0].mxu0 %v1564
  %v1621 = vpop.f32.mrb[0].mxu0
  %v1622 = vadd.f32 %v1549, %v1621
  %v1623 = vpop.f32.mrb[0].mxu0
  %v1624 = vpop.f32.mrb[0].mxu0
  %v1625 = vadd.f32 %v1549, %v1624
  %v1626 = vpop.f32.mrb[0].mxu0
  %1627 = vmatprep.mubr.bf16.mxu0 0
  %1628 = vmatmul.mubr.bf16.gmra.mrb[0].mxu0 %v1567
  %v1629 = vpop.f32.mrb[0].mxu0
  %v1630 = vadd.f32 %v1549, %v1629
  %v1631 = vpop.f32.mrb[0].mxu0
  %v1632 = vpop.f32.mrb[0].mxu0
  %v1633 = vadd.f32 %v1549, %v1632
  %v1634 = vpop.f32.mrb[0].mxu0
  %1635 = vmatprep.mubr.bf16.mxu0 0
  %1636 = vmatmul.mubr.bf16.gmra.mrb[0].mxu0 %v1570
  %v1637 = vpop.f32.mrb[0].mxu0
  %v1638 = vadd.f32 %v1549, %v1637
  %v1639 = vpop.f32.mrb[0].mxu0
  %v1640 = vpop.f32.mrb[0].mxu0
  %v1641 = vadd.f32 %v1549, %v1640
  %v1642 = vpop.f32.mrb[0].mxu0
  %1643 = vmatprep.mubr.bf16.mxu0 0
  %1644 = vmatmul.mubr.bf16.gmra.mrb[0].mxu0 %v1573
  %v1645 = vpop.f32.mrb[0].mxu0
  %v1646 = vadd.f32 %v1549, %v1645
  %v1647 = vpop.f32.mrb[0].mxu0
  %v1648 = vpop.f32.mrb[0].mxu0
  %v1649 = vadd.f32 %v1549, %v1648
  %v1650 = vpop.f32.mrb[0].mxu0
  %1651 = vmatprep.mubr.bf16.mxu0 0
  %1652 = vmatmul.mubr.bf16.gmra.mrb[0].mxu0 %v1576
  %v1653 = vpop.f32.mrb[0].mxu0
  %v1654 = vadd.f32 %v1549, %v1653
  %v1655 = vpop.f32.mrb[0].mxu0
  %v1656 = vpop.f32.mrb[0].mxu0
  %v1657 = vadd.f32 %v1549, %v1656
  %v1658 = vpop.f32.mrb[0].mxu0
  %1659 = vmatprep.mubr.bf16.mxu0 0
  %1660 = vmatmul.mubr.bf16.gmra.mrb[0].mxu0 %v1579
  %v1661 = vpop.f32.mrb[0].mxu0
  %v1662 = vadd.f32 %v1549, %v1661
  %v1663 = vpop.f32.mrb[0].mxu0
  %v1664 = vpop.f32.mrb[0].mxu0
  %v1665 = vadd.f32 %v1549, %v1664
  %v1666 = vpop.f32.mrb[0].mxu0
  %1667 = vmatprep.mubr.bf16.mxu0 0
  %1668 = vmatmul.mubr.bf16.gmra.mrb[0].mxu0 %v1582
  %v1669 = vpop.f32.mrb[0].mxu0
  %v1670 = vadd.f32 %v1549, %v1669
  %v1671 = vpop.f32.mrb[0].mxu0
  %v1672 = vpop.f32.mrb[0].mxu0
  %v1673 = vadd.f32 %v1549, %v1672
  %v1674 = vpop.f32.mrb[0].mxu0
  %1675 = vmatprep.mubr.bf16.mxu0 0
  %1676 = vmatmul.mubr.bf16.gmra.mrb[0].mxu0 %v1585
  %v1677 = vpop.f32.mrb[0].mxu0
  %v1678 = vadd.f32 %v1549, %v1677
  %v1679 = vpop.f32.mrb[0].mxu0
  %v1680 = vpop.f32.mrb[0].mxu0
  %v1681 = vadd.f32 %v1549, %v1680
  %v1682 = vpop.f32.mrb[0].mxu0
  %1683 = vdwg.mxu0
  %v1684 = vmax.f32 %v1622, 0.0
  %v1685 = vmax.f32 %v1625, 0.0
  %v1686 = vmax.f32 %v1630, 0.0
  %v1687 = vmax.f32 %v1633, 0.0
  %v1688 = vmax.f32 %v1638, 0.0
  %v1689 = vmax.f32 %v1641, 0.0
  %v1690 = vmax.f32 %v1646, 0.0
  %v1691 = vmax.f32 %v1649, 0.0
  %v1692 = vmax.f32 %v1654, 0.0
  %v1693 = vmax.f32 %v1657, 0.0
  %v1694 = vmax.f32 %v1662, 0.0
  %v1695 = vmax.f32 %v1665, 0.0
  %v1696 = vmax.f32 %v1670, 0.0
  %v1697 = vmax.f32 %v1673, 0.0
  %v1698 = vmax.f32 %v1678, 0.0
  %v1699 = vmax.f32 %v1681, 0.0
  %v1700 = vsel %vm1225, %v1186, 0.0
  %1701 = vadd.xlane.f32.xlu0 %v1700
  %v1702 = vpop.xlane.xlu0 %1701
  %v1703 = vsel %vm1225, %v1187, 0.0
  %1704 = vadd.xlane.f32.xlu0 %v1703
  %v1705 = vpop.xlane.xlu0 %1704
  %v1706 = vsel %vm1225, %v1188, 0.0
  %1707 = vadd.xlane.f32.xlu0 %v1706
  %v1708 = vpop.xlane.xlu0 %1707
  %v1709 = vsel %vm1225, %v1189, 0.0
  %1710 = vadd.xlane.f32.xlu0 %v1709
  %v1711 = vpop.xlane.xlu0 %1710
  %v1712 = vsel %vm1225, %v1190, 0.0
  %1713 = vadd.xlane.f32.xlu0 %v1712
  %v1714 = vpop.xlane.xlu0 %1713
  %v1715 = vsel %vm1225, %v1191, 0.0
  %1716 = vadd.xlane.f32.xlu0 %v1715
  %v1717 = vpop.xlane.xlu0 %1716
  %v1718 = vsel %vm1225, %v1192, 0.0
  %1719 = vadd.xlane.f32.xlu0 %v1718
  %v1720 = vpop.xlane.xlu0 %1719
  %v1721 = vsel %vm1225, %v1193, 0.0
  %1722 = vadd.xlane.f32.xlu0 %v1721
  %v1723 = vpop.xlane.xlu0 %1722
  %v1724 = vsel %vm1225, %v1194, 0.0
  %1725 = vadd.xlane.f32.xlu0 %v1724
  %v1726 = vpop.xlane.xlu0 %1725
  %v1727 = vsel %vm1225, %v1195, 0.0
  %1728 = vadd.xlane.f32.xlu0 %v1727
  %v1729 = vpop.xlane.xlu0 %1728
  %v1730 = vsel %vm1225, %v1196, 0.0
  %1731 = vadd.xlane.f32.xlu0 %v1730
  %v1732 = vpop.xlane.xlu0 %1731
  %v1733 = vsel %vm1225, %v1197, 0.0
  %1734 = vadd.xlane.f32.xlu0 %v1733
  %v1735 = vpop.xlane.xlu0 %1734
  %v1736 = vsel %vm1225, %v1198, 0.0
  %1737 = vadd.xlane.f32.xlu0 %v1736
  %v1738 = vpop.xlane.xlu0 %1737
  %v1739 = vsel %vm1225, %v1199, 0.0
  %1740 = vadd.xlane.f32.xlu0 %v1739
  %v1741 = vpop.xlane.xlu0 %1740
  %v1742 = vsel %vm1225, %v1200, 0.0
  %1743 = vadd.xlane.f32.xlu0 %v1742
  %v1744 = vpop.xlane.xlu0 %1743
  %v1745 = vsel %vm1225, %v1201, 0.0
  %1746 = vadd.xlane.f32.xlu0 %v1745
  %v1747 = vpop.xlane.xlu0 %1746
  %v1748 = vrcp.pop 16.0
  %v1749 = vmul.f32 %v1702, %v1748
  %v1750 = vmul.f32 %v1705, %v1748
  %v1751 = vmul.f32 %v1708, %v1748
  %v1752 = vmul.f32 %v1711, %v1748
  %v1753 = vmul.f32 %v1714, %v1748
  %v1754 = vmul.f32 %v1717, %v1748
  %v1755 = vmul.f32 %v1720, %v1748
  %v1756 = vmul.f32 %v1723, %v1748
  %v1757 = vmul.f32 %v1726, %v1748
  %v1758 = vmul.f32 %v1729, %v1748
  %v1759 = vmul.f32 %v1732, %v1748
  %v1760 = vmul.f32 %v1735, %v1748
  %v1761 = vmul.f32 %v1738, %v1748
  %v1762 = vmul.f32 %v1741, %v1748
  %v1763 = vmul.f32 %v1744, %v1748
  %v1764 = vmul.f32 %v1747, %v1748
  %v1765 = vand.u32 2147483647, %v1749
  %v1766 = vand.u32 2147483647, %v1750
  %v1767 = vand.u32 2147483647, %v1751
  %v1768 = vand.u32 2147483647, %v1752
  %v1769 = vand.u32 2147483647, %v1753
  %v1770 = vand.u32 2147483647, %v1754
  %v1771 = vand.u32 2147483647, %v1755
  %v1772 = vand.u32 2147483647, %v1756
  %v1773 = vand.u32 2147483647, %v1757
  %v1774 = vand.u32 2147483647, %v1758
  %v1775 = vand.u32 2147483647, %v1759
  %v1776 = vand.u32 2147483647, %v1760
  %v1777 = vand.u32 2147483647, %v1761
  %v1778 = vand.u32 2147483647, %v1762
  %v1779 = vand.u32 2147483647, %v1763
  %v1780 = vand.u32 2147483647, %v1764
  %vm1781 = vcmask 7168
  %v1782 = vsel %vm1781, %v1765, 0.0
  %v1783 = vsel %vm1781, %v1766, 0.0
  %v1784 = vadd.f32 %v1782, %v1783
  %v1785 = vsel %vm1781, %v1767, 0.0
  %v1786 = vadd.f32 %v1784, %v1785
  %v1787 = vsel %vm1781, %v1768, 0.0
  %v1788 = vadd.f32 %v1786, %v1787
  %v1789 = vsel %vm1781, %v1769, 0.0
  %v1790 = vadd.f32 %v1788, %v1789
  %v1791 = vsel %vm1781, %v1770, 0.0
  %v1792 = vadd.f32 %v1790, %v1791
  %v1793 = vsel %vm1781, %v1771, 0.0
  %v1794 = vadd.f32 %v1792, %v1793
  %v1795 = vsel %vm1781, %v1772, 0.0
  %v1796 = vadd.f32 %v1794, %v1795
  %v1797 = vsel %vm1781, %v1773, 0.0
  %v1798 = vadd.f32 %v1796, %v1797
  %v1799 = vsel %vm1781, %v1774, 0.0
  %v1800 = vadd.f32 %v1798, %v1799
  %v1801 = vsel %vm1781, %v1775, 0.0
  %v1802 = vadd.f32 %v1800, %v1801
  %v1803 = vsel %vm1781, %v1776, 0.0
  %v1804 = vadd.f32 %v1802, %v1803
  %v1805 = vsel %vm1781, %v1777, 0.0
  %v1806 = vadd.f32 %v1804, %v1805
  %v1807 = vsel %vm1781, %v1778, 0.0
  %v1808 = vadd.f32 %v1806, %v1807
  %v1809 = vsel %vm1781, %v1779, 0.0
  %v1810 = vadd.f32 %v1808, %v1809
  %v1811 = vsel %vm1781, %v1780, 0.0
  %v1812 = vadd.f32 %v1810, %v1811
  %1813 = vadd.xlane.f32.xlu0 %v1812
  %v1814 = vpop.xlane.xlu0 %1813
  %v1815 = vrot.slane %v1814, 4
  %v1816 = vadd.f32 %v1814, %v1815
  %v1817 = vrot.slane %v1816, 2
  %v1818 = vadd.f32 %v1816, %v1817
  %v1819 = vrot.slane %v1818, 1
  %v1820 = vadd.f32 %v1818, %v1819
  %s1821 = vtos %v1820
  %v1822 = vstv %s1821
  %v1823 = vrcp.pop 128.0
  %v1824 = vmul.f32 %v1822, %v1823
  %vm1825 = vcmp.gt.f32.partialorder %v1765, %v1824
  %vm1826 = vcmp.gt.f32.partialorder %v1766, %v1824
  %vm1827 = vcmp.gt.f32.partialorder %v1767, %v1824
  %vm1828 = vcmp.gt.f32.partialorder %v1768, %v1824
  %vm1829 = vcmp.gt.f32.partialorder %v1769, %v1824
  %vm1830 = vcmp.gt.f32.partialorder %v1770, %v1824
  %vm1831 = vcmp.gt.f32.partialorder %v1771, %v1824
  %vm1832 = vcmp.gt.f32.partialorder %v1772, %v1824
  %vm1833 = vcmp.gt.f32.partialorder %v1773, %v1824
  %vm1834 = vcmp.gt.f32.partialorder %v1774, %v1824
  %vm1835 = vcmp.gt.f32.partialorder %v1775, %v1824
  %vm1836 = vcmp.gt.f32.partialorder %v1776, %v1824
  %vm1837 = vcmp.gt.f32.partialorder %v1777, %v1824
  %vm1838 = vcmp.gt.f32.partialorder %v1778, %v1824
  %vm1839 = vcmp.gt.f32.partialorder %v1779, %v1824
  %vm1840 = vcmp.gt.f32.partialorder %v1780, %v1824
  %v1841 = vsel %vm1825, 1, 0
  %v1842 = vsel %vm1826, 1, 0
  %v1843 = vsel %vm1827, 1, 0
  %v1844 = vsel %vm1828, 1, 0
  %v1845 = vsel %vm1829, 1, 0
  %v1846 = vsel %vm1830, 1, 0
  %v1847 = vsel %vm1831, 1, 0
  %v1848 = vsel %vm1832, 1, 0
  %v1849 = vsel %vm1833, 1, 0
  %v1850 = vsel %vm1834, 1, 0
  %v1851 = vsel %vm1835, 1, 0
  %v1852 = vsel %vm1836, 1, 0
  %v1853 = vsel %vm1837, 1, 0
  %v1854 = vsel %vm1838, 1, 0
  %v1855 = vsel %vm1839, 1, 0
  %v1856 = vsel %vm1840, 1, 0
  %v1857 = vcvt.s32.f32 %v1841
  %v1858 = vcvt.s32.f32 %v1842
  %v1859 = vcvt.s32.f32 %v1843
  %v1860 = vcvt.s32.f32 %v1844
  %v1861 = vcvt.s32.f32 %v1845
  %v1862 = vcvt.s32.f32 %v1846
  %v1863 = vcvt.s32.f32 %v1847
  %v1864 = vcvt.s32.f32 %v1848
  %v1865 = vcvt.s32.f32 %v1849
  %v1866 = vcvt.s32.f32 %v1850
  %v1867 = vcvt.s32.f32 %v1851
  %v1868 = vcvt.s32.f32 %v1852
  %v1869 = vcvt.s32.f32 %v1853
  %v1870 = vcvt.s32.f32 %v1854
  %v1871 = vcvt.s32.f32 %v1855
  %v1872 = vcvt.s32.f32 %v1856
  %v1873 = vld [vmem:[%s2] sm:$0xff]
  %v1874 = vld [vmem:[%s2 + $0x8] sm:$0xff]
  %v1875 = vld [vmem:[%s2 + $0x10] sm:$0xff]
  %v1876 = vld [vmem:[%s2 + $0x18] sm:$0xff]
  %v1877 = vld [vmem:[%s2 + $0x20] sm:$0xff]
  %v1878 = vld [vmem:[%s2 + $0x28] sm:$0xff]
  %v1879 = vld [vmem:[%s2 + $0x30] sm:$0xff]
  %v1880 = vld [vmem:[%s2 + $0x38] sm:$0xff]
  %v1881 = vld [vmem:[%s2 + $0x40] sm:$0xff]
  %v1882 = vld [vmem:[%s2 + $0x48] sm:$0xff]
  %v1883 = vld [vmem:[%s2 + $0x50] sm:$0xff]
  %v1884 = vld [vmem:[%s2 + $0x58] sm:$0xff]
  %v1885 = vld [vmem:[%s2 + $0x60] sm:$0xff]
  %v1886 = vld [vmem:[%s2 + $0x68] sm:$0xff]
  %v1887 = vld [vmem:[%s2 + $0x70] sm:$0xff]
  %v1888 = vld [vmem:[%s2 + $0x78] sm:$0xff]
  %v1889 = vmul.f32 %v1873, %v1857
  %v1890 = vmul.f32 %v1874, %v1858
  %v1891 = vmul.f32 %v1875, %v1859
  %v1892 = vmul.f32 %v1876, %v1860
  %v1893 = vmul.f32 %v1877, %v1861
  %v1894 = vmul.f32 %v1878, %v1862
  %v1895 = vmul.f32 %v1879, %v1863
  %v1896 = vmul.f32 %v1880, %v1864
  %v1897 = vmul.f32 %v1881, %v1865
  %v1898 = vmul.f32 %v1882, %v1866
  %v1899 = vmul.f32 %v1883, %v1867
  %v1900 = vmul.f32 %v1884, %v1868
  %v1901 = vmul.f32 %v1885, %v1869
  %v1902 = vmul.f32 %v1886, %v1870
  %v1903 = vmul.f32 %v1887, %v1871
  %v1904 = vmul.f32 %v1888, %v1872
  %v1905 = vld [vmem:[%s3] sm:$0xff]
  %1906 = vmatprep.subr.mxu0 0.0
  %1907 = vmatpush1.msra.mxu0 %v1889
  %1908 = vmatprep.subr.mxu0 0.0
  %1909 = vmatpush1.msra.mxu0 %v1890
  %1910 = vmatprep.subr.mxu0 0.0
  %1911 = vmatpush1.msra.mxu0 %v1891
  %1912 = vmatprep.subr.mxu0 0.0
  %1913 = vmatpush1.msra.mxu0 %v1892
  %1914 = vmatprep.subr.mxu0 0.0
  %1915 = vmatpush1.msra.mxu0 %v1893
  %1916 = vmatprep.subr.mxu0 0.0
  %1917 = vmatpush1.msra.mxu0 %v1894
  %1918 = vmatprep.subr.mxu0 0.0
  %1919 = vmatpush1.msra.mxu0 %v1895
  %1920 = vmatprep.subr.mxu0 0.0
  %1921 = vmatpush1.msra.mxu0 %v1896
  %1922 = vmatprep.subr.mxu0 0.0
  %1923 = vmatpush1.msra.mxu0 %v1897
  %1924 = vmatprep.subr.mxu0 0.0
  %1925 = vmatpush1.msra.mxu0 %v1898
  %1926 = vmatprep.subr.mxu0 0.0
  %1927 = vmatpush1.msra.mxu0 %v1899
  %1928 = vmatprep.subr.mxu0 0.0
  %1929 = vmatpush1.msra.mxu0 %v1900
  %1930 = vmatprep.subr.mxu0 0.0
  %1931 = vmatpush1.msra.mxu0 %v1901
  %1932 = vmatprep.subr.mxu0 0.0
  %1933 = vmatpush1.msra.mxu0 %v1902
  %1934 = vmatprep.subr.mxu0 0.0
  %1935 = vmatpush1.msra.mxu0 %v1903
  %1936 = vmatprep.subr.mxu0 0.0
  %1937 = vmatpush1.msra.mxu0 %v1904
  %1938 = vmatprep.subr.mxu0 0.0
  %1939 = vmatpush1.msra.mxu0 0.0
  %1940 = vmatprep.subr.mxu0 0.0
  %1941 = vmatpush1.msra.mxu0 0.0
  %1942 = vmatprep.subr.mxu0 0.0
  %1943 = vmatpush1.msra.mxu0 0.0
  %1944 = vmatprep.subr.mxu0 0.0
  %1945 = vmatpush1.msra.mxu0 0.0
  %1946 = vmatprep.subr.mxu0 0.0
  %1947 = vmatpush1.msra.mxu0 0.0
  %1948 = vmatprep.subr.mxu0 0.0
  %1949 = vmatpush1.msra.mxu0 0.0
  %1950 = vmatprep.subr.mxu0 0.0
  %1951 = vmatpush1.msra.mxu0 0.0
  %1952 = vmatprep.subr.mxu0 0.0
  %1953 = vmatpush1.msra.mxu0 0.0
  %1954 = vmatprep.subr.mxu0 0.0
  %1955 = vmatpush1.msra.mxu0 0.0
  %1956 = vmatprep.subr.mxu0 0.0
  %1957 = vmatpush1.msra.mxu0 0.0
  %1958 = vmatprep.subr.mxu0 0.0
  %1959 = vmatpush1.msra.mxu0 0.0
  %1960 = vmatprep.subr.mxu0 0.0
  %1961 = vmatpush1.msra.mxu0 0.0
  %1962 = vmatprep.subr.mxu0 0.0
  %1963 = vmatpush1.msra.mxu0 0.0
  %1964 = vmatprep.subr.mxu0 0.0
  %1965 = vmatpush1.msra.mxu0 0.0
  %1966 = vmatprep.subr.mxu0 0.0
  %1967 = vmatpush1.msra.mxu0 0.0
  %1968 = vmatprep.subr.mxu0 0.0
  %1969 = vmatpush1.msra.mxu0 0.0
  %1970 = vmatprep.mubr.f32.mxu0 0.0
  %1971 = vmatmul.mubr.f32.gmra.mrb[0].mxu0 %v1905
  %v1972 = vpop.f32.mrb[0].mxu0
  %v1973 = vadd.f32 0.0, %v1972
  %v1974 = vpop.f32.mrb[0].mxu0
  %1975 = vdwg.mxu0
  %v1976 = vxor.u32 %v1973, 2147483648
  %v1977 = vmul.f32 %v1976, 1.442695
  %v1978 = vpow.pop %v1977
  %v1979 = vadd.f32 %v1978, 1.0
  %v1980 = vrcp.pop %v1979
  %v1981 = vmul.f32 1.0, %v1980
  %1982 = vst [vmem:[%s20] sm:$0xff] %v1981
  %v1983 = vld [vmem:[%s4] sm:$0xff]
  %v1984 = vld [vmem:[%s4 + $0x8] sm:$0xff]
  %v1985 = vld [vmem:[%s4 + $0x10] sm:$0xff]
  %v1986 = vld [vmem:[%s4 + $0x18] sm:$0xff]
  %v1987 = vld [vmem:[%s4 + $0x20] sm:$0xff]
  %v1988 = vld [vmem:[%s4 + $0x28] sm:$0xff]
  %v1989 = vld [vmem:[%s4 + $0x30] sm:$0xff]
  %v1990 = vld [vmem:[%s4 + $0x38] sm:$0xff]
  %v1991 = vld [vmem:[%s4 + $0x40] sm:$0xff]
  %v1992 = vld [vmem:[%s4 + $0x48] sm:$0xff]
  %v1993 = vld [vmem:[%s4 + $0x50] sm:$0xff]
  %v1994 = vld [vmem:[%s4 + $0x58] sm:$0xff]
  %v1995 = vld [vmem:[%s4 + $0x60] sm:$0xff]
  %v1996 = vld [vmem:[%s4 + $0x68] sm:$0xff]
  %v1997 = vld [vmem:[%s4 + $0x70] sm:$0xff]
  %v1998 = vld [vmem:[%s4 + $0x78] sm:$0xff]
  %v2000 = vsel %vm1060, %v1983, 0
  %v2003 = vsel %vm1060, %v1984, 0
  %v2006 = vsel %vm1060, %v1985, 0
  %v2009 = vsel %vm1060, %v1986, 0
  %v2012 = vsel %vm1060, %v1987, 0
  %v2015 = vsel %vm1060, %v1988, 0
  %v2018 = vsel %vm1060, %v1989, 0
  %v2021 = vsel %vm1060, %v1990, 0
  %v2024 = vsel %vm1060, %v1991, 0
  %v2027 = vsel %vm1060, %v1992, 0
  %v2030 = vsel %vm1060, %v1993, 0
  %v2033 = vsel %vm1060, %v1994, 0
  %v2036 = vsel %vm1060, %v1995, 0
  %v2039 = vsel %vm1060, %v1996, 0
  %v2042 = vsel %vm1060, %v1997, 0
  %v2045 = vsel %vm1060, %v1998, 0
  %2047 = vmatprep.subr.mxu0 0.0
  %2048 = vmatpush1.msra.mxu0 %v1981
  %2049 = vmatprep.subr.mxu0 0.0
  %2050 = vmatpush1.msra.mxu0 0.0
  %2051 = vmatprep.subr.mxu0 0.0
  %2052 = vmatpush1.msra.mxu0 0.0
  %2053 = vmatprep.subr.mxu0 0.0
  %2054 = vmatpush1.msra.mxu0 0.0
  %2055 = vmatprep.subr.mxu0 0.0
  %2056 = vmatpush1.msra.mxu0 0.0
  %2057 = vmatprep.subr.mxu0 0.0
  %2058 = vmatpush1.msra.mxu0 0.0
  %2059 = vmatprep.subr.mxu0 0.0
  %2060 = vmatpush1.msra.mxu0 0.0
  %2061 = vmatprep.subr.mxu0 0.0
  %2062 = vmatpush1.msra.mxu0 0.0
  %2063 = vmatprep.subr.mxu0 0.0
  %2064 = vmatpush1.msra.mxu0 0.0
  %2065 = vmatprep.subr.mxu0 0.0
  %2066 = vmatpush1.msra.mxu0 0.0
  %2067 = vmatprep.subr.mxu0 0.0
  %2068 = vmatpush1.msra.mxu0 0.0
  %2069 = vmatprep.subr.mxu0 0.0
  %2070 = vmatpush1.msra.mxu0 0.0
  %2071 = vmatprep.subr.mxu0 0.0
  %2072 = vmatpush1.msra.mxu0 0.0
  %2073 = vmatprep.subr.mxu0 0.0
  %2074 = vmatpush1.msra.mxu0 0.0
  %2075 = vmatprep.subr.mxu0 0.0
  %2076 = vmatpush1.msra.mxu0 0.0
  %2077 = vmatprep.subr.mxu0 0.0
  %2078 = vmatpush1.msra.mxu0 0.0
  %2079 = vmatprep.subr.mxu0 0.0
  %2080 = vmatpush1.msra.mxu0 0.0
  %2081 = vmatprep.subr.mxu0 0.0
  %2082 = vmatpush1.msra.mxu0 0.0
  %2083 = vmatprep.subr.mxu0 0.0
  %2084 = vmatpush1.msra.mxu0 0.0
  %2085 = vmatprep.subr.mxu0 0.0
  %2086 = vmatpush1.msra.mxu0 0.0
  %2087 = vmatprep.subr.mxu0 0.0
  %2088 = vmatpush1.msra.mxu0 0.0
  %2089 = vmatprep.subr.mxu0 0.0
  %2090 = vmatpush1.msra.mxu0 0.0
  %2091 = vmatprep.subr.mxu0 0.0
  %2092 = vmatpush1.msra.mxu0 0.0
  %2093 = vmatprep.subr.mxu0 0.0
  %2094 = vmatpush1.msra.mxu0 0.0
  %2095 = vmatprep.subr.mxu0 0.0
  %2096 = vmatpush1.msra.mxu0 0.0
  %2097 = vmatprep.subr.mxu0 0.0
  %2098 = vmatpush1.msra.mxu0 0.0
  %2099 = vmatprep.subr.mxu0 0.0
  %2100 = vmatpush1.msra.mxu0 0.0
  %2101 = vmatprep.subr.mxu0 0.0
  %2102 = vmatpush1.msra.mxu0 0.0
  %2103 = vmatprep.subr.mxu0 0.0
  %2104 = vmatpush1.msra.mxu0 0.0
  %2105 = vmatprep.subr.mxu0 0.0
  %2106 = vmatpush1.msra.mxu0 0.0
  %2107 = vmatprep.subr.mxu0 0.0
  %2108 = vmatpush1.msra.mxu0 0.0
  %2109 = vmatprep.subr.mxu0 0.0
  %2110 = vmatpush1.msra.mxu0 0.0
  %2111 = vmatprep.mubr.f32.mxu0 0.0
  %2112 = vmatmul.mubr.f32.gmra.mrb[0].mxu0 %v2000
  %v2113 = vpop.f32.mrb[0].mxu0
  %v2114 = vadd.f32 0.0, %v2113
  %v2115 = vpop.f32.mrb[0].mxu0
  %2116 = vmatprep.mubr.f32.mxu0 0.0
  %2117 = vmatmul.mubr.f32.gmra.mrb[0].mxu0 %v2003
  %v2118 = vpop.f32.mrb[0].mxu0
  %v2119 = vadd.f32 0.0, %v2118
  %v2120 = vpop.f32.mrb[0].mxu0
  %2121 = vmatprep.mubr.f32.mxu0 0.0
  %2122 = vmatmul.mubr.f32.gmra.mrb[0].mxu0 %v2006
  %v2123 = vpop.f32.mrb[0].mxu0
  %v2124 = vadd.f32 0.0, %v2123
  %v2125 = vpop.f32.mrb[0].mxu0
  %2126 = vmatprep.mubr.f32.mxu0 0.0
  %2127 = vmatmul.mubr.f32.gmra.mrb[0].mxu0 %v2009
  %v2128 = vpop.f32.mrb[0].mxu0
  %v2129 = vadd.f32 0.0, %v2128
  %v2130 = vpop.f32.mrb[0].mxu0
  %2131 = vmatprep.mubr.f32.mxu0 0.0
  %2132 = vmatmul.mubr.f32.gmra.mrb[0].mxu0 %v2012
  %v2133 = vpop.f32.mrb[0].mxu0
  %v2134 = vadd.f32 0.0, %v2133
  %v2135 = vpop.f32.mrb[0].mxu0
  %2136 = vmatprep.mubr.f32.mxu0 0.0
  %2137 = vmatmul.mubr.f32.gmra.mrb[0].mxu0 %v2015
  %v2138 = vpop.f32.mrb[0].mxu0
  %v2139 = vadd.f32 0.0, %v2138
  %v2140 = vpop.f32.mrb[0].mxu0
  %2141 = vmatprep.mubr.f32.mxu0 0.0
  %2142 = vmatmul.mubr.f32.gmra.mrb[0].mxu0 %v2018
  %v2143 = vpop.f32.mrb[0].mxu0
  %v2144 = vadd.f32 0.0, %v2143
  %v2145 = vpop.f32.mrb[0].mxu0
  %2146 = vmatprep.mubr.f32.mxu0 0.0
  %2147 = vmatmul.mubr.f32.gmra.mrb[0].mxu0 %v2021
  %v2148 = vpop.f32.mrb[0].mxu0
  %v2149 = vadd.f32 0.0, %v2148
  %v2150 = vpop.f32.mrb[0].mxu0
  %2151 = vmatprep.mubr.f32.mxu0 0.0
  %2152 = vmatmul.mubr.f32.gmra.mrb[0].mxu0 %v2024
  %v2153 = vpop.f32.mrb[0].mxu0
  %v2154 = vadd.f32 0.0, %v2153
  %v2155 = vpop.f32.mrb[0].mxu0
  %2156 = vmatprep.mubr.f32.mxu0 0.0
  %2157 = vmatmul.mubr.f32.gmra.mrb[0].mxu0 %v2027
  %v2158 = vpop.f32.mrb[0].mxu0
  %v2159 = vadd.f32 0.0, %v2158
  %v2160 = vpop.f32.mrb[0].mxu0
  %2161 = vmatprep.mubr.f32.mxu0 0.0
  %2162 = vmatmul.mubr.f32.gmra.mrb[0].mxu0 %v2030
  %v2163 = vpop.f32.mrb[0].mxu0
  %v2164 = vadd.f32 0.0, %v2163
  %v2165 = vpop.f32.mrb[0].mxu0
  %2166 = vmatprep.mubr.f32.mxu0 0.0
  %2167 = vmatmul.mubr.f32.gmra.mrb[0].mxu0 %v2033
  %v2168 = vpop.f32.mrb[0].mxu0
  %v2169 = vadd.f32 0.0, %v2168
  %v2170 = vpop.f32.mrb[0].mxu0
  %2171 = vmatprep.mubr.f32.mxu0 0.0
  %2172 = vmatmul.mubr.f32.gmra.mrb[0].mxu0 %v2036
  %v2173 = vpop.f32.mrb[0].mxu0
  %v2174 = vadd.f32 0.0, %v2173
  %v2175 = vpop.f32.mrb[0].mxu0
  %2176 = vmatprep.mubr.f32.mxu0 0.0
  %2177 = vmatmul.mubr.f32.gmra.mrb[0].mxu0 %v2039
  %v2178 = vpop.f32.mrb[0].mxu0
  %v2179 = vadd.f32 0.0, %v2178
  %v2180 = vpop.f32.mrb[0].mxu0
  %2181 = vmatprep.mubr.f32.mxu0 0.0
  %2182 = vmatmul.mubr.f32.gmra.mrb[0].mxu0 %v2042
  %v2183 = vpop.f32.mrb[0].mxu0
  %v2184 = vadd.f32 0.0, %v2183
  %v2185 = vpop.f32.mrb[0].mxu0
  %2186 = vmatprep.mubr.f32.mxu0 0.0
  %2187 = vmatmul.mubr.f32.gmra.mrb[0].mxu0 %v2045
  %v2188 = vpop.f32.mrb[0].mxu0
  %v2189 = vadd.f32 0.0, %v2188
  %v2190 = vpop.f32.mrb[0].mxu0
  %2191 = vdwg.mxu0
  %v2192 = vmul.f32 %v1889, %v2114
  %v2193 = vmul.f32 %v1890, %v2119
  %v2194 = vmul.f32 %v1891, %v2124
  %v2195 = vmul.f32 %v1892, %v2129
  %v2196 = vmul.f32 %v1893, %v2134
  %v2197 = vmul.f32 %v1894, %v2139
  %v2198 = vmul.f32 %v1895, %v2144
  %v2199 = vmul.f32 %v1896, %v2149
  %v2200 = vmul.f32 %v1897, %v2154
  %v2201 = vmul.f32 %v1898, %v2159
  %v2202 = vmul.f32 %v1899, %v2164
  %v2203 = vmul.f32 %v1900, %v2169
  %v2204 = vmul.f32 %v1901, %v2174
  %v2205 = vmul.f32 %v1902, %v2179
  %v2206 = vmul.f32 %v1903, %v2184
  %v2207 = vmul.f32 %v1904, %v2189
  %2208 = vadd.xlane.f32.xlu0 %v2192
  %v2209 = vpop.xlane.xlu0 %2208
  %2210 = vadd.xlane.f32.xlu0 %v2193
  %v2211 = vpop.xlane.xlu0 %2210
  %2212 = vadd.xlane.f32.xlu0 %v2194
  %v2213 = vpop.xlane.xlu0 %2212
  %2214 = vadd.xlane.f32.xlu0 %v2195
  %v2215 = vpop.xlane.xlu0 %2214
  %2216 = vadd.xlane.f32.xlu0 %v2196
  %v2217 = vpop.xlane.xlu0 %2216
  %2218 = vadd.xlane.f32.xlu0 %v2197
  %v2219 = vpop.xlane.xlu0 %2218
  %2220 = vadd.xlane.f32.xlu0 %v2198
  %v2221 = vpop.xlane.xlu0 %2220
  %2222 = vadd.xlane.f32.xlu0 %v2199
  %v2223 = vpop.xlane.xlu0 %2222
  %2224 = vadd.xlane.f32.xlu0 %v2200
  %v2225 = vpop.xlane.xlu0 %2224
  %2226 = vadd.xlane.f32.xlu0 %v2201
  %v2227 = vpop.xlane.xlu0 %2226
  %2228 = vadd.xlane.f32.xlu0 %v2202
  %v2229 = vpop.xlane.xlu0 %2228
  %2230 = vadd.xlane.f32.xlu0 %v2203
  %v2231 = vpop.xlane.xlu0 %2230
  %2232 = vadd.xlane.f32.xlu0 %v2204
  %v2233 = vpop.xlane.xlu0 %2232
  %2234 = vadd.xlane.f32.xlu0 %v2205
  %v2235 = vpop.xlane.xlu0 %2234
  %2236 = vadd.xlane.f32.xlu0 %v2206
  %v2237 = vpop.xlane.xlu0 %2236
  %2238 = vadd.xlane.f32.xlu0 %v2207
  %v2239 = vpop.xlane.xlu0 %2238
  %v2240 = vadd.f32 %v2209, 1.0
  %v2241 = vadd.f32 %v2211, 1.0
  %v2242 = vadd.f32 %v2213, 1.0
  %v2243 = vadd.f32 %v2215, 1.0
  %v2244 = vadd.f32 %v2217, 1.0
  %v2245 = vadd.f32 %v2219, 1.0
  %v2246 = vadd.f32 %v2221, 1.0
  %v2247 = vadd.f32 %v2223, 1.0
  %v2248 = vadd.f32 %v2225, 1.0
  %v2249 = vadd.f32 %v2227, 1.0
  %v2250 = vadd.f32 %v2229, 1.0
  %v2251 = vadd.f32 %v2231, 1.0
  %v2252 = vadd.f32 %v2233, 1.0
  %v2253 = vadd.f32 %v2235, 1.0
  %v2254 = vadd.f32 %v2237, 1.0
  %v2255 = vadd.f32 %v2239, 1.0
  %v2256 = vld [vmem:[%s15] sm:$0xff]
  %v2257 = vld [vmem:[%s15 + $0x8] sm:$0xff]
  %v2258 = vld [vmem:[%s15 + $0x10] sm:$0xff]
  %v2259 = vld [vmem:[%s15 + $0x18] sm:$0xff]
  %v2260 = vld [vmem:[%s15 + $0x20] sm:$0xff]
  %v2261 = vld [vmem:[%s15 + $0x28] sm:$0xff]
  %v2262 = vld [vmem:[%s15 + $0x30] sm:$0xff]
  %v2263 = vld [vmem:[%s15 + $0x38] sm:$0xff]
  %v2264 = vld [vmem:[%s15 + $0x40] sm:$0xff]
  %v2265 = vld [vmem:[%s15 + $0x48] sm:$0xff]
  %v2266 = vld [vmem:[%s15 + $0x50] sm:$0xff]
  %v2267 = vld [vmem:[%s15 + $0x58] sm:$0xff]
  %v2268 = vld [vmem:[%s15 + $0x60] sm:$0xff]
  %v2269 = vld [vmem:[%s15 + $0x68] sm:$0xff]
  %v2270 = vld [vmem:[%s15 + $0x70] sm:$0xff]
  %v2271 = vld [vmem:[%s15 + $0x78] sm:$0xff]
  %v2272 = vld [vmem:[%s15 + $0x80] sm:$0xff]
  %v2273 = vld [vmem:[%s15 + $0x88] sm:$0xff]
  %v2274 = vld [vmem:[%s15 + $0x90] sm:$0xff]
  %v2275 = vld [vmem:[%s15 + $0x98] sm:$0xff]
  %v2276 = vld [vmem:[%s15 + $0xa0] sm:$0xff]
  %v2277 = vld [vmem:[%s15 + $0xa8] sm:$0xff]
  %v2278 = vld [vmem:[%s15 + $0xb0] sm:$0xff]
  %v2279 = vld [vmem:[%s15 + $0xb8] sm:$0xff]
  %v2280 = vpack.c.bf16 %v1685, %v1684
  %v2281 = vpack.c.bf16 %v1687, %v1686
  %v2282 = vpack.c.bf16 %v1689, %v1688
  %v2283 = vpack.c.bf16 %v1691, %v1690
  %v2284 = vpack.c.bf16 %v1693, %v1692
  %v2285 = vpack.c.bf16 %v1695, %v1694
  %v2286 = vpack.c.bf16 %v1697, %v1696
  %v2287 = vpack.c.bf16 %v1699, %v1698
  %v2296 = vunpack.c.l.b16 %v2260
  %v2297 = vunpack.c.h.b16 %v2260
  %v2298 = vunpack.c.l.b16 %v2261
  %v2299 = vunpack.c.h.b16 %v2261
  %v2300 = vunpack.c.l.b16 %v2262
  %v2301 = vunpack.c.h.b16 %v2262
  %v2302 = vunpack.c.l.b16 %v2263
  %v2303 = vunpack.c.h.b16 %v2263
  %v2304 = vunpack.c.l.b16 %v2264
  %v2305 = vunpack.c.h.b16 %v2264
  %v2306 = vunpack.c.l.b16 %v2265
  %v2307 = vunpack.c.h.b16 %v2265
  %v2308 = vunpack.c.l.b16 %v2266
  %v2309 = vunpack.c.h.b16 %v2266
  %v2310 = vunpack.c.l.b16 %v2267
  %v2311 = vunpack.c.h.b16 %v2267
  %v2312 = vpack.c.b16 %v2298, %v2296
  %v2313 = vpack.c.b16 %v2299, %v2297
  %v2314 = vpack.c.b16 %v2302, %v2300
  %v2315 = vpack.c.b16 %v2303, %v2301
  %v2316 = vpack.c.b16 %v2306, %v2304
  %v2317 = vpack.c.b16 %v2307, %v2305
  %v2318 = vpack.c.b16 %v2310, %v2308
  %v2319 = vpack.c.b16 %v2311, %v2309
  %vm2328 = vcmask 523264
  %v2330 = vsel %vm2328, %v2280, 0
  %v2333 = vsel %vm2328, %v2281, 0
  %v2336 = vsel %vm2328, %v2282, 0
  %v2339 = vsel %vm2328, %v2283, 0
  %v2342 = vsel %vm2328, %v2284, 0
  %v2345 = vsel %vm2328, %v2285, 0
  %v2348 = vsel %vm2328, %v2286, 0
  %v2351 = vsel %vm2328, %v2287, 0
  %2353 = vmatprep.subr.bf16.mxu0 %v2313
  %2354 = vmatpush1.bf16.msra.mxu0 %v2312
  %2355 = vmatprep.subr.bf16.mxu0 %v2315
  %2356 = vmatpush1.bf16.msra.mxu0 %v2314
  %2357 = vmatprep.subr.bf16.mxu0 %v2317
  %2358 = vmatpush1.bf16.msra.mxu0 %v2316
  %2359 = vmatprep.subr.bf16.mxu0 %v2319
  %2360 = vmatpush1.bf16.msra.mxu0 %v2318
  %2361 = vmatprep.subr.bf16.mxu0 0
  %2362 = vmatpush1.bf16.msra.mxu0 0
  %2363 = vmatprep.subr.bf16.mxu0 0
  %2364 = vmatpush1.bf16.msra.mxu0 0
  %2365 = vmatprep.subr.bf16.mxu0 0
  %2366 = vmatpush1.bf16.msra.mxu0 0
  %2367 = vmatprep.subr.bf16.mxu0 0
  %2368 = vmatpush1.bf16.msra.mxu0 0
  %2369 = vmatprep.subr.bf16.mxu0 0
  %2370 = vmatpush1.bf16.msra.mxu0 0
  %2371 = vmatprep.subr.bf16.mxu0 0
  %2372 = vmatpush1.bf16.msra.mxu0 0
  %2373 = vmatprep.subr.bf16.mxu0 0
  %2374 = vmatpush1.bf16.msra.mxu0 0
  %2375 = vmatprep.subr.bf16.mxu0 0
  %2376 = vmatpush1.bf16.msra.mxu0 0
  %2377 = vmatprep.subr.bf16.mxu0 0
  %2378 = vmatpush1.bf16.msra.mxu0 0
  %2379 = vmatprep.subr.bf16.mxu0 0
  %2380 = vmatpush1.bf16.msra.mxu0 0
  %2381 = vmatprep.subr.bf16.mxu0 0
  %2382 = vmatpush1.bf16.msra.mxu0 0
  %2383 = vmatprep.subr.bf16.mxu0 0
  %2384 = vmatpush1.bf16.msra.mxu0 0
  %2385 = vmatprep.mubr.bf16.mxu0 0
  %2386 = vmatmul.mubr.bf16.gmra.mrb[0].mxu0 %v2330
  %v2387 = vpop.f32.mrb[0].mxu0
  %v2388 = vadd.f32 0.0, %v2387
  %v2389 = vpop.f32.mrb[0].mxu0
  %v2390 = vadd.f32 0.0, %v2389
  %v2391 = vpop.f32.mrb[0].mxu0
  %v2392 = vadd.f32 0.0, %v2391
  %v2393 = vpop.f32.mrb[0].mxu0
  %v2394 = vadd.f32 0.0, %v2393
  %2395 = vmatprep.mubr.bf16.mxu0 0
  %2396 = vmatmul.mubr.bf16.gmra.mrb[0].mxu0 %v2333
  %v2397 = vpop.f32.mrb[0].mxu0
  %v2398 = vadd.f32 0.0, %v2397
  %v2399 = vpop.f32.mrb[0].mxu0
  %v2400 = vadd.f32 0.0, %v2399
  %v2401 = vpop.f32.mrb[0].mxu0
  %v2402 = vadd.f32 0.0, %v2401
  %v2403 = vpop.f32.mrb[0].mxu0
  %v2404 = vadd.f32 0.0, %v2403
  %2405 = vmatprep.mubr.bf16.mxu0 0
  %2406 = vmatmul.mubr.bf16.gmra.mrb[0].mxu0 %v2336
  %v2407 = vpop.f32.mrb[0].mxu0
  %v2408 = vadd.f32 0.0, %v2407
  %v2409 = vpop.f32.mrb[0].mxu0
  %v2410 = vadd.f32 0.0, %v2409
  %v2411 = vpop.f32.mrb[0].mxu0
  %v2412 = vadd.f32 0.0, %v2411
  %v2413 = vpop.f32.mrb[0].mxu0
  %v2414 = vadd.f32 0.0, %v2413
  %2415 = vmatprep.mubr.bf16.mxu0 0
  %2416 = vmatmul.mubr.bf16.gmra.mrb[0].mxu0 %v2339
  %v2417 = vpop.f32.mrb[0].mxu0
  %v2418 = vadd.f32 0.0, %v2417
  %v2419 = vpop.f32.mrb[0].mxu0
  %v2420 = vadd.f32 0.0, %v2419
  %v2421 = vpop.f32.mrb[0].mxu0
  %v2422 = vadd.f32 0.0, %v2421
  %v2423 = vpop.f32.mrb[0].mxu0
  %v2424 = vadd.f32 0.0, %v2423
  %2425 = vmatprep.mubr.bf16.mxu0 0
  %2426 = vmatmul.mubr.bf16.gmra.mrb[0].mxu0 %v2342
  %v2427 = vpop.f32.mrb[0].mxu0
  %v2428 = vadd.f32 0.0, %v2427
  %v2429 = vpop.f32.mrb[0].mxu0
  %v2430 = vadd.f32 0.0, %v2429
  %v2431 = vpop.f32.mrb[0].mxu0
  %v2432 = vadd.f32 0.0, %v2431
  %v2433 = vpop.f32.mrb[0].mxu0
  %v2434 = vadd.f32 0.0, %v2433
  %2435 = vmatprep.mubr.bf16.mxu0 0
  %2436 = vmatmul.mubr.bf16.gmra.mrb[0].mxu0 %v2345
  %v2437 = vpop.f32.mrb[0].mxu0
  %v2438 = vadd.f32 0.0, %v2437
  %v2439 = vpop.f32.mrb[0].mxu0
  %v2440 = vadd.f32 0.0, %v2439
  %v2441 = vpop.f32.mrb[0].mxu0
  %v2442 = vadd.f32 0.0, %v2441
  %v2443 = vpop.f32.mrb[0].mxu0
  %v2444 = vadd.f32 0.0, %v2443
  %2445 = vmatprep.mubr.bf16.mxu0 0
  %2446 = vmatmul.mubr.bf16.gmra.mrb[0].mxu0 %v2348
  %v2447 = vpop.f32.mrb[0].mxu0
  %v2448 = vadd.f32 0.0, %v2447
  %v2449 = vpop.f32.mrb[0].mxu0
  %v2450 = vadd.f32 0.0, %v2449
  %v2451 = vpop.f32.mrb[0].mxu0
  %v2452 = vadd.f32 0.0, %v2451
  %v2453 = vpop.f32.mrb[0].mxu0
  %v2454 = vadd.f32 0.0, %v2453
  %2455 = vmatprep.mubr.bf16.mxu0 0
  %2456 = vmatmul.mubr.bf16.gmra.mrb[0].mxu0 %v2351
  %v2457 = vpop.f32.mrb[0].mxu0
  %v2458 = vadd.f32 0.0, %v2457
  %v2459 = vpop.f32.mrb[0].mxu0
  %v2460 = vadd.f32 0.0, %v2459
  %v2461 = vpop.f32.mrb[0].mxu0
  %v2462 = vadd.f32 0.0, %v2461
  %v2463 = vpop.f32.mrb[0].mxu0
  %v2464 = vadd.f32 0.0, %v2463
  %2465 = vdwg.mxu0
  %v2470 = vunpack.c.l.b16 %v2256
  %v2471 = vunpack.c.h.b16 %v2256
  %v2472 = vunpack.c.l.b16 %v2257
  %v2473 = vunpack.c.h.b16 %v2257
  %v2474 = vunpack.c.l.b16 %v2258
  %v2475 = vunpack.c.h.b16 %v2258
  %v2476 = vunpack.c.l.b16 %v2259
  %v2477 = vunpack.c.h.b16 %v2259
  %v2478 = vpack.c.b16 %v2472, %v2470
  %v2479 = vpack.c.b16 %v2473, %v2471
  %v2480 = vpack.c.b16 %v2476, %v2474
  %v2481 = vpack.c.b16 %v2477, %v2475
  %2486 = vmatprep.subr.bf16.mxu0 %v2479
  %2487 = vmatpush1.bf16.msra.mxu0 %v2478
  %2488 = vmatprep.subr.bf16.mxu0 %v2481
  %2489 = vmatpush1.bf16.msra.mxu0 %v2480
  %2490 = vmatprep.subr.bf16.mxu0 0
  %2491 = vmatpush1.bf16.msra.mxu0 0
  %2492 = vmatprep.subr.bf16.mxu0 0
  %2493 = vmatpush1.bf16.msra.mxu0 0
  %2494 = vmatprep.subr.bf16.mxu0 0
  %2495 = vmatpush1.bf16.msra.mxu0 0
  %2496 = vmatprep.subr.bf16.mxu0 0
  %2497 = vmatpush1.bf16.msra.mxu0 0
  %2498 = vmatprep.subr.bf16.mxu0 0
  %2499 = vmatpush1.bf16.msra.mxu0 0
  %2500 = vmatprep.subr.bf16.mxu0 0
  %2501 = vmatpush1.bf16.msra.mxu0 0
  %2502 = vmatprep.subr.bf16.mxu0 0
  %2503 = vmatpush1.bf16.msra.mxu0 0
  %2504 = vmatprep.subr.bf16.mxu0 0
  %2505 = vmatpush1.bf16.msra.mxu0 0
  %2506 = vmatprep.subr.bf16.mxu0 0
  %2507 = vmatpush1.bf16.msra.mxu0 0
  %2508 = vmatprep.subr.bf16.mxu0 0
  %2509 = vmatpush1.bf16.msra.mxu0 0
  %2510 = vmatprep.subr.bf16.mxu0 0
  %2511 = vmatpush1.bf16.msra.mxu0 0
  %2512 = vmatprep.subr.bf16.mxu0 0
  %2513 = vmatpush1.bf16.msra.mxu0 0
  %2514 = vmatprep.subr.bf16.mxu0 0
  %2515 = vmatpush1.bf16.msra.mxu0 0
  %2516 = vmatprep.subr.bf16.mxu0 0
  %2517 = vmatpush1.bf16.msra.mxu0 0
  %2518 = vmatprep.mubr.bf16.mxu0 0
  %2519 = vmatmul.mubr.bf16.gmra.mrb[0].mxu0 %v1564
  %v2520 = vpop.f32.mrb[0].mxu0
  %v2521 = vadd.f32 %v2388, %v2520
  %v2522 = vpop.f32.mrb[0].mxu0
  %v2523 = vadd.f32 %v2390, %v2522
  %v2524 = vpop.f32.mrb[0].mxu0
  %v2525 = vadd.f32 %v2392, %v2524
  %v2526 = vpop.f32.mrb[0].mxu0
  %v2527 = vadd.f32 %v2394, %v2526
  %2528 = vmatprep.mubr.bf16.mxu0 0
  %2529 = vmatmul.mubr.bf16.gmra.mrb[0].mxu0 %v1567
  %v2530 = vpop.f32.mrb[0].mxu0
  %v2531 = vadd.f32 %v2398, %v2530
  %v2532 = vpop.f32.mrb[0].mxu0
  %v2533 = vadd.f32 %v2400, %v2532
  %v2534 = vpop.f32.mrb[0].mxu0
  %v2535 = vadd.f32 %v2402, %v2534
  %v2536 = vpop.f32.mrb[0].mxu0
  %v2537 = vadd.f32 %v2404, %v2536
  %2538 = vmatprep.mubr.bf16.mxu0 0
  %2539 = vmatmul.mubr.bf16.gmra.mrb[0].mxu0 %v1570
  %v2540 = vpop.f32.mrb[0].mxu0
  %v2541 = vadd.f32 %v2408, %v2540
  %v2542 = vpop.f32.mrb[0].mxu0
  %v2543 = vadd.f32 %v2410, %v2542
  %v2544 = vpop.f32.mrb[0].mxu0
  %v2545 = vadd.f32 %v2412, %v2544
  %v2546 = vpop.f32.mrb[0].mxu0
  %v2547 = vadd.f32 %v2414, %v2546
  %2548 = vmatprep.mubr.bf16.mxu0 0
  %2549 = vmatmul.mubr.bf16.gmra.mrb[0].mxu0 %v1573
  %v2550 = vpop.f32.mrb[0].mxu0
  %v2551 = vadd.f32 %v2418, %v2550
  %v2552 = vpop.f32.mrb[0].mxu0
  %v2553 = vadd.f32 %v2420, %v2552
  %v2554 = vpop.f32.mrb[0].mxu0
  %v2555 = vadd.f32 %v2422, %v2554
  %v2556 = vpop.f32.mrb[0].mxu0
  %v2557 = vadd.f32 %v2424, %v2556
  %2558 = vmatprep.mubr.bf16.mxu0 0
  %2559 = vmatmul.mubr.bf16.gmra.mrb[0].mxu0 %v1576
  %v2560 = vpop.f32.mrb[0].mxu0
  %v2561 = vadd.f32 %v2428, %v2560
  %v2562 = vpop.f32.mrb[0].mxu0
  %v2563 = vadd.f32 %v2430, %v2562
  %v2564 = vpop.f32.mrb[0].mxu0
  %v2565 = vadd.f32 %v2432, %v2564
  %v2566 = vpop.f32.mrb[0].mxu0
  %v2567 = vadd.f32 %v2434, %v2566
  %2568 = vmatprep.mubr.bf16.mxu0 0
  %2569 = vmatmul.mubr.bf16.gmra.mrb[0].mxu0 %v1579
  %v2570 = vpop.f32.mrb[0].mxu0
  %v2571 = vadd.f32 %v2438, %v2570
  %v2572 = vpop.f32.mrb[0].mxu0
  %v2573 = vadd.f32 %v2440, %v2572
  %v2574 = vpop.f32.mrb[0].mxu0
  %v2575 = vadd.f32 %v2442, %v2574
  %v2576 = vpop.f32.mrb[0].mxu0
  %v2577 = vadd.f32 %v2444, %v2576
  %2578 = vmatprep.mubr.bf16.mxu0 0
  %2579 = vmatmul.mubr.bf16.gmra.mrb[0].mxu0 %v1582
  %v2580 = vpop.f32.mrb[0].mxu0
  %v2581 = vadd.f32 %v2448, %v2580
  %v2582 = vpop.f32.mrb[0].mxu0
  %v2583 = vadd.f32 %v2450, %v2582
  %v2584 = vpop.f32.mrb[0].mxu0
  %v2585 = vadd.f32 %v2452, %v2584
  %v2586 = vpop.f32.mrb[0].mxu0
  %v2587 = vadd.f32 %v2454, %v2586
  %2588 = vmatprep.mubr.bf16.mxu0 0
  %2589 = vmatmul.mubr.bf16.gmra.mrb[0].mxu0 %v1585
  %v2590 = vpop.f32.mrb[0].mxu0
  %v2591 = vadd.f32 %v2458, %v2590
  %v2592 = vpop.f32.mrb[0].mxu0
  %v2593 = vadd.f32 %v2460, %v2592
  %v2594 = vpop.f32.mrb[0].mxu0
  %v2595 = vadd.f32 %v2462, %v2594
  %v2596 = vpop.f32.mrb[0].mxu0
  %v2597 = vadd.f32 %v2464, %v2596
  %2598 = vdwg.mxu0
  %v2599 = vmul.f32 %v1516, %v2240
  %v2600 = vmul.f32 %v1517, %v2241
  %v2601 = vmul.f32 %v1518, %v2242
  %v2602 = vmul.f32 %v1519, %v2243
  %v2603 = vmul.f32 %v1520, %v2244
  %v2604 = vmul.f32 %v1521, %v2245
  %v2605 = vmul.f32 %v1522, %v2246
  %v2606 = vmul.f32 %v1523, %v2247
  %v2607 = vmul.f32 %v1524, %v2248
  %v2608 = vmul.f32 %v1525, %v2249
  %v2609 = vmul.f32 %v1526, %v2250
  %v2610 = vmul.f32 %v1527, %v2251
  %v2611 = vmul.f32 %v1528, %v2252
  %v2612 = vmul.f32 %v1529, %v2253
  %v2613 = vmul.f32 %v1530, %v2254
  %v2614 = vmul.f32 %v1531, %v2255
  %v2615 = vpack.c.bf16 %v2600, %v2599
  %v2616 = vpack.c.bf16 %v2602, %v2601
  %v2617 = vpack.c.bf16 %v2604, %v2603
  %v2618 = vpack.c.bf16 %v2606, %v2605
  %v2619 = vpack.c.bf16 %v2608, %v2607
  %v2620 = vpack.c.bf16 %v2610, %v2609
  %v2621 = vpack.c.bf16 %v2612, %v2611
  %v2622 = vpack.c.bf16 %v2614, %v2613
  %v2627 = vunpack.c.l.b16 %v2268
  %v2628 = vunpack.c.h.b16 %v2268
  %v2629 = vunpack.c.l.b16 %v2269
  %v2630 = vunpack.c.h.b16 %v2269
  %v2631 = vunpack.c.l.b16 %v2270
  %v2632 = vunpack.c.h.b16 %v2270
  %v2633 = vunpack.c.l.b16 %v2271
  %v2634 = vunpack.c.h.b16 %v2271
  %v2635 = vpack.c.b16 %v2629, %v2627
  %v2636 = vpack.c.b16 %v2630, %v2628
  %v2637 = vpack.c.b16 %v2633, %v2631
  %v2638 = vpack.c.b16 %v2634, %v2632
  %v2644 = vsel %vm1394, %v2615, 0
  %v2647 = vsel %vm1394, %v2616, 0
  %v2650 = vsel %vm1394, %v2617, 0
  %v2653 = vsel %vm1394, %v2618, 0
  %v2656 = vsel %vm1394, %v2619, 0
  %v2659 = vsel %vm1394, %v2620, 0
  %v2662 = vsel %vm1394, %v2621, 0
  %v2665 = vsel %vm1394, %v2622, 0
  %2667 = vmatprep.subr.bf16.mxu0 %v2636
  %2668 = vmatpush1.bf16.msra.mxu0 %v2635
  %2669 = vmatprep.subr.bf16.mxu0 %v2638
  %2670 = vmatpush1.bf16.msra.mxu0 %v2637
  %2671 = vmatprep.subr.bf16.mxu0 0
  %2672 = vmatpush1.bf16.msra.mxu0 0
  %2673 = vmatprep.subr.bf16.mxu0 0
  %2674 = vmatpush1.bf16.msra.mxu0 0
  %2675 = vmatprep.subr.bf16.mxu0 0
  %2676 = vmatpush1.bf16.msra.mxu0 0
  %2677 = vmatprep.subr.bf16.mxu0 0
  %2678 = vmatpush1.bf16.msra.mxu0 0
  %2679 = vmatprep.subr.bf16.mxu0 0
  %2680 = vmatpush1.bf16.msra.mxu0 0
  %2681 = vmatprep.subr.bf16.mxu0 0
  %2682 = vmatpush1.bf16.msra.mxu0 0
  %2683 = vmatprep.subr.bf16.mxu0 0
  %2684 = vmatpush1.bf16.msra.mxu0 0
  %2685 = vmatprep.subr.bf16.mxu0 0
  %2686 = vmatpush1.bf16.msra.mxu0 0
  %2687 = vmatprep.subr.bf16.mxu0 0
  %2688 = vmatpush1.bf16.msra.mxu0 0
  %2689 = vmatprep.subr.bf16.mxu0 0
  %2690 = vmatpush1.bf16.msra.mxu0 0
  %2691 = vmatprep.subr.bf16.mxu0 0
  %2692 = vmatpush1.bf16.msra.mxu0 0
  %2693 = vmatprep.subr.bf16.mxu0 0
  %2694 = vmatpush1.bf16.msra.mxu0 0
  %2695 = vmatprep.subr.bf16.mxu0 0
  %2696 = vmatpush1.bf16.msra.mxu0 0
  %2697 = vmatprep.subr.bf16.mxu0 0
  %2698 = vmatpush1.bf16.msra.mxu0 0
  %2699 = vmatprep.mubr.bf16.mxu0 0
  %2700 = vmatmul.mubr.bf16.gmra.mrb[0].mxu0 %v2644
  %v2701 = vpop.f32.mrb[0].mxu0
  %v2702 = vadd.f32 0.0, %v2701
  %v2703 = vpop.f32.mrb[0].mxu0
  %v2704 = vadd.f32 0.0, %v2703
  %v2705 = vpop.f32.mrb[0].mxu0
  %v2706 = vadd.f32 0.0, %v2705
  %v2707 = vpop.f32.mrb[0].mxu0
  %v2708 = vadd.f32 0.0, %v2707
  %2709 = vmatprep.mubr.bf16.mxu0 0
  %2710 = vmatmul.mubr.bf16.gmra.mrb[0].mxu0 %v2647
  %v2711 = vpop.f32.mrb[0].mxu0
  %v2712 = vadd.f32 0.0, %v2711
  %v2713 = vpop.f32.mrb[0].mxu0
  %v2714 = vadd.f32 0.0, %v2713
  %v2715 = vpop.f32.mrb[0].mxu0
  %v2716 = vadd.f32 0.0, %v2715
  %v2717 = vpop.f32.mrb[0].mxu0
  %v2718 = vadd.f32 0.0, %v2717
  %2719 = vmatprep.mubr.bf16.mxu0 0
  %2720 = vmatmul.mubr.bf16.gmra.mrb[0].mxu0 %v2650
  %v2721 = vpop.f32.mrb[0].mxu0
  %v2722 = vadd.f32 0.0, %v2721
  %v2723 = vpop.f32.mrb[0].mxu0
  %v2724 = vadd.f32 0.0, %v2723
  %v2725 = vpop.f32.mrb[0].mxu0
  %v2726 = vadd.f32 0.0, %v2725
  %v2727 = vpop.f32.mrb[0].mxu0
  %v2728 = vadd.f32 0.0, %v2727
  %2729 = vmatprep.mubr.bf16.mxu0 0
  %2730 = vmatmul.mubr.bf16.gmra.mrb[0].mxu0 %v2653
  %v2731 = vpop.f32.mrb[0].mxu0
  %v2732 = vadd.f32 0.0, %v2731
  %v2733 = vpop.f32.mrb[0].mxu0
  %v2734 = vadd.f32 0.0, %v2733
  %v2735 = vpop.f32.mrb[0].mxu0
  %v2736 = vadd.f32 0.0, %v2735
  %v2737 = vpop.f32.mrb[0].mxu0
  %v2738 = vadd.f32 0.0, %v2737
  %2739 = vmatprep.mubr.bf16.mxu0 0
  %2740 = vmatmul.mubr.bf16.gmra.mrb[0].mxu0 %v2656
  %v2741 = vpop.f32.mrb[0].mxu0
  %v2742 = vadd.f32 0.0, %v2741
  %v2743 = vpop.f32.mrb[0].mxu0
  %v2744 = vadd.f32 0.0, %v2743
  %v2745 = vpop.f32.mrb[0].mxu0
  %v2746 = vadd.f32 0.0, %v2745
  %v2747 = vpop.f32.mrb[0].mxu0
  %v2748 = vadd.f32 0.0, %v2747
  %2749 = vmatprep.mubr.bf16.mxu0 0
  %2750 = vmatmul.mubr.bf16.gmra.mrb[0].mxu0 %v2659
  %v2751 = vpop.f32.mrb[0].mxu0
  %v2752 = vadd.f32 0.0, %v2751
  %v2753 = vpop.f32.mrb[0].mxu0
  %v2754 = vadd.f32 0.0, %v2753
  %v2755 = vpop.f32.mrb[0].mxu0
  %v2756 = vadd.f32 0.0, %v2755
  %v2757 = vpop.f32.mrb[0].mxu0
  %v2758 = vadd.f32 0.0, %v2757
  %2759 = vmatprep.mubr.bf16.mxu0 0
  %2760 = vmatmul.mubr.bf16.gmra.mrb[0].mxu0 %v2662
  %v2761 = vpop.f32.mrb[0].mxu0
  %v2762 = vadd.f32 0.0, %v2761
  %v2763 = vpop.f32.mrb[0].mxu0
  %v2764 = vadd.f32 0.0, %v2763
  %v2765 = vpop.f32.mrb[0].mxu0
  %v2766 = vadd.f32 0.0, %v2765
  %v2767 = vpop.f32.mrb[0].mxu0
  %v2768 = vadd.f32 0.0, %v2767
  %2769 = vmatprep.mubr.bf16.mxu0 0
  %2770 = vmatmul.mubr.bf16.gmra.mrb[0].mxu0 %v2665
  %v2771 = vpop.f32.mrb[0].mxu0
  %v2772 = vadd.f32 0.0, %v2771
  %v2773 = vpop.f32.mrb[0].mxu0
  %v2774 = vadd.f32 0.0, %v2773
  %v2775 = vpop.f32.mrb[0].mxu0
  %v2776 = vadd.f32 0.0, %v2775
  %v2777 = vpop.f32.mrb[0].mxu0
  %v2778 = vadd.f32 0.0, %v2777
  %2779 = vdwg.mxu0
  %v2780 = vadd.f32 %v2521, %v2702
  %v2781 = vadd.f32 %v2523, %v2704
  %v2782 = vadd.f32 %v2525, %v2706
  %v2783 = vadd.f32 %v2527, %v2708
  %v2784 = vadd.f32 %v2531, %v2712
  %v2785 = vadd.f32 %v2533, %v2714
  %v2786 = vadd.f32 %v2535, %v2716
  %v2787 = vadd.f32 %v2537, %v2718
  %v2788 = vadd.f32 %v2541, %v2722
  %v2789 = vadd.f32 %v2543, %v2724
  %v2790 = vadd.f32 %v2545, %v2726
  %v2791 = vadd.f32 %v2547, %v2728
  %v2792 = vadd.f32 %v2551, %v2732
  %v2793 = vadd.f32 %v2553, %v2734
  %v2794 = vadd.f32 %v2555, %v2736
  %v2795 = vadd.f32 %v2557, %v2738
  %v2796 = vadd.f32 %v2561, %v2742
  %v2797 = vadd.f32 %v2563, %v2744
  %v2798 = vadd.f32 %v2565, %v2746
  %v2799 = vadd.f32 %v2567, %v2748
  %v2800 = vadd.f32 %v2571, %v2752
  %v2801 = vadd.f32 %v2573, %v2754
  %v2802 = vadd.f32 %v2575, %v2756
  %v2803 = vadd.f32 %v2577, %v2758
  %v2804 = vadd.f32 %v2581, %v2762
  %v2805 = vadd.f32 %v2583, %v2764
  %v2806 = vadd.f32 %v2585, %v2766
  %v2807 = vadd.f32 %v2587, %v2768
  %v2808 = vadd.f32 %v2591, %v2772
  %v2809 = vadd.f32 %v2593, %v2774
  %v2810 = vadd.f32 %v2595, %v2776
  %v2811 = vadd.f32 %v2597, %v2778
  %v2812 = vmul.f32 %v1684, %v2240
  %v2813 = vmul.f32 %v1685, %v2241
  %v2814 = vmul.f32 %v1686, %v2242
  %v2815 = vmul.f32 %v1687, %v2243
  %v2816 = vmul.f32 %v1688, %v2244
  %v2817 = vmul.f32 %v1689, %v2245
  %v2818 = vmul.f32 %v1690, %v2246
  %v2819 = vmul.f32 %v1691, %v2247
  %v2820 = vmul.f32 %v1692, %v2248
  %v2821 = vmul.f32 %v1693, %v2249
  %v2822 = vmul.f32 %v1694, %v2250
  %v2823 = vmul.f32 %v1695, %v2251
  %v2824 = vmul.f32 %v1696, %v2252
  %v2825 = vmul.f32 %v1697, %v2253
  %v2826 = vmul.f32 %v1698, %v2254
  %v2827 = vmul.f32 %v1699, %v2255
  %v2828 = vpack.c.bf16 %v2813, %v2812
  %v2829 = vpack.c.bf16 %v2815, %v2814
  %v2830 = vpack.c.bf16 %v2817, %v2816
  %v2831 = vpack.c.bf16 %v2819, %v2818
  %v2832 = vpack.c.bf16 %v2821, %v2820
  %v2833 = vpack.c.bf16 %v2823, %v2822
  %v2834 = vpack.c.bf16 %v2825, %v2824
  %v2835 = vpack.c.bf16 %v2827, %v2826
  %v2844 = vunpack.c.l.b16 %v2272
  %v2845 = vunpack.c.h.b16 %v2272
  %v2846 = vunpack.c.l.b16 %v2273
  %v2847 = vunpack.c.h.b16 %v2273
  %v2848 = vunpack.c.l.b16 %v2274
  %v2849 = vunpack.c.h.b16 %v2274
  %v2850 = vunpack.c.l.b16 %v2275
  %v2851 = vunpack.c.h.b16 %v2275
  %v2852 = vunpack.c.l.b16 %v2276
  %v2853 = vunpack.c.h.b16 %v2276
  %v2854 = vunpack.c.l.b16 %v2277
  %v2855 = vunpack.c.h.b16 %v2277
  %v2856 = vunpack.c.l.b16 %v2278
  %v2857 = vunpack.c.h.b16 %v2278
  %v2858 = vunpack.c.l.b16 %v2279
  %v2859 = vunpack.c.h.b16 %v2279
  %v2860 = vpack.c.b16 %v2846, %v2844
  %v2861 = vpack.c.b16 %v2847, %v2845
  %v2862 = vpack.c.b16 %v2850, %v2848
  %v2863 = vpack.c.b16 %v2851, %v2849
  %v2864 = vpack.c.b16 %v2854, %v2852
  %v2865 = vpack.c.b16 %v2855, %v2853
  %v2866 = vpack.c.b16 %v2858, %v2856
  %v2867 = vpack.c.b16 %v2859, %v2857
  %v2877 = vsel %vm2328, %v2828, 0
  %v2880 = vsel %vm2328, %v2829, 0
  %v2883 = vsel %vm2328, %v2830, 0
  %v2886 = vsel %vm2328, %v2831, 0
  %v2889 = vsel %vm2328, %v2832, 0
  %v2892 = vsel %vm2328, %v2833, 0
  %v2895 = vsel %vm2328, %v2834, 0
  %v2898 = vsel %vm2328, %v2835, 0
  %2900 = vmatprep.subr.bf16.mxu0 %v2861
  %2901 = vmatpush1.bf16.msra.mxu0 %v2860
  %2902 = vmatprep.subr.bf16.mxu0 %v2863
  %2903 = vmatpush1.bf16.msra.mxu0 %v2862
  %2904 = vmatprep.subr.bf16.mxu0 %v2865
  %2905 = vmatpush1.bf16.msra.mxu0 %v2864
  %2906 = vmatprep.subr.bf16.mxu0 %v2867
  %2907 = vmatpush1.bf16.msra.mxu0 %v2866
  %2908 = vmatprep.subr.bf16.mxu0 0
  %2909 = vmatpush1.bf16.msra.mxu0 0
  %2910 = vmatprep.subr.bf16.mxu0 0
  %2911 = vmatpush1.bf16.msra.mxu0 0
  %2912 = vmatprep.subr.bf16.mxu0 0
  %2913 = vmatpush1.bf16.msra.mxu0 0
  %2914 = vmatprep.subr.bf16.mxu0 0
  %2915 = vmatpush1.bf16.msra.mxu0 0
  %2916 = vmatprep.subr.bf16.mxu0 0
  %2917 = vmatpush1.bf16.msra.mxu0 0
  %2918 = vmatprep.subr.bf16.mxu0 0
  %2919 = vmatpush1.bf16.msra.mxu0 0
  %2920 = vmatprep.subr.bf16.mxu0 0
  %2921 = vmatpush1.bf16.msra.mxu0 0
  %2922 = vmatprep.subr.bf16.mxu0 0
  %2923 = vmatpush1.bf16.msra.mxu0 0
  %2924 = vmatprep.subr.bf16.mxu0 0
  %2925 = vmatpush1.bf16.msra.mxu0 0
  %2926 = vmatprep.subr.bf16.mxu0 0
  %2927 = vmatpush1.bf16.msra.mxu0 0
  %2928 = vmatprep.subr.bf16.mxu0 0
  %2929 = vmatpush1.bf16.msra.mxu0 0
  %2930 = vmatprep.subr.bf16.mxu0 0
  %2931 = vmatpush1.bf16.msra.mxu0 0
  %2932 = vmatprep.mubr.bf16.mxu0 0
  %2933 = vmatmul.mubr.bf16.gmra.mrb[0].mxu0 %v2877
  %v2934 = vpop.f32.mrb[0].mxu0
  %v2935 = vadd.f32 0.0, %v2934
  %v2936 = vpop.f32.mrb[0].mxu0
  %v2937 = vadd.f32 0.0, %v2936
  %v2938 = vpop.f32.mrb[0].mxu0
  %v2939 = vadd.f32 0.0, %v2938
  %v2940 = vpop.f32.mrb[0].mxu0
  %v2941 = vadd.f32 0.0, %v2940
  %2942 = vmatprep.mubr.bf16.mxu0 0
  %2943 = vmatmul.mubr.bf16.gmra.mrb[0].mxu0 %v2880
  %v2944 = vpop.f32.mrb[0].mxu0
  %v2945 = vadd.f32 0.0, %v2944
  %v2946 = vpop.f32.mrb[0].mxu0
  %v2947 = vadd.f32 0.0, %v2946
  %v2948 = vpop.f32.mrb[0].mxu0
  %v2949 = vadd.f32 0.0, %v2948
  %v2950 = vpop.f32.mrb[0].mxu0
  %v2951 = vadd.f32 0.0, %v2950
  %2952 = vmatprep.mubr.bf16.mxu0 0
  %2953 = vmatmul.mubr.bf16.gmra.mrb[0].mxu0 %v2883
  %v2954 = vpop.f32.mrb[0].mxu0
  %v2955 = vadd.f32 0.0, %v2954
  %v2956 = vpop.f32.mrb[0].mxu0
  %v2957 = vadd.f32 0.0, %v2956
  %v2958 = vpop.f32.mrb[0].mxu0
  %v2959 = vadd.f32 0.0, %v2958
  %v2960 = vpop.f32.mrb[0].mxu0
  %v2961 = vadd.f32 0.0, %v2960
  %2962 = vmatprep.mubr.bf16.mxu0 0
  %2963 = vmatmul.mubr.bf16.gmra.mrb[0].mxu0 %v2886
  %v2964 = vpop.f32.mrb[0].mxu0
  %v2965 = vadd.f32 0.0, %v2964
  %v2966 = vpop.f32.mrb[0].mxu0
  %v2967 = vadd.f32 0.0, %v2966
  %v2968 = vpop.f32.mrb[0].mxu0
  %v2969 = vadd.f32 0.0, %v2968
  %v2970 = vpop.f32.mrb[0].mxu0
  %v2971 = vadd.f32 0.0, %v2970
  %2972 = vmatprep.mubr.bf16.mxu0 0
  %2973 = vmatmul.mubr.bf16.gmra.mrb[0].mxu0 %v2889
  %v2974 = vpop.f32.mrb[0].mxu0
  %v2975 = vadd.f32 0.0, %v2974
  %v2976 = vpop.f32.mrb[0].mxu0
  %v2977 = vadd.f32 0.0, %v2976
  %v2978 = vpop.f32.mrb[0].mxu0
  %v2979 = vadd.f32 0.0, %v2978
  %v2980 = vpop.f32.mrb[0].mxu0
  %v2981 = vadd.f32 0.0, %v2980
  %2982 = vmatprep.mubr.bf16.mxu0 0
  %2983 = vmatmul.mubr.bf16.gmra.mrb[0].mxu0 %v2892
  %v2984 = vpop.f32.mrb[0].mxu0
  %v2985 = vadd.f32 0.0, %v2984
  %v2986 = vpop.f32.mrb[0].mxu0
  %v2987 = vadd.f32 0.0, %v2986
  %v2988 = vpop.f32.mrb[0].mxu0
  %v2989 = vadd.f32 0.0, %v2988
  %v2990 = vpop.f32.mrb[0].mxu0
  %v2991 = vadd.f32 0.0, %v2990
  %2992 = vmatprep.mubr.bf16.mxu0 0
  %2993 = vmatmul.mubr.bf16.gmra.mrb[0].mxu0 %v2895
  %v2994 = vpop.f32.mrb[0].mxu0
  %v2995 = vadd.f32 0.0, %v2994
  %v2996 = vpop.f32.mrb[0].mxu0
  %v2997 = vadd.f32 0.0, %v2996
  %v2998 = vpop.f32.mrb[0].mxu0
  %v2999 = vadd.f32 0.0, %v2998
  %v3000 = vpop.f32.mrb[0].mxu0
  %v3001 = vadd.f32 0.0, %v3000
  %3002 = vmatprep.mubr.bf16.mxu0 0
  %3003 = vmatmul.mubr.bf16.gmra.mrb[0].mxu0 %v2898
  %v3004 = vpop.f32.mrb[0].mxu0
  %v3005 = vadd.f32 0.0, %v3004
  %v3006 = vpop.f32.mrb[0].mxu0
  %v3007 = vadd.f32 0.0, %v3006
  %v3008 = vpop.f32.mrb[0].mxu0
  %v3009 = vadd.f32 0.0, %v3008
  %v3010 = vpop.f32.mrb[0].mxu0
  %v3011 = vadd.f32 0.0, %v3010
  %3012 = vdwg.mxu0
  %v3013 = vadd.f32 %v2780, %v2935
  %v3014 = vadd.f32 %v2781, %v2937
  %v3015 = vadd.f32 %v2782, %v2939
  %v3016 = vadd.f32 %v2783, %v2941
  %v3017 = vadd.f32 %v2784, %v2945
  %v3018 = vadd.f32 %v2785, %v2947
  %v3019 = vadd.f32 %v2786, %v2949
  %v3020 = vadd.f32 %v2787, %v2951
  %v3021 = vadd.f32 %v2788, %v2955
  %v3022 = vadd.f32 %v2789, %v2957
  %v3023 = vadd.f32 %v2790, %v2959
  %v3024 = vadd.f32 %v2791, %v2961
  %v3025 = vadd.f32 %v2792, %v2965
  %v3026 = vadd.f32 %v2793, %v2967
  %v3027 = vadd.f32 %v2794, %v2969
  %v3028 = vadd.f32 %v2795, %v2971
  %v3029 = vadd.f32 %v2796, %v2975
  %v3030 = vadd.f32 %v2797, %v2977
  %v3031 = vadd.f32 %v2798, %v2979
  %v3032 = vadd.f32 %v2799, %v2981
  %v3033 = vadd.f32 %v2800, %v2985
  %v3034 = vadd.f32 %v2801, %v2987
  %v3035 = vadd.f32 %v2802, %v2989
  %v3036 = vadd.f32 %v2803, %v2991
  %v3037 = vadd.f32 %v2804, %v2995
  %v3038 = vadd.f32 %v2805, %v2997
  %v3039 = vadd.f32 %v2806, %v2999
  %v3040 = vadd.f32 %v2807, %v3001
  %v3041 = vadd.f32 %v2808, %v3005
  %v3042 = vadd.f32 %v2809, %v3007
  %v3043 = vadd.f32 %v2810, %v3009
  %v3044 = vadd.f32 %v2811, %v3011
  %v3045 = vld [vmem:[%s16] sm:$0x3]
  %v3047 = vlaneseq
  %v3048 = vshrl.u32 %v3047, 7
  %v3049 = vsub.s32 0, %v3048
  %v3050 = vrot.slane %v3045, %v3049
  %v3051 = vlaneseq
  %v3052 = vshrl.u32 %v3051, 7
  %v3053 = vsub.s32 1, %v3052
  %v3054 = vrot.slane %v3045, %v3053
  %v3057 = vadd.f32 %v3013, %v3050
  %v3058 = vadd.f32 %v3014, %v3054
  %v3059 = vadd.f32 %v3015, %v3050
  %v3060 = vadd.f32 %v3016, %v3054
  %v3061 = vadd.f32 %v3017, %v3050
  %v3062 = vadd.f32 %v3018, %v3054
  %v3063 = vadd.f32 %v3019, %v3050
  %v3064 = vadd.f32 %v3020, %v3054
  %v3065 = vadd.f32 %v3021, %v3050
  %v3066 = vadd.f32 %v3022, %v3054
  %v3067 = vadd.f32 %v3023, %v3050
  %v3068 = vadd.f32 %v3024, %v3054
  %v3069 = vadd.f32 %v3025, %v3050
  %v3070 = vadd.f32 %v3026, %v3054
  %v3071 = vadd.f32 %v3027, %v3050
  %v3072 = vadd.f32 %v3028, %v3054
  %v3073 = vadd.f32 %v3029, %v3050
  %v3074 = vadd.f32 %v3030, %v3054
  %v3075 = vadd.f32 %v3031, %v3050
  %v3076 = vadd.f32 %v3032, %v3054
  %v3077 = vadd.f32 %v3033, %v3050
  %v3078 = vadd.f32 %v3034, %v3054
  %v3079 = vadd.f32 %v3035, %v3050
  %v3080 = vadd.f32 %v3036, %v3054
  %v3081 = vadd.f32 %v3037, %v3050
  %v3082 = vadd.f32 %v3038, %v3054
  %v3083 = vadd.f32 %v3039, %v3050
  %v3084 = vadd.f32 %v3040, %v3054
  %v3085 = vadd.f32 %v3041, %v3050
  %v3086 = vadd.f32 %v3042, %v3054
  %v3087 = vadd.f32 %v3043, %v3050
  %v3088 = vadd.f32 %v3044, %v3054
  %v3089 = vmax.f32 %v3057, 0.0
  %v3090 = vmax.f32 %v3059, 0.0
  %v3091 = vmax.f32 %v3061, 0.0
  %v3092 = vmax.f32 %v3063, 0.0
  %v3093 = vmax.f32 %v3065, 0.0
  %v3094 = vmax.f32 %v3067, 0.0
  %v3095 = vmax.f32 %v3069, 0.0
  %v3096 = vmax.f32 %v3071, 0.0
  %v3097 = vmax.f32 %v3073, 0.0
  %v3098 = vmax.f32 %v3075, 0.0
  %v3099 = vmax.f32 %v3077, 0.0
  %v3100 = vmax.f32 %v3079, 0.0
  %v3101 = vmax.f32 %v3081, 0.0
  %v3102 = vmax.f32 %v3083, 0.0
  %v3103 = vmax.f32 %v3085, 0.0
  %v3104 = vmax.f32 %v3087, 0.0
  %v3105 = vpack.c.bf16 %v3090, %v3089
  %v3106 = vpack.c.bf16 %v3092, %v3091
  %v3107 = vpack.c.bf16 %v3094, %v3093
  %v3108 = vpack.c.bf16 %v3096, %v3095
  %v3109 = vpack.c.bf16 %v3098, %v3097
  %v3110 = vpack.c.bf16 %v3100, %v3099
  %v3111 = vpack.c.bf16 %v3102, %v3101
  %v3112 = vpack.c.bf16 %v3104, %v3103
  %v3113 = vld [vmem:[%s17] sm:$0xf]
  %v3114 = vld [vmem:[%s17 + $0x4] sm:$0xf]
  %v3115 = vld [vmem:[%s17 + $0x8] sm:$0xf]
  %v3116 = vld [vmem:[%s17 + $0xc] sm:$0xf]
  %v3117 = vld [vmem:[%s17 + $0x10] sm:$0xf]
  %v3118 = vld [vmem:[%s17 + $0x14] sm:$0xf]
  %v3119 = vld [vmem:[%s17 + $0x18] sm:$0xf]
  %v3120 = vld [vmem:[%s17 + $0x1c] sm:$0xf]
  %v3121 = vld [vmem:[%s17 + $0x20] sm:$0xf]
  %v3122 = vld [vmem:[%s17 + $0x24] sm:$0xf]
  %v3123 = vld [vmem:[%s17 + $0x28] sm:$0xf]
  %v3124 = vld [vmem:[%s17 + $0x2c] sm:$0xf]
  %v3125 = vld [vmem:[%s17 + $0x30] sm:$0xf]
  %v3126 = vld [vmem:[%s17 + $0x34] sm:$0xf]
  %v3127 = vld [vmem:[%s17 + $0x38] sm:$0xf]
  %v3128 = vld [vmem:[%s17 + $0x3c] sm:$0xf]
  %v3129 = vld [vmem:[%s18] sm:$0x1]
  %v3131 = vlaneseq
  %v3132 = vshrl.u32 %v3131, 7
  %v3133 = vsub.s32 0, %v3132
  %v3134 = vrot.slane %v3129, %v3133
  %v3152 = vunpack.c.l.b16 %v3113
  %v3153 = vunpack.c.l.b16 %v3114
  %v3154 = vunpack.c.l.b16 %v3115
  %v3155 = vunpack.c.l.b16 %v3116
  %v3156 = vunpack.c.l.b16 %v3117
  %v3157 = vunpack.c.l.b16 %v3118
  %v3158 = vunpack.c.l.b16 %v3119
  %v3159 = vunpack.c.l.b16 %v3120
  %v3160 = vunpack.c.l.b16 %v3121
  %v3161 = vunpack.c.l.b16 %v3122
  %v3162 = vunpack.c.l.b16 %v3123
  %v3163 = vunpack.c.l.b16 %v3124
  %v3164 = vunpack.c.l.b16 %v3125
  %v3165 = vunpack.c.l.b16 %v3126
  %v3166 = vunpack.c.l.b16 %v3127
  %v3167 = vunpack.c.l.b16 %v3128
  %v3168 = vpack.c.b16 %v3153, %v3152
  %v3169 = vpack.c.b16 %v3155, %v3154
  %v3170 = vpack.c.b16 %v3157, %v3156
  %v3171 = vpack.c.b16 %v3159, %v3158
  %v3172 = vpack.c.b16 %v3161, %v3160
  %v3173 = vpack.c.b16 %v3163, %v3162
  %v3174 = vpack.c.b16 %v3165, %v3164
  %v3175 = vpack.c.b16 %v3167, %v3166
  %3184 = vmatprep.subr.bf16.mxu0 0
  %3185 = vmatpush1.bf16.msra.mxu0 %v3168
  %3186 = vmatprep.subr.bf16.mxu0 0
  %3187 = vmatpush1.bf16.msra.mxu0 %v3169
  %3188 = vmatprep.subr.bf16.mxu0 0
  %3189 = vmatpush1.bf16.msra.mxu0 %v3170
  %3190 = vmatprep.subr.bf16.mxu0 0
  %3191 = vmatpush1.bf16.msra.mxu0 %v3171
  %3192 = vmatprep.subr.bf16.mxu0 0
  %3193 = vmatpush1.bf16.msra.mxu0 %v3172
  %3194 = vmatprep.subr.bf16.mxu0 0
  %3195 = vmatpush1.bf16.msra.mxu0 %v3173
  %3196 = vmatprep.subr.bf16.mxu0 0
  %3197 = vmatpush1.bf16.msra.mxu0 %v3174
  %3198 = vmatprep.subr.bf16.mxu0 0
  %3199 = vmatpush1.bf16.msra.mxu0 %v3175
  %3200 = vmatprep.subr.bf16.mxu0 0
  %3201 = vmatpush1.bf16.msra.mxu0 0
  %3202 = vmatprep.subr.bf16.mxu0 0
  %3203 = vmatpush1.bf16.msra.mxu0 0
  %3204 = vmatprep.subr.bf16.mxu0 0
  %3205 = vmatpush1.bf16.msra.mxu0 0
  %3206 = vmatprep.subr.bf16.mxu0 0
  %3207 = vmatpush1.bf16.msra.mxu0 0
  %3208 = vmatprep.subr.bf16.mxu0 0
  %3209 = vmatpush1.bf16.msra.mxu0 0
  %3210 = vmatprep.subr.bf16.mxu0 0
  %3211 = vmatpush1.bf16.msra.mxu0 0
  %3212 = vmatprep.subr.bf16.mxu0 0
  %3213 = vmatpush1.bf16.msra.mxu0 0
  %3214 = vmatprep.subr.bf16.mxu0 0
  %3215 = vmatpush1.bf16.msra.mxu0 0
  %3216 = vmatprep.mubr.bf16.mxu0 0
  %3217 = vmatmul.mubr.bf16.gmra.mrb[0].mxu0 %v3105
  %v3218 = vpop.f32.mrb[0].mxu0
  %v3219 = vadd.f32 %v3134, %v3218
  %v3220 = vpop.f32.mrb[0].mxu0
  %v3221 = vpop.f32.mrb[0].mxu0
  %v3222 = vadd.f32 %v3134, %v3221
  %v3223 = vpop.f32.mrb[0].mxu0
  %3224 = vmatprep.mubr.bf16.mxu0 0
  %3225 = vmatmul.mubr.bf16.gmra.mrb[0].mxu0 %v3106
  %v3226 = vpop.f32.mrb[0].mxu0
  %v3227 = vadd.f32 %v3134, %v3226
  %v3228 = vpop.f32.mrb[0].mxu0
  %v3229 = vpop.f32.mrb[0].mxu0
  %v3230 = vadd.f32 %v3134, %v3229
  %v3231 = vpop.f32.mrb[0].mxu0
  %3232 = vmatprep.mubr.bf16.mxu0 0
  %3233 = vmatmul.mubr.bf16.gmra.mrb[0].mxu0 %v3107
  %v3234 = vpop.f32.mrb[0].mxu0
  %v3235 = vadd.f32 %v3134, %v3234
  %v3236 = vpop.f32.mrb[0].mxu0
  %v3237 = vpop.f32.mrb[0].mxu0
  %v3238 = vadd.f32 %v3134, %v3237
  %v3239 = vpop.f32.mrb[0].mxu0
  %3240 = vmatprep.mubr.bf16.mxu0 0
  %3241 = vmatmul.mubr.bf16.gmra.mrb[0].mxu0 %v3108
  %v3242 = vpop.f32.mrb[0].mxu0
  %v3243 = vadd.f32 %v3134, %v3242
  %v3244 = vpop.f32.mrb[0].mxu0
  %v3245 = vpop.f32.mrb[0].mxu0
  %v3246 = vadd.f32 %v3134, %v3245
  %v3247 = vpop.f32.mrb[0].mxu0
  %3248 = vmatprep.mubr.bf16.mxu0 0
  %3249 = vmatmul.mubr.bf16.gmra.mrb[0].mxu0 %v3109
  %v3250 = vpop.f32.mrb[0].mxu0
  %v3251 = vadd.f32 %v3134, %v3250
  %v3252 = vpop.f32.mrb[0].mxu0
  %v3253 = vpop.f32.mrb[0].mxu0
  %v3254 = vadd.f32 %v3134, %v3253
  %v3255 = vpop.f32.mrb[0].mxu0
  %3256 = vmatprep.mubr.bf16.mxu0 0
  %3257 = vmatmul.mubr.bf16.gmra.mrb[0].mxu0 %v3110
  %v3258 = vpop.f32.mrb[0].mxu0
  %v3259 = vadd.f32 %v3134, %v3258
  %v3260 = vpop.f32.mrb[0].mxu0
  %v3261 = vpop.f32.mrb[0].mxu0
  %v3262 = vadd.f32 %v3134, %v3261
  %v3263 = vpop.f32.mrb[0].mxu0
  %3264 = vmatprep.mubr.bf16.mxu0 0
  %3265 = vmatmul.mubr.bf16.gmra.mrb[0].mxu0 %v3111
  %v3266 = vpop.f32.mrb[0].mxu0
  %v3267 = vadd.f32 %v3134, %v3266
  %v3268 = vpop.f32.mrb[0].mxu0
  %v3269 = vpop.f32.mrb[0].mxu0
  %v3270 = vadd.f32 %v3134, %v3269
  %v3271 = vpop.f32.mrb[0].mxu0
  %3272 = vmatprep.mubr.bf16.mxu0 0
  %3273 = vmatmul.mubr.bf16.gmra.mrb[0].mxu0 %v3112
  %v3274 = vpop.f32.mrb[0].mxu0
  %v3275 = vadd.f32 %v3134, %v3274
  %v3276 = vpop.f32.mrb[0].mxu0
  %v3277 = vpop.f32.mrb[0].mxu0
  %v3278 = vadd.f32 %v3134, %v3277
  %v3279 = vpop.f32.mrb[0].mxu0
  %3280 = vdwg.mxu0
  %v3281 = vadd.f32 %v3219, %v3058
  %v3282 = vadd.f32 %v3222, %v3060
  %v3283 = vadd.f32 %v3227, %v3062
  %v3284 = vadd.f32 %v3230, %v3064
  %v3285 = vadd.f32 %v3235, %v3066
  %v3286 = vadd.f32 %v3238, %v3068
  %v3287 = vadd.f32 %v3243, %v3070
  %v3288 = vadd.f32 %v3246, %v3072
  %v3289 = vadd.f32 %v3251, %v3074
  %v3290 = vadd.f32 %v3254, %v3076
  %v3291 = vadd.f32 %v3259, %v3078
  %v3292 = vadd.f32 %v3262, %v3080
  %v3293 = vadd.f32 %v3267, %v3082
  %v3294 = vadd.f32 %v3270, %v3084
  %v3295 = vadd.f32 %v3275, %v3086
  %v3296 = vadd.f32 %v3278, %v3088
  %v3297 = vmax.f32 %v3281, 0.0
  %v3298 = vmax.f32 %v3282, 0.0
  %v3299 = vmax.f32 %v3283, 0.0
  %v3300 = vmax.f32 %v3284, 0.0
  %v3301 = vmax.f32 %v3285, 0.0
  %v3302 = vmax.f32 %v3286, 0.0
  %v3303 = vmax.f32 %v3287, 0.0
  %v3304 = vmax.f32 %v3288, 0.0
  %v3305 = vmax.f32 %v3289, 0.0
  %v3306 = vmax.f32 %v3290, 0.0
  %v3307 = vmax.f32 %v3291, 0.0
  %v3308 = vmax.f32 %v3292, 0.0
  %v3309 = vmax.f32 %v3293, 0.0
  %v3310 = vmax.f32 %v3294, 0.0
  %v3311 = vmax.f32 %v3295, 0.0
  %v3312 = vmax.f32 %v3296, 0.0
  %3313 = vmatprep.subr.mxu0 0.0
  %3314 = vmatpush1.msra.mxu0 %v3297
  %3315 = vmatprep.subr.mxu0 0.0
  %3316 = vmatpush1.msra.mxu0 %v3298
  %3317 = vmatprep.subr.mxu0 0.0
  %3318 = vmatpush1.msra.mxu0 %v3299
  %3319 = vmatprep.subr.mxu0 0.0
  %3320 = vmatpush1.msra.mxu0 %v3300
  %3321 = vmatprep.subr.mxu0 0.0
  %3322 = vmatpush1.msra.mxu0 %v3301
  %3323 = vmatprep.subr.mxu0 0.0
  %3324 = vmatpush1.msra.mxu0 %v3302
  %3325 = vmatprep.subr.mxu0 0.0
  %3326 = vmatpush1.msra.mxu0 %v3303
  %3327 = vmatprep.subr.mxu0 0.0
  %3328 = vmatpush1.msra.mxu0 %v3304
  %3329 = vmatprep.subr.mxu0 0.0
  %3330 = vmatpush1.msra.mxu0 %v3305
  %3331 = vmatprep.subr.mxu0 0.0
  %3332 = vmatpush1.msra.mxu0 %v3306
  %3333 = vmatprep.subr.mxu0 0.0
  %3334 = vmatpush1.msra.mxu0 %v3307
  %3335 = vmatprep.subr.mxu0 0.0
  %3336 = vmatpush1.msra.mxu0 %v3308
  %3337 = vmatprep.subr.mxu0 0.0
  %3338 = vmatpush1.msra.mxu0 %v3309
  %3339 = vmatprep.subr.mxu0 0.0
  %3340 = vmatpush1.msra.mxu0 %v3310
  %3341 = vmatprep.subr.mxu0 0.0
  %3342 = vmatpush1.msra.mxu0 %v3311
  %3343 = vmatprep.subr.mxu0 0.0
  %3344 = vmatpush1.msra.mxu0 %v3312
  %3345 = vmatprep.subr.mxu0 0.0
  %3346 = vmatpush1.msra.mxu0 0.0
  %3347 = vmatprep.subr.mxu0 0.0
  %3348 = vmatpush1.msra.mxu0 0.0
  %3349 = vmatprep.subr.mxu0 0.0
  %3350 = vmatpush1.msra.mxu0 0.0
  %3351 = vmatprep.subr.mxu0 0.0
  %3352 = vmatpush1.msra.mxu0 0.0
  %3353 = vmatprep.subr.mxu0 0.0
  %3354 = vmatpush1.msra.mxu0 0.0
  %3355 = vmatprep.subr.mxu0 0.0
  %3356 = vmatpush1.msra.mxu0 0.0
  %3357 = vmatprep.subr.mxu0 0.0
  %3358 = vmatpush1.msra.mxu0 0.0
  %3359 = vmatprep.subr.mxu0 0.0
  %3360 = vmatpush1.msra.mxu0 0.0
  %3361 = vmatprep.subr.mxu0 0.0
  %3362 = vmatpush1.msra.mxu0 0.0
  %3363 = vmatprep.subr.mxu0 0.0
  %3364 = vmatpush1.msra.mxu0 0.0
  %3365 = vmatprep.subr.mxu0 0.0
  %3366 = vmatpush1.msra.mxu0 0.0
  %3367 = vmatprep.subr.mxu0 0.0
  %3368 = vmatpush1.msra.mxu0 0.0
  %3369 = vmatprep.subr.mxu0 0.0
  %3370 = vmatpush1.msra.mxu0 0.0
  %3371 = vmatprep.subr.mxu0 0.0
  %3372 = vmatpush1.msra.mxu0 0.0
  %3373 = vmatprep.subr.mxu0 0.0
  %3374 = vmatpush1.msra.mxu0 0.0
  %3375 = vmatprep.subr.mxu0 0.0
  %3376 = vmatpush1.msra.mxu0 0.0
  %3377 = vmatprep.mubr.f32.mxu0 0.0
  %3378 = vmatmul.mubr.f32.gmra.mrb[0].mxu0 %v1905
  %v3379 = vpop.f32.mrb[0].mxu0
  %v3380 = vadd.f32 0.0, %v3379
  %v3381 = vpop.f32.mrb[0].mxu0
  %3382 = vdwg.mxu0
  %3383 = vst [vmem:[%s19] sm:$0xff] %v3380
  // Predicated region
  $region78: #{forward.1} parent=0 // pred_check
    _
  $region79: #{forward.1} parent=0 // pred_check_branch
    %3385 = sbr.rel (0) target = $region81
  $region80: #{forward.1} parent=0 // pred_region
    _
  $region81: #{forward.1} parent=0 // pred_fallthru
    _
  // Predicated region
  $region82: #{forward.1} parent=0 // pred_check
    _
  $region83: #{forward.1} parent=0 // pred_check_branch
    %3387 = sbr.rel (0) target = $region85
  $region84: #{forward.1} parent=0 // pred_region
    _
  $region85: #{forward.1} parent=0 // pred_fallthru
    _
  // Predicated region
  $region86: #{forward.1} parent=0 // pred_check
    _
  $region87: #{forward.1} parent=0 // pred_check_branch
    %3389 = sbr.rel (0) target = $region89
  $region88: #{forward.1} parent=0 // pred_region
    _
  $region89: #{forward.1} parent=0 // pred_fallthru
    _
  // Predicated region
  $region90: #{forward.1} parent=0 // pred_check
    _
  $region91: #{forward.1} parent=0 // pred_check_branch
    %3391 = sbr.rel (0) target = $region93
  $region92: #{forward.1} parent=0 // pred_region
    _
  $region93: #{forward.1} parent=0 // pred_fallthru
    _

</llo_original>
